<compile_context>
chip_gen: v5e
topology: v5e:2x2
jax: 0.10.0
libtpu: 0.0.40
codegen_flags: <defaults>
</compile_context>

<pallas_src>
import functools

import jax
import jax.numpy as jnp
from jax import lax
from jax.experimental import pallas as pl
from jax.experimental.pallas import tpu as pltpu


_SUBLANES = 8  # f32 sublane tile; batch is padded to a multiple of this.


# ----------------------------------------------------------------------------
# Kernel body (whole model, one 8-row batch block per grid program)
# ----------------------------------------------------------------------------

def _lstm_cls_kernel(*refs, T, B_blk, H, D_in, parts_per_layer):
    """All bi-LSTM layers + FC head for one padded batch block.

    Column layout of the 8H gate axis: [fwd i,f,o,g | rev i,f,o,g].
    """
    idx = 0
    x_ref = refs[idx]; idx += 1
    layer_refs = []
    for P in parts_per_layer:
        wih_parts = refs[idx:idx + P]; idx += P
        bias_ref = refs[idx]; idx += 1
        whh_ref = refs[idx]; idx += 1
        layer_refs.append((wih_parts, bias_ref, whh_ref))
    w1f_ref, w1r_ref, b1_ref, w2_ref, b2_ref = refs[idx:idx + 5]; idx += 5
    out_ref = refs[idx]; idx += 1
    xw_sc, hf_seq, hr_seq, h_sc, c_sc = refs[idx:idx + 5]

    TB = T * B_blk
    H4 = 4 * H

    for li, (wih_parts, bias_ref, whh_ref) in enumerate(layer_refs):
        # ---- Hoisted input projection (off the serial recurrence path) ----
        if li == 0:
            lhs = (x_ref[...].reshape(TB, D_in).astype(jnp.bfloat16),)
        else:
            lhs = (hf_seq[...].reshape(TB, H).astype(jnp.bfloat16),
                   hr_seq[...].reshape(TB, H).astype(jnp.bfloat16))
        xw = jnp.dot(lhs[0], wih_parts[0][...],
                     preferred_element_type=jnp.float32)
        for p in range(1, len(wih_parts)):
            xw = xw + jnp.dot(lhs[p], wih_parts[p][...],
                              preferred_element_type=jnp.float32)
        xw = xw + bias_ref[...]                         # (TB, 8H) f32, b_ih+b_hh
        xw_sc[...] = xw.reshape(T, B_blk, 8 * H)

        whh = whh_ref[...]                              # (2H, 8H) bf16 block-diag

        h_sc[...] = jnp.zeros_like(h_sc)                # (B_blk, 2H) = [h_f|h_r]
        c_sc[...] = jnp.zeros_like(c_sc)                # (B_blk, 2H) = [c_f|c_r]

        def step(t, carry):
            rt = T - 1 - t
            # Single fused recurrent MXU push: [h_f|h_r] @ blockdiag(Whh_f,Whh_r)
            rec = jnp.dot(h_sc[...].astype(jnp.bfloat16), whh,
                          preferred_element_type=jnp.float32)   # (B_blk, 8H)
            xf = xw_sc[t]                                        # (B_blk, 8H)
            xr = xw_sc[rt]
            gf = rec[:, 0:H4] + xf[:, 0:H4]             # fwd gates [i, f, o, g]
            gr = rec[:, H4:2 * H4] + xr[:, H4:2 * H4]   # rev gates [i, f, o, g]
            # Sliced transcendentals: sigmoid only on i,f,o; tanh only on g.
            sf = jax.nn.sigmoid(gf[:, 0:3 * H])
            sr = jax.nn.sigmoid(gr[:, 0:3 * H])
            tgf = jnp.tanh(gf[:, 3 * H:H4])
            tgr = jnp.tanh(gr[:, 3 * H:H4])
            c_f = sf[:, H:2 * H] * c_sc[:, 0:H] + sf[:, 0:H] * tgf
            c_r = sr[:, H:2 * H] * c_sc[:, H:2 * H] + sr[:, 0:H] * tgr
            h_f = sf[:, 2 * H:3 * H] * jnp.tanh(c_f)
            h_r = sr[:, 2 * H:3 * H] * jnp.tanh(c_r)
            c_sc[:, 0:H] = c_f
            c_sc[:, H:2 * H] = c_r
            h_sc[:, 0:H] = h_f
            h_sc[:, H:2 * H] = h_r
            # Sublane-aligned full-row sequence stores (off the dep chain).
            hf_seq[t] = h_f
            hr_seq[rt] = h_r
            return carry

        if T <= 16:
            # Short sequence: static loop, static indexing (zero-risk path).
            for t in range(T):
                step(t, 0)
        else:
            # Long sequence: bounded live ranges, scheduler-visible unroll.
            lax.fori_loop(0, T, step, 0, unroll=8)

    # ---- Fused FC head: Linear(2H->H) + ReLU + Linear(H->1) + Sigmoid ----
    hf2d = hf_seq[...].reshape(TB, H).astype(jnp.bfloat16)
    hr2d = hr_seq[...].reshape(TB, H).astype(jnp.bfloat16)
    z = (jnp.dot(hf2d, w1f_ref[...], preferred_element_type=jnp.float32)
         + jnp.dot(hr2d, w1r_ref[...], preferred_element_type=jnp.float32)
         + b1_ref[...])
    z = jnp.maximum(z, 0.0)
    # Final H->1 projection: VPU multiply + lane reduction (no 1-wide matmul).
    y = jnp.sum(z * w2_ref[...], axis=-1, keepdims=True) + b2_ref[...]
    out_ref[...] = jax.nn.sigmoid(y).reshape(T, B_blk, 1)


# ----------------------------------------------------------------------------
# pallas_call wrapper
# ----------------------------------------------------------------------------

def _full_spec(shape):
    nd = len(shape)
    return pl.BlockSpec(shape, lambda *_: (0,) * nd)


def lstm_silence_classifier(x, params):
    """x: (B, T, input_size) -> (B, T, 1), matching the PyTorch module (eval)."""
    B, T, D_in = x.shape
    H = params["lstm"][0][2].shape[0] // 2        # whh_bd is (2H, 8H)
    B_pad = ((B + _SUBLANES - 1) // _SUBLANES) * _SUBLANES
    B_blk = _SUBLANES
    n_blk = B_pad // B_blk

    # Time-major, batch zero-padded to a sublane multiple (kept f32; casts to
    # bf16 for the MXU happen inside the kernel).
    x_tm = jnp.transpose(x, (1, 0, 2)).astype(jnp.float32)     # (T, B, D)
    x_tm = jnp.pad(x_tm, ((0, 0), (0, B_pad - B), (0, 0)))     # (T, B_pad, D)

    flat_inputs = [x_tm]
    parts_per_layer = []
    for wih_parts, bias, whh_bd in params["lstm"]:
        parts_per_layer.append(len(wih_parts))
        flat_inputs.extend(list(wih_parts))
        flat_inputs.append(bias)
        flat_inputs.append(whh_bd)
    w1f, w1r, b1, w2, b2 = params["fc"]
    flat_inputs += [w1f, w1r, b1, w2, b2]

    in_specs = [pl.BlockSpec((T, B_blk, D_in), lambda i: (0, i, 0))]
    in_specs += [_full_spec(a.shape) for a in flat_inputs[1:]]

    out_shape = jax.ShapeDtypeStruct((T, B_pad, 1), jnp.float32)
    out_spec = pl.BlockSpec((T, B_blk, 1), lambda i: (0, i, 0))

    scratch_shapes = [
        pltpu.VMEM((T, B_blk, 8 * H), jnp.float32),   # hoisted x @ W_ih (+bias)
        pltpu.VMEM((T, B_blk, H), jnp.float32),       # forward hidden sequence
        pltpu.VMEM((T, B_blk, H), jnp.float32),       # reverse hidden sequence
        pltpu.VMEM((B_blk, 2 * H), jnp.float32),      # h = [h_f | h_r]
        pltpu.VMEM((B_blk, 2 * H), jnp.float32),      # c = [c_f | c_r]
    ]

    # Scoped-VMEM budget from actual usage (v5e's default is only 16 MiB).
    in_out_bytes = sum(int(a.size) * a.dtype.itemsize for a in flat_inputs)
    in_out_bytes += T * B_pad * 4
    scratch_bytes = (T * B_blk * 8 * H + 2 * T * B_blk * H + 4 * B_blk * H) * 4
    vmem_limit = int(min(64 << 20,
                         max(32 << 20,
                             2 * (in_out_bytes + scratch_bytes) + (4 << 20))))

    kernel = functools.partial(
        _lstm_cls_kernel, T=T, B_blk=B_blk, H=H, D_in=D_in,
        parts_per_layer=tuple(parts_per_layer))

    out = pl.pallas_call(
        kernel,
        grid=(n_blk,),
        out_shape=out_shape,
        in_specs=in_specs,
        out_specs=out_spec,
        scratch_shapes=scratch_shapes,
        compiler_params=pltpu.CompilerParams(
            dimension_semantics=("parallel",),   # batch blocks -> 2 TCs on v7x
            vmem_limit_bytes=vmem_limit),
    )(*flat_inputs)

    out = out[:, :B, :]                       # drop batch padding
    return jnp.transpose(out, (1, 0, 2))      # (B, T, 1)


# ----------------------------------------------------------------------------
# Parameters (PyTorch-like init, pre-arranged for the kernel)
# ----------------------------------------------------------------------------

def init_params(key, input_size, hidden_size, num_layers):
    """Gate column order per direction is [i, f, o, g]; W_hh is stored as a
    block-diagonal (2H, 8H) matrix; W_ih of deeper layers is pre-split into
    the rows multiplying the forward / reverse hidden of the previous layer.
    MXU operands (W_ih, W_hh, FC W1) are bf16; biases and the 1-wide W2 stay
    f32 (VPU path)."""
    H = hidden_size
    bound = 1.0 / (H ** 0.5)
    params = {"lstm": []}
    for layer in range(num_layers):
        d_in = input_size if layer == 0 else 2 * H
        key, kf1, kf2, kf3, kf4, kr1, kr2, kr3, kr4 = jax.random.split(key, 9)
        wih_f = jax.random.uniform(kf1, (d_in, 4 * H), jnp.float32, -bound, bound)
        whh_f = jax.random.uniform(kf2, (H, 4 * H), jnp.float32, -bound, bound)
        b_f = (jax.random.uniform(kf3, (4 * H,), jnp.float32, -bound, bound)
               + jax.random.uniform(kf4, (4 * H,), jnp.float32, -bound, bound))
        wih_r = jax.random.uniform(kr1, (d_in, 4 * H), jnp.float32, -bound, bound)
        whh_r = jax.random.uniform(kr2, (H, 4 * H), jnp.float32, -bound, bound)
        b_r = (jax.random.uniform(kr3, (4 * H,), jnp.float32, -bound, bound)
               + jax.random.uniform(kr4, (4 * H,), jnp.float32, -bound, bound))

        wih_wide = jnp.concatenate([wih_f, wih_r], axis=1)        # (d_in, 8H)
        bias = jnp.concatenate([b_f, b_r]).reshape(1, 8 * H)      # f32
        whh_bd = jnp.zeros((2 * H, 8 * H), jnp.float32)
        whh_bd = whh_bd.at[:H, :4 * H].set(whh_f).at[H:, 4 * H:].set(whh_r)

        if layer == 0:
            wih_parts = (wih_wide.astype(jnp.bfloat16),)
        else:
            wih_parts = (wih_wide[:H].astype(jnp.bfloat16),
                         wih_wide[H:].astype(jnp.bfloat16))
        params["lstm"].append((wih_parts, bias, whh_bd.astype(jnp.bfloat16)))

    key, k1, k2, k3, k4 = jax.random.split(key, 5)
    b1_bound = 1.0 / ((2 * H) ** 0.5)
    b2_bound = 1.0 / (H ** 0.5)
    w1 = jax.random.uniform(k1, (2 * H, H), jnp.float32, -b1_bound, b1_bound)
    b1 = jax.random.uniform(k2, (1, H), jnp.float32, -b1_bound, b1_bound)
    w2 = jax.random.uniform(k3, (1, H), jnp.float32, -b2_bound, b2_bound)
    b2 = jax.random.uniform(k4, (1, 1), jnp.float32, -b2_bound, b2_bound)
    params["fc"] = (w1[:H].astype(jnp.bfloat16),    # rows multiplying h_fwd
                    w1[H:].astype(jnp.bfloat16),    # rows multiplying h_rev
                    b1, w2, b2)
    return params


if __name__ == "__main__":
    B, T, INPUT_SIZE, HIDDEN = 2, 8, 16, 32
    NUM_LAYERS = 2

    key = jax.random.PRNGKey(0)
    key, xkey = jax.random.split(key)
    x = jax.random.normal(xkey, (B, T, INPUT_SIZE), jnp.float32)

    params = init_params(key, INPUT_SIZE, HIDDEN, NUM_LAYERS)

    out = jax.jit(lstm_silence_classifier)(x, params)
    out = jax.block_until_ready(out)

    assert out.shape == (B, T, 1), out.shape
    assert bool(jnp.all((out >= 0.0) & (out <= 1.0))), "sigmoid range violated"
    print("KERNEL_OK")
</pallas_src>

<mosaic_0001>
module attributes {stable_mosaic.version = 11 : i64} {
  func.func @_lstm_cls_kernel(%arg0: i32, %arg1: memref<8x8x16xf32, #tpu.memory_space<vmem>>, %arg2: memref<16x256xbf16, #tpu.memory_space<vmem>>, %arg3: memref<1x256xf32, #tpu.memory_space<vmem>>, %arg4: memref<64x256xbf16, #tpu.memory_space<vmem>>, %arg5: memref<32x256xbf16, #tpu.memory_space<vmem>>, %arg6: memref<32x256xbf16, #tpu.memory_space<vmem>>, %arg7: memref<1x256xf32, #tpu.memory_space<vmem>>, %arg8: memref<64x256xbf16, #tpu.memory_space<vmem>>, %arg9: memref<32x32xbf16, #tpu.memory_space<vmem>>, %arg10: memref<32x32xbf16, #tpu.memory_space<vmem>>, %arg11: memref<1x32xf32, #tpu.memory_space<vmem>>, %arg12: memref<1x32xf32, #tpu.memory_space<vmem>>, %arg13: memref<1x1xf32, #tpu.memory_space<vmem>>, %arg14: memref<8x8x1xf32, #tpu.memory_space<vmem>>, %arg15: memref<8x8x256xf32, #tpu.memory_space<vmem>>, %arg16: memref<8x8x32xf32, #tpu.memory_space<vmem>>, %arg17: memref<8x8x32xf32, #tpu.memory_space<vmem>>, %arg18: memref<8x64xf32, #tpu.memory_space<vmem>>, %arg19: memref<8x64xf32, #tpu.memory_space<vmem>>) attributes {dimension_semantics = [#tpu.dimension_semantics<parallel>], iteration_bounds = array<i64: 1>, scalar_prefetch = 0 : i64, scratch_operands = 5 : i64, tpu.core_type = #tpu.core_type<tc>, window_params = [{transform_indices = @transform_0, window_bounds = array<i64: 8, 8, 16>}, {pipeline_mode = #tpu.pipeline_mode<synchronous>, transform_indices = @transform_1, window_bounds = array<i64: 16, 256>}, {pipeline_mode = #tpu.pipeline_mode<synchronous>, transform_indices = @transform_2, window_bounds = array<i64: 1, 256>}, {pipeline_mode = #tpu.pipeline_mode<synchronous>, transform_indices = @transform_3, window_bounds = array<i64: 64, 256>}, {pipeline_mode = #tpu.pipeline_mode<synchronous>, transform_indices = @transform_4, window_bounds = array<i64: 32, 256>}, {pipeline_mode = #tpu.pipeline_mode<synchronous>, transform_indices = @transform_5, window_bounds = array<i64: 32, 256>}, {pipeline_mode = #tpu.pipeline_mode<synchronous>, transform_indices = @transform_6, window_bounds = array<i64: 1, 256>}, {pipeline_mode = #tpu.pipeline_mode<synchronous>, transform_indices = @transform_7, window_bounds = array<i64: 64, 256>}, {pipeline_mode = #tpu.pipeline_mode<synchronous>, transform_indices = @transform_8, window_bounds = array<i64: 32, 32>}, {pipeline_mode = #tpu.pipeline_mode<synchronous>, transform_indices = @transform_9, window_bounds = array<i64: 32, 32>}, {pipeline_mode = #tpu.pipeline_mode<synchronous>, transform_indices = @transform_10, window_bounds = array<i64: 1, 32>}, {pipeline_mode = #tpu.pipeline_mode<synchronous>, transform_indices = @transform_11, window_bounds = array<i64: 1, 32>}, {pipeline_mode = #tpu.pipeline_mode<synchronous>, transform_indices = @transform_12, window_bounds = array<i64: 1, 1>}, {transform_indices = @transform_13, window_bounds = array<i64: 8, 8, 1>}]} {
    %c0 = arith.constant 0 : index
    %c0_0 = arith.constant 0 : index
    %c0_1 = arith.constant 0 : index
    %0 = vector.load %arg1[%c0, %c0_0, %c0_1] : memref<8x8x16xf32, #tpu.memory_space<vmem>>, vector<8x8x16xf32>
    %1 = vector.shape_cast %0 : vector<8x8x16xf32> to vector<64x16xf32>
    %2 = arith.truncf %1 : vector<64x16xf32> to vector<64x16xbf16>
    %c0_2 = arith.constant 0 : index
    %c0_3 = arith.constant 0 : index
    %3 = vector.load %arg2[%c0_2, %c0_3] : memref<16x256xbf16, #tpu.memory_space<vmem>>, vector<16x256xbf16>
    %cst = arith.constant dense<0.000000e+00> : vector<64x256xf32>
    %4 = tpu.matmul %2, %3, %cst {dimension_numbers = #tpu.dot_dimension_numbers<[1], [0], [0], [1], [0, 0, 1, 1], [], []>} : vector<64x16xbf16>, vector<16x256xbf16>, vector<64x256xf32> -> vector<64x256xf32>
    %c0_4 = arith.constant 0 : index
    %c0_5 = arith.constant 0 : index
    %5 = vector.load %arg3[%c0_4, %c0_5] : memref<1x256xf32, #tpu.memory_space<vmem>>, vector<1x256xf32>
    %6 = vector.broadcast %5 : vector<1x256xf32> to vector<64x256xf32>
    %7 = arith.addf %4, %6 : vector<64x256xf32>
    %8 = vector.shape_cast %7 : vector<64x256xf32> to vector<8x8x256xf32>
    %c0_6 = arith.constant 0 : index
    %c0_7 = arith.constant 0 : index
    %c0_8 = arith.constant 0 : index
    %9 = vector.load %arg15[%c0_6, %c0_7, %c0_8] : memref<8x8x256xf32, #tpu.memory_space<vmem>>, vector<8x8x256xf32>
    tpu.vector_store %arg15[%c0_6, %c0_7, %c0_8], %8 {strides = array<i32>} : memref<8x8x256xf32, #tpu.memory_space<vmem>>, vector<8x8x256xf32>,
    %c0_9 = arith.constant 0 : index
    %c0_10 = arith.constant 0 : index
    %10 = vector.load %arg4[%c0_9, %c0_10] : memref<64x256xbf16, #tpu.memory_space<vmem>>, vector<64x256xbf16>
    %cst_11 = arith.constant 0.000000e+00 : f32
    %11 = vector.broadcast %cst_11 : f32 to vector<8x64xf32>
    %c0_12 = arith.constant 0 : index
    %c0_13 = arith.constant 0 : index
    %12 = vector.load %arg18[%c0_12, %c0_13] : memref<8x64xf32, #tpu.memory_space<vmem>>, vector<8x64xf32>
    tpu.vector_store %arg18[%c0_12, %c0_13], %11 {strides = array<i32>} : memref<8x64xf32, #tpu.memory_space<vmem>>, vector<8x64xf32>,
    %cst_14 = arith.constant 0.000000e+00 : f32
    %13 = vector.broadcast %cst_14 : f32 to vector<8x64xf32>
    %c0_15 = arith.constant 0 : index
    %c0_16 = arith.constant 0 : index
    %14 = vector.load %arg19[%c0_15, %c0_16] : memref<8x64xf32, #tpu.memory_space<vmem>>, vector<8x64xf32>
    tpu.vector_store %arg19[%c0_15, %c0_16], %13 {strides = array<i32>} : memref<8x64xf32, #tpu.memory_space<vmem>>, vector<8x64xf32>,
    %c0_17 = arith.constant 0 : index
    %c0_18 = arith.constant 0 : index
    %15 = vector.load %arg18[%c0_17, %c0_18] : memref<8x64xf32, #tpu.memory_space<vmem>>, vector<8x64xf32>
    %16 = arith.truncf %15 : vector<8x64xf32> to vector<8x64xbf16>
    %cst_19 = arith.constant dense<0.000000e+00> : vector<8x256xf32>
    %17 = tpu.matmul %16, %10, %cst_19 {dimension_numbers = #tpu.dot_dimension_numbers<[1], [0], [0], [1], [0, 0, 1, 1], [], []>} : vector<8x64xbf16>, vector<64x256xbf16>, vector<8x256xf32> -> vector<8x256xf32>
    %c0_20 = arith.constant 0 : index
    %c0_21 = arith.constant 0 : index
    %c0_22 = arith.constant 0 : index
    %18 = vector.load %arg15[%c0_20, %c0_21, %c0_22] : memref<8x8x256xf32, #tpu.memory_space<vmem>>, vector<1x8x256xf32>
    %19 = vector.shape_cast %18 : vector<1x8x256xf32> to vector<8x256xf32>
    %c7 = arith.constant 7 : index
    %c0_23 = arith.constant 0 : index
    %c0_24 = arith.constant 0 : index
    %20 = vector.load %arg15[%c7, %c0_23, %c0_24] : memref<8x8x256xf32, #tpu.memory_space<vmem>>, vector<1x8x256xf32>
    %21 = vector.shape_cast %20 : vector<1x8x256xf32> to vector<8x256xf32>
    %22 = vector.extract_strided_slice %17 {offsets = [0, 0], sizes = [8, 128], strides = [1, 1]} : vector<8x256xf32> to vector<8x128xf32>
    %23 = vector.extract_strided_slice %19 {offsets = [0, 0], sizes = [8, 128], strides = [1, 1]} : vector<8x256xf32> to vector<8x128xf32>
    %24 = arith.addf %22, %23 : vector<8x128xf32>
    %25 = vector.extract_strided_slice %17 {offsets = [0, 128], sizes = [8, 128], strides = [1, 1]} : vector<8x256xf32> to vector<8x128xf32>
    %26 = vector.extract_strided_slice %21 {offsets = [0, 128], sizes = [8, 128], strides = [1, 1]} : vector<8x256xf32> to vector<8x128xf32>
    %27 = arith.addf %25, %26 : vector<8x128xf32>
    %28 = vector.extract_strided_slice %24 {offsets = [0, 0], sizes = [8, 96], strides = [1, 1]} : vector<8x128xf32> to vector<8x96xf32>
    %29 = arith.negf %28 : vector<8x96xf32>
    %30 = math.exp %29 : vector<8x96xf32>
    %cst_25 = arith.constant 1.000000e+00 : f32
    %31 = vector.broadcast %cst_25 : f32 to vector<8x96xf32>
    %32 = arith.addf %31, %30 : vector<8x96xf32>
    %33 = arith.divf %31, %32 : vector<8x96xf32>
    %34 = vector.extract_strided_slice %27 {offsets = [0, 0], sizes = [8, 96], strides = [1, 1]} : vector<8x128xf32> to vector<8x96xf32>
    %35 = arith.negf %34 : vector<8x96xf32>
    %36 = math.exp %35 : vector<8x96xf32>
    %cst_26 = arith.constant 1.000000e+00 : f32
    %37 = vector.broadcast %cst_26 : f32 to vector<8x96xf32>
    %38 = arith.addf %37, %36 : vector<8x96xf32>
    %39 = arith.divf %37, %38 : vector<8x96xf32>
    %40 = vector.extract_strided_slice %24 {offsets = [0, 96], sizes = [8, 32], strides = [1, 1]} : vector<8x128xf32> to vector<8x32xf32>
    %41 = math.tanh %40 : vector<8x32xf32>
    %42 = vector.extract_strided_slice %27 {offsets = [0, 96], sizes = [8, 32], strides = [1, 1]} : vector<8x128xf32> to vector<8x32xf32>
    %43 = math.tanh %42 : vector<8x32xf32>
    %44 = vector.extract_strided_slice %33 {offsets = [0, 32], sizes = [8, 32], strides = [1, 1]} : vector<8x96xf32> to vector<8x32xf32>
    %c0_27 = arith.constant 0 : index
    %c0_28 = arith.constant 0 : index
    %45 = vector.load %arg19[%c0_27, %c0_28] : memref<8x64xf32, #tpu.memory_space<vmem>>, vector<8x32xf32>
    %46 = arith.mulf %44, %45 : vector<8x32xf32>
    %47 = vector.extract_strided_slice %33 {offsets = [0, 0], sizes = [8, 32], strides = [1, 1]} : vector<8x96xf32> to vector<8x32xf32>
    %48 = arith.mulf %47, %41 : vector<8x32xf32>
    %49 = arith.addf %46, %48 : vector<8x32xf32>
    %50 = vector.extract_strided_slice %39 {offsets = [0, 32], sizes = [8, 32], strides = [1, 1]} : vector<8x96xf32> to vector<8x32xf32>
    %c0_29 = arith.constant 0 : index
    %c32 = arith.constant 32 : index
    %51 = vector.load %arg19[%c0_29, %c32] : memref<8x64xf32, #tpu.memory_space<vmem>>, vector<8x32xf32>
    %52 = arith.mulf %50, %51 : vector<8x32xf32>
    %53 = vector.extract_strided_slice %39 {offsets = [0, 0], sizes = [8, 32], strides = [1, 1]} : vector<8x96xf32> to vector<8x32xf32>
    %54 = arith.mulf %53, %43 : vector<8x32xf32>
    %55 = arith.addf %52, %54 : vector<8x32xf32>
    %56 = vector.extract_strided_slice %33 {offsets = [0, 64], sizes = [8, 32], strides = [1, 1]} : vector<8x96xf32> to vector<8x32xf32>
    %57 = math.tanh %49 : vector<8x32xf32>
    %58 = arith.mulf %56, %57 : vector<8x32xf32>
    %59 = vector.extract_strided_slice %39 {offsets = [0, 64], sizes = [8, 32], strides = [1, 1]} : vector<8x96xf32> to vector<8x32xf32>
    %60 = math.tanh %55 : vector<8x32xf32>
    %61 = arith.mulf %59, %60 : vector<8x32xf32>
    %c0_30 = arith.constant 0 : index
    %c0_31 = arith.constant 0 : index
    %62 = vector.load %arg19[%c0_30, %c0_31] : memref<8x64xf32, #tpu.memory_space<vmem>>, vector<8x32xf32>
    tpu.vector_store %arg19[%c0_30, %c0_31], %49 {strides = array<i32>} : memref<8x64xf32, #tpu.memory_space<vmem>>, vector<8x32xf32>,
    %c0_32 = arith.constant 0 : index
    %c32_33 = arith.constant 32 : index
    %63 = vector.load %arg19[%c0_32, %c32_33] : memref<8x64xf32, #tpu.memory_space<vmem>>, vector<8x32xf32>
    tpu.vector_store %arg19[%c0_32, %c32_33], %55 {strides = array<i32>} : memref<8x64xf32, #tpu.memory_space<vmem>>, vector<8x32xf32>,
    %c0_34 = arith.constant 0 : index
    %c0_35 = arith.constant 0 : index
    %64 = vector.load %arg18[%c0_34, %c0_35] : memref<8x64xf32, #tpu.memory_space<vmem>>, vector<8x32xf32>
    tpu.vector_store %arg18[%c0_34, %c0_35], %58 {strides = array<i32>} : memref<8x64xf32, #tpu.memory_space<vmem>>, vector<8x32xf32>,
    %c0_36 = arith.constant 0 : index
    %c32_37 = arith.constant 32 : index
    %65 = vector.load %arg18[%c0_36, %c32_37] : memref<8x64xf32, #tpu.memory_space<vmem>>, vector<8x32xf32>
    tpu.vector_store %arg18[%c0_36, %c32_37], %61 {strides = array<i32>} : memref<8x64xf32, #tpu.memory_space<vmem>>, vector<8x32xf32>,
    %c0_38 = arith.constant 0 : index
    %c0_39 = arith.constant 0 : index
    %c0_40 = arith.constant 0 : index
    %66 = vector.load %arg16[%c0_38, %c0_39, %c0_40] : memref<8x8x32xf32, #tpu.memory_space<vmem>>, vector<1x8x32xf32>
    %67 = vector.shape_cast %66 : vector<1x8x32xf32> to vector<8x32xf32>
    %68 = vector.shape_cast %58 : vector<8x32xf32> to vector<1x8x32xf32>
    tpu.vector_store %arg16[%c0_38, %c0_39, %c0_40], %68 {strides = array<i32>} : memref<8x8x32xf32, #tpu.memory_space<vmem>>, vector<1x8x32xf32>,
    %c7_41 = arith.constant 7 : index
    %c0_42 = arith.constant 0 : index
    %c0_43 = arith.constant 0 : index
    %69 = vector.load %arg17[%c7_41, %c0_42, %c0_43] : memref<8x8x32xf32, #tpu.memory_space<vmem>>, vector<1x8x32xf32>
    %70 = vector.shape_cast %69 : vector<1x8x32xf32> to vector<8x32xf32>
    %71 = vector.shape_cast %61 : vector<8x32xf32> to vector<1x8x32xf32>
    tpu.vector_store %arg17[%c7_41, %c0_42, %c0_43], %71 {strides = array<i32>} : memref<8x8x32xf32, #tpu.memory_space<vmem>>, vector<1x8x32xf32>,
    %c0_44 = arith.constant 0 : index
    %c0_45 = arith.constant 0 : index
    %72 = vector.load %arg18[%c0_44, %c0_45] : memref<8x64xf32, #tpu.memory_space<vmem>>, vector<8x64xf32>
    %73 = arith.truncf %72 : vector<8x64xf32> to vector<8x64xbf16>
    %cst_46 = arith.constant dense<0.000000e+00> : vector<8x256xf32>
    %74 = tpu.matmul %73, %10, %cst_46 {dimension_numbers = #tpu.dot_dimension_numbers<[1], [0], [0], [1], [0, 0, 1, 1], [], []>} : vector<8x64xbf16>, vector<64x256xbf16>, vector<8x256xf32> -> vector<8x256xf32>
    %c1 = arith.constant 1 : index
    %c0_47 = arith.constant 0 : index
    %c0_48 = arith.constant 0 : index
    %75 = vector.load %arg15[%c1, %c0_47, %c0_48] : memref<8x8x256xf32, #tpu.memory_space<vmem>>, vector<1x8x256xf32>
    %76 = vector.shape_cast %75 : vector<1x8x256xf32> to vector<8x256xf32>
    %c6 = arith.constant 6 : index
    %c0_49 = arith.constant 0 : index
    %c0_50 = arith.constant 0 : index
    %77 = vector.load %arg15[%c6, %c0_49, %c0_50] : memref<8x8x256xf32, #tpu.memory_space<vmem>>, vector<1x8x256xf32>
    %78 = vector.shape_cast %77 : vector<1x8x256xf32> to vector<8x256xf32>
    %79 = vector.extract_strided_slice %74 {offsets = [0, 0], sizes = [8, 128], strides = [1, 1]} : vector<8x256xf32> to vector<8x128xf32>
    %80 = vector.extract_strided_slice %76 {offsets = [0, 0], sizes = [8, 128], strides = [1, 1]} : vector<8x256xf32> to vector<8x128xf32>
    %81 = arith.addf %79, %80 : vector<8x128xf32>
    %82 = vector.extract_strided_slice %74 {offsets = [0, 128], sizes = [8, 128], strides = [1, 1]} : vector<8x256xf32> to vector<8x128xf32>
    %83 = vector.extract_strided_slice %78 {offsets = [0, 128], sizes = [8, 128], strides = [1, 1]} : vector<8x256xf32> to vector<8x128xf32>
    %84 = arith.addf %82, %83 : vector<8x128xf32>
    %85 = vector.extract_strided_slice %81 {offsets = [0, 0], sizes = [8, 96], strides = [1, 1]} : vector<8x128xf32> to vector<8x96xf32>
    %86 = arith.negf %85 : vector<8x96xf32>
    %87 = math.exp %86 : vector<8x96xf32>
    %cst_51 = arith.constant 1.000000e+00 : f32
    %88 = vector.broadcast %cst_51 : f32 to vector<8x96xf32>
    %89 = arith.addf %88, %87 : vector<8x96xf32>
    %90 = arith.divf %88, %89 : vector<8x96xf32>
    %91 = vector.extract_strided_slice %84 {offsets = [0, 0], sizes = [8, 96], strides = [1, 1]} : vector<8x128xf32> to vector<8x96xf32>
    %92 = arith.negf %91 : vector<8x96xf32>
    %93 = math.exp %92 : vector<8x96xf32>
    %cst_52 = arith.constant 1.000000e+00 : f32
    %94 = vector.broadcast %cst_52 : f32 to vector<8x96xf32>
    %95 = arith.addf %94, %93 : vector<8x96xf32>
    %96 = arith.divf %94, %95 : vector<8x96xf32>
    %97 = vector.extract_strided_slice %81 {offsets = [0, 96], sizes = [8, 32], strides = [1, 1]} : vector<8x128xf32> to vector<8x32xf32>
    %98 = math.tanh %97 : vector<8x32xf32>
    %99 = vector.extract_strided_slice %84 {offsets = [0, 96], sizes = [8, 32], strides = [1, 1]} : vector<8x128xf32> to vector<8x32xf32>
    %100 = math.tanh %99 : vector<8x32xf32>
    %101 = vector.extract_strided_slice %90 {offsets = [0, 32], sizes = [8, 32], strides = [1, 1]} : vector<8x96xf32> to vector<8x32xf32>
    %c0_53 = arith.constant 0 : index
    %c0_54 = arith.constant 0 : index
    %102 = vector.load %arg19[%c0_53, %c0_54] : memref<8x64xf32, #tpu.memory_space<vmem>>, vector<8x32xf32>
    %103 = arith.mulf %101, %102 : vector<8x32xf32>
    %104 = vector.extract_strided_slice %90 {offsets = [0, 0], sizes = [8, 32], strides = [1, 1]} : vector<8x96xf32> to vector<8x32xf32>
    %105 = arith.mulf %104, %98 : vector<8x32xf32>
    %106 = arith.addf %103, %105 : vector<8x32xf32>
    %107 = vector.extract_strided_slice %96 {offsets = [0, 32], sizes = [8, 32], strides = [1, 1]} : vector<8x96xf32> to vector<8x32xf32>
    %c0_55 = arith.constant 0 : index
    %c32_56 = arith.constant 32 : index
    %108 = vector.load %arg19[%c0_55, %c32_56] : memref<8x64xf32, #tpu.memory_space<vmem>>, vector<8x32xf32>
    %109 = arith.mulf %107, %108 : vector<8x32xf32>
    %110 = vector.extract_strided_slice %96 {offsets = [0, 0], sizes = [8, 32], strides = [1, 1]} : vector<8x96xf32> to vector<8x32xf32>
    %111 = arith.mulf %110, %100 : vector<8x32xf32>
    %112 = arith.addf %109, %111 : vector<8x32xf32>
    %113 = vector.extract_strided_slice %90 {offsets = [0, 64], sizes = [8, 32], strides = [1, 1]} : vector<8x96xf32> to vector<8x32xf32>
    %114 = math.tanh %106 : vector<8x32xf32>
    %115 = arith.mulf %113, %114 : vector<8x32xf32>
    %116 = vector.extract_strided_slice %96 {offsets = [0, 64], sizes = [8, 32], strides = [1, 1]} : vector<8x96xf32> to vector<8x32xf32>
    %117 = math.tanh %112 : vector<8x32xf32>
    %118 = arith.mulf %116, %117 : vector<8x32xf32>
    %c0_57 = arith.constant 0 : index
    %c0_58 = arith.constant 0 : index
    %119 = vector.load %arg19[%c0_57, %c0_58] : memref<8x64xf32, #tpu.memory_space<vmem>>, vector<8x32xf32>
    tpu.vector_store %arg19[%c0_57, %c0_58], %106 {strides = array<i32>} : memref<8x64xf32, #tpu.memory_space<vmem>>, vector<8x32xf32>,
    %c0_59 = arith.constant 0 : index
    %c32_60 = arith.constant 32 : index
    %120 = vector.load %arg19[%c0_59, %c32_60] : memref<8x64xf32, #tpu.memory_space<vmem>>, vector<8x32xf32>
    tpu.vector_store %arg19[%c0_59, %c32_60], %112 {strides = array<i32>} : memref<8x64xf32, #tpu.memory_space<vmem>>, vector<8x32xf32>,
    %c0_61 = arith.constant 0 : index
    %c0_62 = arith.constant 0 : index
    %121 = vector.load %arg18[%c0_61, %c0_62] : memref<8x64xf32, #tpu.memory_space<vmem>>, vector<8x32xf32>
    tpu.vector_store %arg18[%c0_61, %c0_62], %115 {strides = array<i32>} : memref<8x64xf32, #tpu.memory_space<vmem>>, vector<8x32xf32>,
    %c0_63 = arith.constant 0 : index
    %c32_64 = arith.constant 32 : index
    %122 = vector.load %arg18[%c0_63, %c32_64] : memref<8x64xf32, #tpu.memory_space<vmem>>, vector<8x32xf32>
    tpu.vector_store %arg18[%c0_63, %c32_64], %118 {strides = array<i32>} : memref<8x64xf32, #tpu.memory_space<vmem>>, vector<8x32xf32>,
    %c1_65 = arith.constant 1 : index
    %c0_66 = arith.constant 0 : index
    %c0_67 = arith.constant 0 : index
    %123 = vector.load %arg16[%c1_65, %c0_66, %c0_67] : memref<8x8x32xf32, #tpu.memory_space<vmem>>, vector<1x8x32xf32>
    %124 = vector.shape_cast %123 : vector<1x8x32xf32> to vector<8x32xf32>
    %125 = vector.shape_cast %115 : vector<8x32xf32> to vector<1x8x32xf32>
    tpu.vector_store %arg16[%c1_65, %c0_66, %c0_67], %125 {strides = array<i32>} : memref<8x8x32xf32, #tpu.memory_space<vmem>>, vector<1x8x32xf32>,
    %c6_68 = arith.constant 6 : index
    %c0_69 = arith.constant 0 : index
    %c0_70 = arith.constant 0 : index
    %126 = vector.load %arg17[%c6_68, %c0_69, %c0_70] : memref<8x8x32xf32, #tpu.memory_space<vmem>>, vector<1x8x32xf32>
    %127 = vector.shape_cast %126 : vector<1x8x32xf32> to vector<8x32xf32>
    %128 = vector.shape_cast %118 : vector<8x32xf32> to vector<1x8x32xf32>
    tpu.vector_store %arg17[%c6_68, %c0_69, %c0_70], %128 {strides = array<i32>} : memref<8x8x32xf32, #tpu.memory_space<vmem>>, vector<1x8x32xf32>,
    %c0_71 = arith.constant 0 : index
    %c0_72 = arith.constant 0 : index
    %129 = vector.load %arg18[%c0_71, %c0_72] : memref<8x64xf32, #tpu.memory_space<vmem>>, vector<8x64xf32>
    %130 = arith.truncf %129 : vector<8x64xf32> to vector<8x64xbf16>
    %cst_73 = arith.constant dense<0.000000e+00> : vector<8x256xf32>
    %131 = tpu.matmul %130, %10, %cst_73 {dimension_numbers = #tpu.dot_dimension_numbers<[1], [0], [0], [1], [0, 0, 1, 1], [], []>} : vector<8x64xbf16>, vector<64x256xbf16>, vector<8x256xf32> -> vector<8x256xf32>
    %c2 = arith.constant 2 : index
    %c0_74 = arith.constant 0 : index
    %c0_75 = arith.constant 0 : index
    %132 = vector.load %arg15[%c2, %c0_74, %c0_75] : memref<8x8x256xf32, #tpu.memory_space<vmem>>, vector<1x8x256xf32>
    %133 = vector.shape_cast %132 : vector<1x8x256xf32> to vector<8x256xf32>
    %c5 = arith.constant 5 : index
    %c0_76 = arith.constant 0 : index
    %c0_77 = arith.constant 0 : index
    %134 = vector.load %arg15[%c5, %c0_76, %c0_77] : memref<8x8x256xf32, #tpu.memory_space<vmem>>, vector<1x8x256xf32>
    %135 = vector.shape_cast %134 : vector<1x8x256xf32> to vector<8x256xf32>
    %136 = vector.extract_strided_slice %131 {offsets = [0, 0], sizes = [8, 128], strides = [1, 1]} : vector<8x256xf32> to vector<8x128xf32>
    %137 = vector.extract_strided_slice %133 {offsets = [0, 0], sizes = [8, 128], strides = [1, 1]} : vector<8x256xf32> to vector<8x128xf32>
    %138 = arith.addf %136, %137 : vector<8x128xf32>
    %139 = vector.extract_strided_slice %131 {offsets = [0, 128], sizes = [8, 128], strides = [1, 1]} : vector<8x256xf32> to vector<8x128xf32>
    %140 = vector.extract_strided_slice %135 {offsets = [0, 128], sizes = [8, 128], strides = [1, 1]} : vector<8x256xf32> to vector<8x128xf32>
    %141 = arith.addf %139, %140 : vector<8x128xf32>
    %142 = vector.extract_strided_slice %138 {offsets = [0, 0], sizes = [8, 96], strides = [1, 1]} : vector<8x128xf32> to vector<8x96xf32>
    %143 = arith.negf %142 : vector<8x96xf32>
    %144 = math.exp %143 : vector<8x96xf32>
    %cst_78 = arith.constant 1.000000e+00 : f32
    %145 = vector.broadcast %cst_78 : f32 to vector<8x96xf32>
    %146 = arith.addf %145, %144 : vector<8x96xf32>
    %147 = arith.divf %145, %146 : vector<8x96xf32>
    %148 = vector.extract_strided_slice %141 {offsets = [0, 0], sizes = [8, 96], strides = [1, 1]} : vector<8x128xf32> to vector<8x96xf32>
    %149 = arith.negf %148 : vector<8x96xf32>
    %150 = math.exp %149 : vector<8x96xf32>
    %cst_79 = arith.constant 1.000000e+00 : f32
    %151 = vector.broadcast %cst_79 : f32 to vector<8x96xf32>
    %152 = arith.addf %151, %150 : vector<8x96xf32>
    %153 = arith.divf %151, %152 : vector<8x96xf32>
    %154 = vector.extract_strided_slice %138 {offsets = [0, 96], sizes = [8, 32], strides = [1, 1]} : vector<8x128xf32> to vector<8x32xf32>
    %155 = math.tanh %154 : vector<8x32xf32>
    %156 = vector.extract_strided_slice %141 {offsets = [0, 96], sizes = [8, 32], strides = [1, 1]} : vector<8x128xf32> to vector<8x32xf32>
    %157 = math.tanh %156 : vector<8x32xf32>
    %158 = vector.extract_strided_slice %147 {offsets = [0, 32], sizes = [8, 32], strides = [1, 1]} : vector<8x96xf32> to vector<8x32xf32>
    %c0_80 = arith.constant 0 : index
    %c0_81 = arith.constant 0 : index
    %159 = vector.load %arg19[%c0_80, %c0_81] : memref<8x64xf32, #tpu.memory_space<vmem>>, vector<8x32xf32>
    %160 = arith.mulf %158, %159 : vector<8x32xf32>
    %161 = vector.extract_strided_slice %147 {offsets = [0, 0], sizes = [8, 32], strides = [1, 1]} : vector<8x96xf32> to vector<8x32xf32>
    %162 = arith.mulf %161, %155 : vector<8x32xf32>
    %163 = arith.addf %160, %162 : vector<8x32xf32>
    %164 = vector.extract_strided_slice %153 {offsets = [0, 32], sizes = [8, 32], strides = [1, 1]} : vector<8x96xf32> to vector<8x32xf32>
    %c0_82 = arith.constant 0 : index
    %c32_83 = arith.constant 32 : index
    %165 = vector.load %arg19[%c0_82, %c32_83] : memref<8x64xf32, #tpu.memory_space<vmem>>, vector<8x32xf32>
    %166 = arith.mulf %164, %165 : vector<8x32xf32>
    %167 = vector.extract_strided_slice %153 {offsets = [0, 0], sizes = [8, 32], strides = [1, 1]} : vector<8x96xf32> to vector<8x32xf32>
    %168 = arith.mulf %167, %157 : vector<8x32xf32>
    %169 = arith.addf %166, %168 : vector<8x32xf32>
    %170 = vector.extract_strided_slice %147 {offsets = [0, 64], sizes = [8, 32], strides = [1, 1]} : vector<8x96xf32> to vector<8x32xf32>
    %171 = math.tanh %163 : vector<8x32xf32>
    %172 = arith.mulf %170, %171 : vector<8x32xf32>
    %173 = vector.extract_strided_slice %153 {offsets = [0, 64], sizes = [8, 32], strides = [1, 1]} : vector<8x96xf32> to vector<8x32xf32>
    %174 = math.tanh %169 : vector<8x32xf32>
    %175 = arith.mulf %173, %174 : vector<8x32xf32>
    %c0_84 = arith.constant 0 : index
    %c0_85 = arith.constant 0 : index
    %176 = vector.load %arg19[%c0_84, %c0_85] : memref<8x64xf32, #tpu.memory_space<vmem>>, vector<8x32xf32>
    tpu.vector_store %arg19[%c0_84, %c0_85], %163 {strides = array<i32>} : memref<8x64xf32, #tpu.memory_space<vmem>>, vector<8x32xf32>,
    %c0_86 = arith.constant 0 : index
    %c32_87 = arith.constant 32 : index
    %177 = vector.load %arg19[%c0_86, %c32_87] : memref<8x64xf32, #tpu.memory_space<vmem>>, vector<8x32xf32>
    tpu.vector_store %arg19[%c0_86, %c32_87], %169 {strides = array<i32>} : memref<8x64xf32, #tpu.memory_space<vmem>>, vector<8x32xf32>,
    %c0_88 = arith.constant 0 : index
    %c0_89 = arith.constant 0 : index
    %178 = vector.load %arg18[%c0_88, %c0_89] : memref<8x64xf32, #tpu.memory_space<vmem>>, vector<8x32xf32>
    tpu.vector_store %arg18[%c0_88, %c0_89], %172 {strides = array<i32>} : memref<8x64xf32, #tpu.memory_space<vmem>>, vector<8x32xf32>,
    %c0_90 = arith.constant 0 : index
    %c32_91 = arith.constant 32 : index
    %179 = vector.load %arg18[%c0_90, %c32_91] : memref<8x64xf32, #tpu.memory_space<vmem>>, vector<8x32xf32>
    tpu.vector_store %arg18[%c0_90, %c32_91], %175 {strides = array<i32>} : memref<8x64xf32, #tpu.memory_space<vmem>>, vector<8x32xf32>,
    %c2_92 = arith.constant 2 : index
    %c0_93 = arith.constant 0 : index
    %c0_94 = arith.constant 0 : index
    %180 = vector.load %arg16[%c2_92, %c0_93, %c0_94] : memref<8x8x32xf32, #tpu.memory_space<vmem>>, vector<1x8x32xf32>
    %181 = vector.shape_cast %180 : vector<1x8x32xf32> to vector<8x32xf32>
    %182 = vector.shape_cast %172 : vector<8x32xf32> to vector<1x8x32xf32>
    tpu.vector_store %arg16[%c2_92, %c0_93, %c0_94], %182 {strides = array<i32>} : memref<8x8x32xf32, #tpu.memory_space<vmem>>, vector<1x8x32xf32>,
    %c5_95 = arith.constant 5 : index
    %c0_96 = arith.constant 0 : index
    %c0_97 = arith.constant 0 : index
    %183 = vector.load %arg17[%c5_95, %c0_96, %c0_97] : memref<8x8x32xf32, #tpu.memory_space<vmem>>, vector<1x8x32xf32>
    %184 = vector.shape_cast %183 : vector<1x8x32xf32> to vector<8x32xf32>
    %185 = vector.shape_cast %175 : vector<8x32xf32> to vector<1x8x32xf32>
    tpu.vector_store %arg17[%c5_95, %c0_96, %c0_97], %185 {strides = array<i32>} : memref<8x8x32xf32, #tpu.memory_space<vmem>>, vector<1x8x32xf32>,
    %c0_98 = arith.constant 0 : index
    %c0_99 = arith.constant 0 : index
    %186 = vector.load %arg18[%c0_98, %c0_99] : memref<8x64xf32, #tpu.memory_space<vmem>>, vector<8x64xf32>
    %187 = arith.truncf %186 : vector<8x64xf32> to vector<8x64xbf16>
    %cst_100 = arith.constant dense<0.000000e+00> : vector<8x256xf32>
    %188 = tpu.matmul %187, %10, %cst_100 {dimension_numbers = #tpu.dot_dimension_numbers<[1], [0], [0], [1], [0, 0, 1, 1], [], []>} : vector<8x64xbf16>, vector<64x256xbf16>, vector<8x256xf32> -> vector<8x256xf32>
    %c3 = arith.constant 3 : index
    %c0_101 = arith.constant 0 : index
    %c0_102 = arith.constant 0 : index
    %189 = vector.load %arg15[%c3, %c0_101, %c0_102] : memref<8x8x256xf32, #tpu.memory_space<vmem>>, vector<1x8x256xf32>
    %190 = vector.shape_cast %189 : vector<1x8x256xf32> to vector<8x256xf32>
    %c4 = arith.constant 4 : index
    %c0_103 = arith.constant 0 : index
    %c0_104 = arith.constant 0 : index
    %191 = vector.load %arg15[%c4, %c0_103, %c0_104] : memref<8x8x256xf32, #tpu.memory_space<vmem>>, vector<1x8x256xf32>
    %192 = vector.shape_cast %191 : vector<1x8x256xf32> to vector<8x256xf32>
    %193 = vector.extract_strided_slice %188 {offsets = [0, 0], sizes = [8, 128], strides = [1, 1]} : vector<8x256xf32> to vector<8x128xf32>
    %194 = vector.extract_strided_slice %190 {offsets = [0, 0], sizes = [8, 128], strides = [1, 1]} : vector<8x256xf32> to vector<8x128xf32>
    %195 = arith.addf %193, %194 : vector<8x128xf32>
    %196 = vector.extract_strided_slice %188 {offsets = [0, 128], sizes = [8, 128], strides = [1, 1]} : vector<8x256xf32> to vector<8x128xf32>
    %197 = vector.extract_strided_slice %192 {offsets = [0, 128], sizes = [8, 128], strides = [1, 1]} : vector<8x256xf32> to vector<8x128xf32>
    %198 = arith.addf %196, %197 : vector<8x128xf32>
    %199 = vector.extract_strided_slice %195 {offsets = [0, 0], sizes = [8, 96], strides = [1, 1]} : vector<8x128xf32> to vector<8x96xf32>
    %200 = arith.negf %199 : vector<8x96xf32>
    %201 = math.exp %200 : vector<8x96xf32>
    %cst_105 = arith.constant 1.000000e+00 : f32
    %202 = vector.broadcast %cst_105 : f32 to vector<8x96xf32>
    %203 = arith.addf %202, %201 : vector<8x96xf32>
    %204 = arith.divf %202, %203 : vector<8x96xf32>
    %205 = vector.extract_strided_slice %198 {offsets = [0, 0], sizes = [8, 96], strides = [1, 1]} : vector<8x128xf32> to vector<8x96xf32>
    %206 = arith.negf %205 : vector<8x96xf32>
    %207 = math.exp %206 : vector<8x96xf32>
    %cst_106 = arith.constant 1.000000e+00 : f32
    %208 = vector.broadcast %cst_106 : f32 to vector<8x96xf32>
    %209 = arith.addf %208, %207 : vector<8x96xf32>
    %210 = arith.divf %208, %209 : vector<8x96xf32>
    %211 = vector.extract_strided_slice %195 {offsets = [0, 96], sizes = [8, 32], strides = [1, 1]} : vector<8x128xf32> to vector<8x32xf32>
    %212 = math.tanh %211 : vector<8x32xf32>
    %213 = vector.extract_strided_slice %198 {offsets = [0, 96], sizes = [8, 32], strides = [1, 1]} : vector<8x128xf32> to vector<8x32xf32>
    %214 = math.tanh %213 : vector<8x32xf32>
    %215 = vector.extract_strided_slice %204 {offsets = [0, 32], sizes = [8, 32], strides = [1, 1]} : vector<8x96xf32> to vector<8x32xf32>
    %c0_107 = arith.constant 0 : index
    %c0_108 = arith.constant 0 : index
    %216 = vector.load %arg19[%c0_107, %c0_108] : memref<8x64xf32, #tpu.memory_space<vmem>>, vector<8x32xf32>
    %217 = arith.mulf %215, %216 : vector<8x32xf32>
    %218 = vector.extract_strided_slice %204 {offsets = [0, 0], sizes = [8, 32], strides = [1, 1]} : vector<8x96xf32> to vector<8x32xf32>
    %219 = arith.mulf %218, %212 : vector<8x32xf32>
    %220 = arith.addf %217, %219 : vector<8x32xf32>
    %221 = vector.extract_strided_slice %210 {offsets = [0, 32], sizes = [8, 32], strides = [1, 1]} : vector<8x96xf32> to vector<8x32xf32>
    %c0_109 = arith.constant 0 : index
    %c32_110 = arith.constant 32 : index
    %222 = vector.load %arg19[%c0_109, %c32_110] : memref<8x64xf32, #tpu.memory_space<vmem>>, vector<8x32xf32>
    %223 = arith.mulf %221, %222 : vector<8x32xf32>
    %224 = vector.extract_strided_slice %210 {offsets = [0, 0], sizes = [8, 32], strides = [1, 1]} : vector<8x96xf32> to vector<8x32xf32>
    %225 = arith.mulf %224, %214 : vector<8x32xf32>
    %226 = arith.addf %223, %225 : vector<8x32xf32>
    %227 = vector.extract_strided_slice %204 {offsets = [0, 64], sizes = [8, 32], strides = [1, 1]} : vector<8x96xf32> to vector<8x32xf32>
    %228 = math.tanh %220 : vector<8x32xf32>
    %229 = arith.mulf %227, %228 : vector<8x32xf32>
    %230 = vector.extract_strided_slice %210 {offsets = [0, 64], sizes = [8, 32], strides = [1, 1]} : vector<8x96xf32> to vector<8x32xf32>
    %231 = math.tanh %226 : vector<8x32xf32>
    %232 = arith.mulf %230, %231 : vector<8x32xf32>
    %c0_111 = arith.constant 0 : index
    %c0_112 = arith.constant 0 : index
    %233 = vector.load %arg19[%c0_111, %c0_112] : memref<8x64xf32, #tpu.memory_space<vmem>>, vector<8x32xf32>
    tpu.vector_store %arg19[%c0_111, %c0_112], %220 {strides = array<i32>} : memref<8x64xf32, #tpu.memory_space<vmem>>, vector<8x32xf32>,
    %c0_113 = arith.constant 0 : index
    %c32_114 = arith.constant 32 : index
    %234 = vector.load %arg19[%c0_113, %c32_114] : memref<8x64xf32, #tpu.memory_space<vmem>>, vector<8x32xf32>
    tpu.vector_store %arg19[%c0_113, %c32_114], %226 {strides = array<i32>} : memref<8x64xf32, #tpu.memory_space<vmem>>, vector<8x32xf32>,
    %c0_115 = arith.constant 0 : index
    %c0_116 = arith.constant 0 : index
    %235 = vector.load %arg18[%c0_115, %c0_116] : memref<8x64xf32, #tpu.memory_space<vmem>>, vector<8x32xf32>
    tpu.vector_store %arg18[%c0_115, %c0_116], %229 {strides = array<i32>} : memref<8x64xf32, #tpu.memory_space<vmem>>, vector<8x32xf32>,
    %c0_117 = arith.constant 0 : index
    %c32_118 = arith.constant 32 : index
    %236 = vector.load %arg18[%c0_117, %c32_118] : memref<8x64xf32, #tpu.memory_space<vmem>>, vector<8x32xf32>
    tpu.vector_store %arg18[%c0_117, %c32_118], %232 {strides = array<i32>} : memref<8x64xf32, #tpu.memory_space<vmem>>, vector<8x32xf32>,
    %c3_119 = arith.constant 3 : index
    %c0_120 = arith.constant 0 : index
    %c0_121 = arith.constant 0 : index
    %237 = vector.load %arg16[%c3_119, %c0_120, %c0_121] : memref<8x8x32xf32, #tpu.memory_space<vmem>>, vector<1x8x32xf32>
    %238 = vector.shape_cast %237 : vector<1x8x32xf32> to vector<8x32xf32>
    %239 = vector.shape_cast %229 : vector<8x32xf32> to vector<1x8x32xf32>
    tpu.vector_store %arg16[%c3_119, %c0_120, %c0_121], %239 {strides = array<i32>} : memref<8x8x32xf32, #tpu.memory_space<vmem>>, vector<1x8x32xf32>,
    %c4_122 = arith.constant 4 : index
    %c0_123 = arith.constant 0 : index
    %c0_124 = arith.constant 0 : index
    %240 = vector.load %arg17[%c4_122, %c0_123, %c0_124] : memref<8x8x32xf32, #tpu.memory_space<vmem>>, vector<1x8x32xf32>
    %241 = vector.shape_cast %240 : vector<1x8x32xf32> to vector<8x32xf32>
    %242 = vector.shape_cast %232 : vector<8x32xf32> to vector<1x8x32xf32>
    tpu.vector_store %arg17[%c4_122, %c0_123, %c0_124], %242 {strides = array<i32>} : memref<8x8x32xf32, #tpu.memory_space<vmem>>, vector<1x8x32xf32>,
    %c0_125 = arith.constant 0 : index
    %c0_126 = arith.constant 0 : index
    %243 = vector.load %arg18[%c0_125, %c0_126] : memref<8x64xf32, #tpu.memory_space<vmem>>, vector<8x64xf32>
    %244 = arith.truncf %243 : vector<8x64xf32> to vector<8x64xbf16>
    %cst_127 = arith.constant dense<0.000000e+00> : vector<8x256xf32>
    %245 = tpu.matmul %244, %10, %cst_127 {dimension_numbers = #tpu.dot_dimension_numbers<[1], [0], [0], [1], [0, 0, 1, 1], [], []>} : vector<8x64xbf16>, vector<64x256xbf16>, vector<8x256xf32> -> vector<8x256xf32>
    %c4_128 = arith.constant 4 : index
    %c0_129 = arith.constant 0 : index
    %c0_130 = arith.constant 0 : index
    %246 = vector.load %arg15[%c4_128, %c0_129, %c0_130] : memref<8x8x256xf32, #tpu.memory_space<vmem>>, vector<1x8x256xf32>
    %247 = vector.shape_cast %246 : vector<1x8x256xf32> to vector<8x256xf32>
    %c3_131 = arith.constant 3 : index
    %c0_132 = arith.constant 0 : index
    %c0_133 = arith.constant 0 : index
    %248 = vector.load %arg15[%c3_131, %c0_132, %c0_133] : memref<8x8x256xf32, #tpu.memory_space<vmem>>, vector<1x8x256xf32>
    %249 = vector.shape_cast %248 : vector<1x8x256xf32> to vector<8x256xf32>
    %250 = vector.extract_strided_slice %245 {offsets = [0, 0], sizes = [8, 128], strides = [1, 1]} : vector<8x256xf32> to vector<8x128xf32>
    %251 = vector.extract_strided_slice %247 {offsets = [0, 0], sizes = [8, 128], strides = [1, 1]} : vector<8x256xf32> to vector<8x128xf32>
    %252 = arith.addf %250, %251 : vector<8x128xf32>
    %253 = vector.extract_strided_slice %245 {offsets = [0, 128], sizes = [8, 128], strides = [1, 1]} : vector<8x256xf32> to vector<8x128xf32>
    %254 = vector.extract_strided_slice %249 {offsets = [0, 128], sizes = [8, 128], strides = [1, 1]} : vector<8x256xf32> to vector<8x128xf32>
    %255 = arith.addf %253, %254 : vector<8x128xf32>
    %256 = vector.extract_strided_slice %252 {offsets = [0, 0], sizes = [8, 96], strides = [1, 1]} : vector<8x128xf32> to vector<8x96xf32>
    %257 = arith.negf %256 : vector<8x96xf32>
    %258 = math.exp %257 : vector<8x96xf32>
    %cst_134 = arith.constant 1.000000e+00 : f32
    %259 = vector.broadcast %cst_134 : f32 to vector<8x96xf32>
    %260 = arith.addf %259, %258 : vector<8x96xf32>
    %261 = arith.divf %259, %260 : vector<8x96xf32>
    %262 = vector.extract_strided_slice %255 {offsets = [0, 0], sizes = [8, 96], strides = [1, 1]} : vector<8x128xf32> to vector<8x96xf32>
    %263 = arith.negf %262 : vector<8x96xf32>
    %264 = math.exp %263 : vector<8x96xf32>
    %cst_135 = arith.constant 1.000000e+00 : f32
    %265 = vector.broadcast %cst_135 : f32 to vector<8x96xf32>
    %266 = arith.addf %265, %264 : vector<8x96xf32>
    %267 = arith.divf %265, %266 : vector<8x96xf32>
    %268 = vector.extract_strided_slice %252 {offsets = [0, 96], sizes = [8, 32], strides = [1, 1]} : vector<8x128xf32> to vector<8x32xf32>
    %269 = math.tanh %268 : vector<8x32xf32>
    %270 = vector.extract_strided_slice %255 {offsets = [0, 96], sizes = [8, 32], strides = [1, 1]} : vector<8x128xf32> to vector<8x32xf32>
    %271 = math.tanh %270 : vector<8x32xf32>
    %272 = vector.extract_strided_slice %261 {offsets = [0, 32], sizes = [8, 32], strides = [1, 1]} : vector<8x96xf32> to vector<8x32xf32>
    %c0_136 = arith.constant 0 : index
    %c0_137 = arith.constant 0 : index
    %273 = vector.load %arg19[%c0_136, %c0_137] : memref<8x64xf32, #tpu.memory_space<vmem>>, vector<8x32xf32>
    %274 = arith.mulf %272, %273 : vector<8x32xf32>
    %275 = vector.extract_strided_slice %261 {offsets = [0, 0], sizes = [8, 32], strides = [1, 1]} : vector<8x96xf32> to vector<8x32xf32>
    %276 = arith.mulf %275, %269 : vector<8x32xf32>
    %277 = arith.addf %274, %276 : vector<8x32xf32>
    %278 = vector.extract_strided_slice %267 {offsets = [0, 32], sizes = [8, 32], strides = [1, 1]} : vector<8x96xf32> to vector<8x32xf32>
    %c0_138 = arith.constant 0 : index
    %c32_139 = arith.constant 32 : index
    %279 = vector.load %arg19[%c0_138, %c32_139] : memref<8x64xf32, #tpu.memory_space<vmem>>, vector<8x32xf32>
    %280 = arith.mulf %278, %279 : vector<8x32xf32>
    %281 = vector.extract_strided_slice %267 {offsets = [0, 0], sizes = [8, 32], strides = [1, 1]} : vector<8x96xf32> to vector<8x32xf32>
    %282 = arith.mulf %281, %271 : vector<8x32xf32>
    %283 = arith.addf %280, %282 : vector<8x32xf32>
    %284 = vector.extract_strided_slice %261 {offsets = [0, 64], sizes = [8, 32], strides = [1, 1]} : vector<8x96xf32> to vector<8x32xf32>
    %285 = math.tanh %277 : vector<8x32xf32>
    %286 = arith.mulf %284, %285 : vector<8x32xf32>
    %287 = vector.extract_strided_slice %267 {offsets = [0, 64], sizes = [8, 32], strides = [1, 1]} : vector<8x96xf32> to vector<8x32xf32>
    %288 = math.tanh %283 : vector<8x32xf32>
    %289 = arith.mulf %287, %288 : vector<8x32xf32>
    %c0_140 = arith.constant 0 : index
    %c0_141 = arith.constant 0 : index
    %290 = vector.load %arg19[%c0_140, %c0_141] : memref<8x64xf32, #tpu.memory_space<vmem>>, vector<8x32xf32>
    tpu.vector_store %arg19[%c0_140, %c0_141], %277 {strides = array<i32>} : memref<8x64xf32, #tpu.memory_space<vmem>>, vector<8x32xf32>,
    %c0_142 = arith.constant 0 : index
    %c32_143 = arith.constant 32 : index
    %291 = vector.load %arg19[%c0_142, %c32_143] : memref<8x64xf32, #tpu.memory_space<vmem>>, vector<8x32xf32>
    tpu.vector_store %arg19[%c0_142, %c32_143], %283 {strides = array<i32>} : memref<8x64xf32, #tpu.memory_space<vmem>>, vector<8x32xf32>,
    %c0_144 = arith.constant 0 : index
    %c0_145 = arith.constant 0 : index
    %292 = vector.load %arg18[%c0_144, %c0_145] : memref<8x64xf32, #tpu.memory_space<vmem>>, vector<8x32xf32>
    tpu.vector_store %arg18[%c0_144, %c0_145], %286 {strides = array<i32>} : memref<8x64xf32, #tpu.memory_space<vmem>>, vector<8x32xf32>,
    %c0_146 = arith.constant 0 : index
    %c32_147 = arith.constant 32 : index
    %293 = vector.load %arg18[%c0_146, %c32_147] : memref<8x64xf32, #tpu.memory_space<vmem>>, vector<8x32xf32>
    tpu.vector_store %arg18[%c0_146, %c32_147], %289 {strides = array<i32>} : memref<8x64xf32, #tpu.memory_space<vmem>>, vector<8x32xf32>,
    %c4_148 = arith.constant 4 : index
    %c0_149 = arith.constant 0 : index
    %c0_150 = arith.constant 0 : index
    %294 = vector.load %arg16[%c4_148, %c0_149, %c0_150] : memref<8x8x32xf32, #tpu.memory_space<vmem>>, vector<1x8x32xf32>
    %295 = vector.shape_cast %294 : vector<1x8x32xf32> to vector<8x32xf32>
    %296 = vector.shape_cast %286 : vector<8x32xf32> to vector<1x8x32xf32>
    tpu.vector_store %arg16[%c4_148, %c0_149, %c0_150], %296 {strides = array<i32>} : memref<8x8x32xf32, #tpu.memory_space<vmem>>, vector<1x8x32xf32>,
    %c3_151 = arith.constant 3 : index
    %c0_152 = arith.constant 0 : index
    %c0_153 = arith.constant 0 : index
    %297 = vector.load %arg17[%c3_151, %c0_152, %c0_153] : memref<8x8x32xf32, #tpu.memory_space<vmem>>, vector<1x8x32xf32>
    %298 = vector.shape_cast %297 : vector<1x8x32xf32> to vector<8x32xf32>
    %299 = vector.shape_cast %289 : vector<8x32xf32> to vector<1x8x32xf32>
    tpu.vector_store %arg17[%c3_151, %c0_152, %c0_153], %299 {strides = array<i32>} : memref<8x8x32xf32, #tpu.memory_space<vmem>>, vector<1x8x32xf32>,
    %c0_154 = arith.constant 0 : index
    %c0_155 = arith.constant 0 : index
    %300 = vector.load %arg18[%c0_154, %c0_155] : memref<8x64xf32, #tpu.memory_space<vmem>>, vector<8x64xf32>
    %301 = arith.truncf %300 : vector<8x64xf32> to vector<8x64xbf16>
    %cst_156 = arith.constant dense<0.000000e+00> : vector<8x256xf32>
    %302 = tpu.matmul %301, %10, %cst_156 {dimension_numbers = #tpu.dot_dimension_numbers<[1], [0], [0], [1], [0, 0, 1, 1], [], []>} : vector<8x64xbf16>, vector<64x256xbf16>, vector<8x256xf32> -> vector<8x256xf32>
    %c5_157 = arith.constant 5 : index
    %c0_158 = arith.constant 0 : index
    %c0_159 = arith.constant 0 : index
    %303 = vector.load %arg15[%c5_157, %c0_158, %c0_159] : memref<8x8x256xf32, #tpu.memory_space<vmem>>, vector<1x8x256xf32>
    %304 = vector.shape_cast %303 : vector<1x8x256xf32> to vector<8x256xf32>
    %c2_160 = arith.constant 2 : index
    %c0_161 = arith.constant 0 : index
    %c0_162 = arith.constant 0 : index
    %305 = vector.load %arg15[%c2_160, %c0_161, %c0_162] : memref<8x8x256xf32, #tpu.memory_space<vmem>>, vector<1x8x256xf32>
    %306 = vector.shape_cast %305 : vector<1x8x256xf32> to vector<8x256xf32>
    %307 = vector.extract_strided_slice %302 {offsets = [0, 0], sizes = [8, 128], strides = [1, 1]} : vector<8x256xf32> to vector<8x128xf32>
    %308 = vector.extract_strided_slice %304 {offsets = [0, 0], sizes = [8, 128], strides = [1, 1]} : vector<8x256xf32> to vector<8x128xf32>
    %309 = arith.addf %307, %308 : vector<8x128xf32>
    %310 = vector.extract_strided_slice %302 {offsets = [0, 128], sizes = [8, 128], strides = [1, 1]} : vector<8x256xf32> to vector<8x128xf32>
    %311 = vector.extract_strided_slice %306 {offsets = [0, 128], sizes = [8, 128], strides = [1, 1]} : vector<8x256xf32> to vector<8x128xf32>
    %312 = arith.addf %310, %311 : vector<8x128xf32>
    %313 = vector.extract_strided_slice %309 {offsets = [0, 0], sizes = [8, 96], strides = [1, 1]} : vector<8x128xf32> to vector<8x96xf32>
    %314 = arith.negf %313 : vector<8x96xf32>
    %315 = math.exp %314 : vector<8x96xf32>
    %cst_163 = arith.constant 1.000000e+00 : f32
    %316 = vector.broadcast %cst_163 : f32 to vector<8x96xf32>
    %317 = arith.addf %316, %315 : vector<8x96xf32>
    %318 = arith.divf %316, %317 : vector<8x96xf32>
    %319 = vector.extract_strided_slice %312 {offsets = [0, 0], sizes = [8, 96], strides = [1, 1]} : vector<8x128xf32> to vector<8x96xf32>
    %320 = arith.negf %319 : vector<8x96xf32>
    %321 = math.exp %320 : vector<8x96xf32>
    %cst_164 = arith.constant 1.000000e+00 : f32
    %322 = vector.broadcast %cst_164 : f32 to vector<8x96xf32>
    %323 = arith.addf %322, %321 : vector<8x96xf32>
    %324 = arith.divf %322, %323 : vector<8x96xf32>
    %325 = vector.extract_strided_slice %309 {offsets = [0, 96], sizes = [8, 32], strides = [1, 1]} : vector<8x128xf32> to vector<8x32xf32>
    %326 = math.tanh %325 : vector<8x32xf32>
    %327 = vector.extract_strided_slice %312 {offsets = [0, 96], sizes = [8, 32], strides = [1, 1]} : vector<8x128xf32> to vector<8x32xf32>
    %328 = math.tanh %327 : vector<8x32xf32>
    %329 = vector.extract_strided_slice %318 {offsets = [0, 32], sizes = [8, 32], strides = [1, 1]} : vector<8x96xf32> to vector<8x32xf32>
    %c0_165 = arith.constant 0 : index
    %c0_166 = arith.constant 0 : index
    %330 = vector.load %arg19[%c0_165, %c0_166] : memref<8x64xf32, #tpu.memory_space<vmem>>, vector<8x32xf32>
    %331 = arith.mulf %329, %330 : vector<8x32xf32>
    %332 = vector.extract_strided_slice %318 {offsets = [0, 0], sizes = [8, 32], strides = [1, 1]} : vector<8x96xf32> to vector<8x32xf32>
    %333 = arith.mulf %332, %326 : vector<8x32xf32>
    %334 = arith.addf %331, %333 : vector<8x32xf32>
    %335 = vector.extract_strided_slice %324 {offsets = [0, 32], sizes = [8, 32], strides = [1, 1]} : vector<8x96xf32> to vector<8x32xf32>
    %c0_167 = arith.constant 0 : index
    %c32_168 = arith.constant 32 : index
    %336 = vector.load %arg19[%c0_167, %c32_168] : memref<8x64xf32, #tpu.memory_space<vmem>>, vector<8x32xf32>
    %337 = arith.mulf %335, %336 : vector<8x32xf32>
    %338 = vector.extract_strided_slice %324 {offsets = [0, 0], sizes = [8, 32], strides = [1, 1]} : vector<8x96xf32> to vector<8x32xf32>
    %339 = arith.mulf %338, %328 : vector<8x32xf32>
    %340 = arith.addf %337, %339 : vector<8x32xf32>
    %341 = vector.extract_strided_slice %318 {offsets = [0, 64], sizes = [8, 32], strides = [1, 1]} : vector<8x96xf32> to vector<8x32xf32>
    %342 = math.tanh %334 : vector<8x32xf32>
    %343 = arith.mulf %341, %342 : vector<8x32xf32>
    %344 = vector.extract_strided_slice %324 {offsets = [0, 64], sizes = [8, 32], strides = [1, 1]} : vector<8x96xf32> to vector<8x32xf32>
    %345 = math.tanh %340 : vector<8x32xf32>
    %346 = arith.mulf %344, %345 : vector<8x32xf32>
    %c0_169 = arith.constant 0 : index
    %c0_170 = arith.constant 0 : index
    %347 = vector.load %arg19[%c0_169, %c0_170] : memref<8x64xf32, #tpu.memory_space<vmem>>, vector<8x32xf32>
    tpu.vector_store %arg19[%c0_169, %c0_170], %334 {strides = array<i32>} : memref<8x64xf32, #tpu.memory_space<vmem>>, vector<8x32xf32>,
    %c0_171 = arith.constant 0 : index
    %c32_172 = arith.constant 32 : index
    %348 = vector.load %arg19[%c0_171, %c32_172] : memref<8x64xf32, #tpu.memory_space<vmem>>, vector<8x32xf32>
    tpu.vector_store %arg19[%c0_171, %c32_172], %340 {strides = array<i32>} : memref<8x64xf32, #tpu.memory_space<vmem>>, vector<8x32xf32>,
    %c0_173 = arith.constant 0 : index
    %c0_174 = arith.constant 0 : index
    %349 = vector.load %arg18[%c0_173, %c0_174] : memref<8x64xf32, #tpu.memory_space<vmem>>, vector<8x32xf32>
    tpu.vector_store %arg18[%c0_173, %c0_174], %343 {strides = array<i32>} : memref<8x64xf32, #tpu.memory_space<vmem>>, vector<8x32xf32>,
    %c0_175 = arith.constant 0 : index
    %c32_176 = arith.constant 32 : index
    %350 = vector.load %arg18[%c0_175, %c32_176] : memref<8x64xf32, #tpu.memory_space<vmem>>, vector<8x32xf32>
    tpu.vector_store %arg18[%c0_175, %c32_176], %346 {strides = array<i32>} : memref<8x64xf32, #tpu.memory_space<vmem>>, vector<8x32xf32>,
    %c5_177 = arith.constant 5 : index
    %c0_178 = arith.constant 0 : index
    %c0_179 = arith.constant 0 : index
    %351 = vector.load %arg16[%c5_177, %c0_178, %c0_179] : memref<8x8x32xf32, #tpu.memory_space<vmem>>, vector<1x8x32xf32>
    %352 = vector.shape_cast %351 : vector<1x8x32xf32> to vector<8x32xf32>
    %353 = vector.shape_cast %343 : vector<8x32xf32> to vector<1x8x32xf32>
    tpu.vector_store %arg16[%c5_177, %c0_178, %c0_179], %353 {strides = array<i32>} : memref<8x8x32xf32, #tpu.memory_space<vmem>>, vector<1x8x32xf32>,
    %c2_180 = arith.constant 2 : index
    %c0_181 = arith.constant 0 : index
    %c0_182 = arith.constant 0 : index
    %354 = vector.load %arg17[%c2_180, %c0_181, %c0_182] : memref<8x8x32xf32, #tpu.memory_space<vmem>>, vector<1x8x32xf32>
    %355 = vector.shape_cast %354 : vector<1x8x32xf32> to vector<8x32xf32>
    %356 = vector.shape_cast %346 : vector<8x32xf32> to vector<1x8x32xf32>
    tpu.vector_store %arg17[%c2_180, %c0_181, %c0_182], %356 {strides = array<i32>} : memref<8x8x32xf32, #tpu.memory_space<vmem>>, vector<1x8x32xf32>,
    %c0_183 = arith.constant 0 : index
    %c0_184 = arith.constant 0 : index
    %357 = vector.load %arg18[%c0_183, %c0_184] : memref<8x64xf32, #tpu.memory_space<vmem>>, vector<8x64xf32>
    %358 = arith.truncf %357 : vector<8x64xf32> to vector<8x64xbf16>
    %cst_185 = arith.constant dense<0.000000e+00> : vector<8x256xf32>
    %359 = tpu.matmul %358, %10, %cst_185 {dimension_numbers = #tpu.dot_dimension_numbers<[1], [0], [0], [1], [0, 0, 1, 1], [], []>} : vector<8x64xbf16>, vector<64x256xbf16>, vector<8x256xf32> -> vector<8x256xf32>
    %c6_186 = arith.constant 6 : index
    %c0_187 = arith.constant 0 : index
    %c0_188 = arith.constant 0 : index
    %360 = vector.load %arg15[%c6_186, %c0_187, %c0_188] : memref<8x8x256xf32, #tpu.memory_space<vmem>>, vector<1x8x256xf32>
    %361 = vector.shape_cast %360 : vector<1x8x256xf32> to vector<8x256xf32>
    %c1_189 = arith.constant 1 : index
    %c0_190 = arith.constant 0 : index
    %c0_191 = arith.constant 0 : index
    %362 = vector.load %arg15[%c1_189, %c0_190, %c0_191] : memref<8x8x256xf32, #tpu.memory_space<vmem>>, vector<1x8x256xf32>
    %363 = vector.shape_cast %362 : vector<1x8x256xf32> to vector<8x256xf32>
    %364 = vector.extract_strided_slice %359 {offsets = [0, 0], sizes = [8, 128], strides = [1, 1]} : vector<8x256xf32> to vector<8x128xf32>
    %365 = vector.extract_strided_slice %361 {offsets = [0, 0], sizes = [8, 128], strides = [1, 1]} : vector<8x256xf32> to vector<8x128xf32>
    %366 = arith.addf %364, %365 : vector<8x128xf32>
    %367 = vector.extract_strided_slice %359 {offsets = [0, 128], sizes = [8, 128], strides = [1, 1]} : vector<8x256xf32> to vector<8x128xf32>
    %368 = vector.extract_strided_slice %363 {offsets = [0, 128], sizes = [8, 128], strides = [1, 1]} : vector<8x256xf32> to vector<8x128xf32>
    %369 = arith.addf %367, %368 : vector<8x128xf32>
    %370 = vector.extract_strided_slice %366 {offsets = [0, 0], sizes = [8, 96], strides = [1, 1]} : vector<8x128xf32> to vector<8x96xf32>
    %371 = arith.negf %370 : vector<8x96xf32>
    %372 = math.exp %371 : vector<8x96xf32>
    %cst_192 = arith.constant 1.000000e+00 : f32
    %373 = vector.broadcast %cst_192 : f32 to vector<8x96xf32>
    %374 = arith.addf %373, %372 : vector<8x96xf32>
    %375 = arith.divf %373, %374 : vector<8x96xf32>
    %376 = vector.extract_strided_slice %369 {offsets = [0, 0], sizes = [8, 96], strides = [1, 1]} : vector<8x128xf32> to vector<8x96xf32>
    %377 = arith.negf %376 : vector<8x96xf32>
    %378 = math.exp %377 : vector<8x96xf32>
    %cst_193 = arith.constant 1.000000e+00 : f32
    %379 = vector.broadcast %cst_193 : f32 to vector<8x96xf32>
    %380 = arith.addf %379, %378 : vector<8x96xf32>
    %381 = arith.divf %379, %380 : vector<8x96xf32>
    %382 = vector.extract_strided_slice %366 {offsets = [0, 96], sizes = [8, 32], strides = [1, 1]} : vector<8x128xf32> to vector<8x32xf32>
    %383 = math.tanh %382 : vector<8x32xf32>
    %384 = vector.extract_strided_slice %369 {offsets = [0, 96], sizes = [8, 32], strides = [1, 1]} : vector<8x128xf32> to vector<8x32xf32>
    %385 = math.tanh %384 : vector<8x32xf32>
    %386 = vector.extract_strided_slice %375 {offsets = [0, 32], sizes = [8, 32], strides = [1, 1]} : vector<8x96xf32> to vector<8x32xf32>
    %c0_194 = arith.constant 0 : index
    %c0_195 = arith.constant 0 : index
    %387 = vector.load %arg19[%c0_194, %c0_195] : memref<8x64xf32, #tpu.memory_space<vmem>>, vector<8x32xf32>
    %388 = arith.mulf %386, %387 : vector<8x32xf32>
    %389 = vector.extract_strided_slice %375 {offsets = [0, 0], sizes = [8, 32], strides = [1, 1]} : vector<8x96xf32> to vector<8x32xf32>
    %390 = arith.mulf %389, %383 : vector<8x32xf32>
    %391 = arith.addf %388, %390 : vector<8x32xf32>
    %392 = vector.extract_strided_slice %381 {offsets = [0, 32], sizes = [8, 32], strides = [1, 1]} : vector<8x96xf32> to vector<8x32xf32>
    %c0_196 = arith.constant 0 : index
    %c32_197 = arith.constant 32 : index
    %393 = vector.load %arg19[%c0_196, %c32_197] : memref<8x64xf32, #tpu.memory_space<vmem>>, vector<8x32xf32>
    %394 = arith.mulf %392, %393 : vector<8x32xf32>
    %395 = vector.extract_strided_slice %381 {offsets = [0, 0], sizes = [8, 32], strides = [1, 1]} : vector<8x96xf32> to vector<8x32xf32>
    %396 = arith.mulf %395, %385 : vector<8x32xf32>
    %397 = arith.addf %394, %396 : vector<8x32xf32>
    %398 = vector.extract_strided_slice %375 {offsets = [0, 64], sizes = [8, 32], strides = [1, 1]} : vector<8x96xf32> to vector<8x32xf32>
    %399 = math.tanh %391 : vector<8x32xf32>
    %400 = arith.mulf %398, %399 : vector<8x32xf32>
    %401 = vector.extract_strided_slice %381 {offsets = [0, 64], sizes = [8, 32], strides = [1, 1]} : vector<8x96xf32> to vector<8x32xf32>
    %402 = math.tanh %397 : vector<8x32xf32>
    %403 = arith.mulf %401, %402 : vector<8x32xf32>
    %c0_198 = arith.constant 0 : index
    %c0_199 = arith.constant 0 : index
    %404 = vector.load %arg19[%c0_198, %c0_199] : memref<8x64xf32, #tpu.memory_space<vmem>>, vector<8x32xf32>
    tpu.vector_store %arg19[%c0_198, %c0_199], %391 {strides = array<i32>} : memref<8x64xf32, #tpu.memory_space<vmem>>, vector<8x32xf32>,
    %c0_200 = arith.constant 0 : index
    %c32_201 = arith.constant 32 : index
    %405 = vector.load %arg19[%c0_200, %c32_201] : memref<8x64xf32, #tpu.memory_space<vmem>>, vector<8x32xf32>
    tpu.vector_store %arg19[%c0_200, %c32_201], %397 {strides = array<i32>} : memref<8x64xf32, #tpu.memory_space<vmem>>, vector<8x32xf32>,
    %c0_202 = arith.constant 0 : index
    %c0_203 = arith.constant 0 : index
    %406 = vector.load %arg18[%c0_202, %c0_203] : memref<8x64xf32, #tpu.memory_space<vmem>>, vector<8x32xf32>
    tpu.vector_store %arg18[%c0_202, %c0_203], %400 {strides = array<i32>} : memref<8x64xf32, #tpu.memory_space<vmem>>, vector<8x32xf32>,
    %c0_204 = arith.constant 0 : index
    %c32_205 = arith.constant 32 : index
    %407 = vector.load %arg18[%c0_204, %c32_205] : memref<8x64xf32, #tpu.memory_space<vmem>>, vector<8x32xf32>
    tpu.vector_store %arg18[%c0_204, %c32_205], %403 {strides = array<i32>} : memref<8x64xf32, #tpu.memory_space<vmem>>, vector<8x32xf32>,
    %c6_206 = arith.constant 6 : index
    %c0_207 = arith.constant 0 : index
    %c0_208 = arith.constant 0 : index
    %408 = vector.load %arg16[%c6_206, %c0_207, %c0_208] : memref<8x8x32xf32, #tpu.memory_space<vmem>>, vector<1x8x32xf32>
    %409 = vector.shape_cast %408 : vector<1x8x32xf32> to vector<8x32xf32>
    %410 = vector.shape_cast %400 : vector<8x32xf32> to vector<1x8x32xf32>
    tpu.vector_store %arg16[%c6_206, %c0_207, %c0_208], %410 {strides = array<i32>} : memref<8x8x32xf32, #tpu.memory_space<vmem>>, vector<1x8x32xf32>,
    %c1_209 = arith.constant 1 : index
    %c0_210 = arith.constant 0 : index
    %c0_211 = arith.constant 0 : index
    %411 = vector.load %arg17[%c1_209, %c0_210, %c0_211] : memref<8x8x32xf32, #tpu.memory_space<vmem>>, vector<1x8x32xf32>
    %412 = vector.shape_cast %411 : vector<1x8x32xf32> to vector<8x32xf32>
    %413 = vector.shape_cast %403 : vector<8x32xf32> to vector<1x8x32xf32>
    tpu.vector_store %arg17[%c1_209, %c0_210, %c0_211], %413 {strides = array<i32>} : memref<8x8x32xf32, #tpu.memory_space<vmem>>, vector<1x8x32xf32>,
    %c0_212 = arith.constant 0 : index
    %c0_213 = arith.constant 0 : index
    %414 = vector.load %arg18[%c0_212, %c0_213] : memref<8x64xf32, #tpu.memory_space<vmem>>, vector<8x64xf32>
    %415 = arith.truncf %414 : vector<8x64xf32> to vector<8x64xbf16>
    %cst_214 = arith.constant dense<0.000000e+00> : vector<8x256xf32>
    %416 = tpu.matmul %415, %10, %cst_214 {dimension_numbers = #tpu.dot_dimension_numbers<[1], [0], [0], [1], [0, 0, 1, 1], [], []>} : vector<8x64xbf16>, vector<64x256xbf16>, vector<8x256xf32> -> vector<8x256xf32>
    %c7_215 = arith.constant 7 : index
    %c0_216 = arith.constant 0 : index
    %c0_217 = arith.constant 0 : index
    %417 = vector.load %arg15[%c7_215, %c0_216, %c0_217] : memref<8x8x256xf32, #tpu.memory_space<vmem>>, vector<1x8x256xf32>
    %418 = vector.shape_cast %417 : vector<1x8x256xf32> to vector<8x256xf32>
    %c0_218 = arith.constant 0 : index
    %c0_219 = arith.constant 0 : index
    %c0_220 = arith.constant 0 : index
    %419 = vector.load %arg15[%c0_218, %c0_219, %c0_220] : memref<8x8x256xf32, #tpu.memory_space<vmem>>, vector<1x8x256xf32>
    %420 = vector.shape_cast %419 : vector<1x8x256xf32> to vector<8x256xf32>
    %421 = vector.extract_strided_slice %416 {offsets = [0, 0], sizes = [8, 128], strides = [1, 1]} : vector<8x256xf32> to vector<8x128xf32>
    %422 = vector.extract_strided_slice %418 {offsets = [0, 0], sizes = [8, 128], strides = [1, 1]} : vector<8x256xf32> to vector<8x128xf32>
    %423 = arith.addf %421, %422 : vector<8x128xf32>
    %424 = vector.extract_strided_slice %416 {offsets = [0, 128], sizes = [8, 128], strides = [1, 1]} : vector<8x256xf32> to vector<8x128xf32>
    %425 = vector.extract_strided_slice %420 {offsets = [0, 128], sizes = [8, 128], strides = [1, 1]} : vector<8x256xf32> to vector<8x128xf32>
    %426 = arith.addf %424, %425 : vector<8x128xf32>
    %427 = vector.extract_strided_slice %423 {offsets = [0, 0], sizes = [8, 96], strides = [1, 1]} : vector<8x128xf32> to vector<8x96xf32>
    %428 = arith.negf %427 : vector<8x96xf32>
    %429 = math.exp %428 : vector<8x96xf32>
    %cst_221 = arith.constant 1.000000e+00 : f32
    %430 = vector.broadcast %cst_221 : f32 to vector<8x96xf32>
    %431 = arith.addf %430, %429 : vector<8x96xf32>
    %432 = arith.divf %430, %431 : vector<8x96xf32>
    %433 = vector.extract_strided_slice %426 {offsets = [0, 0], sizes = [8, 96], strides = [1, 1]} : vector<8x128xf32> to vector<8x96xf32>
    %434 = arith.negf %433 : vector<8x96xf32>
    %435 = math.exp %434 : vector<8x96xf32>
    %cst_222 = arith.constant 1.000000e+00 : f32
    %436 = vector.broadcast %cst_222 : f32 to vector<8x96xf32>
    %437 = arith.addf %436, %435 : vector<8x96xf32>
    %438 = arith.divf %436, %437 : vector<8x96xf32>
    %439 = vector.extract_strided_slice %423 {offsets = [0, 96], sizes = [8, 32], strides = [1, 1]} : vector<8x128xf32> to vector<8x32xf32>
    %440 = math.tanh %439 : vector<8x32xf32>
    %441 = vector.extract_strided_slice %426 {offsets = [0, 96], sizes = [8, 32], strides = [1, 1]} : vector<8x128xf32> to vector<8x32xf32>
    %442 = math.tanh %441 : vector<8x32xf32>
    %443 = vector.extract_strided_slice %432 {offsets = [0, 32], sizes = [8, 32], strides = [1, 1]} : vector<8x96xf32> to vector<8x32xf32>
    %c0_223 = arith.constant 0 : index
    %c0_224 = arith.constant 0 : index
    %444 = vector.load %arg19[%c0_223, %c0_224] : memref<8x64xf32, #tpu.memory_space<vmem>>, vector<8x32xf32>
    %445 = arith.mulf %443, %444 : vector<8x32xf32>
    %446 = vector.extract_strided_slice %432 {offsets = [0, 0], sizes = [8, 32], strides = [1, 1]} : vector<8x96xf32> to vector<8x32xf32>
    %447 = arith.mulf %446, %440 : vector<8x32xf32>
    %448 = arith.addf %445, %447 : vector<8x32xf32>
    %449 = vector.extract_strided_slice %438 {offsets = [0, 32], sizes = [8, 32], strides = [1, 1]} : vector<8x96xf32> to vector<8x32xf32>
    %c0_225 = arith.constant 0 : index
    %c32_226 = arith.constant 32 : index
    %450 = vector.load %arg19[%c0_225, %c32_226] : memref<8x64xf32, #tpu.memory_space<vmem>>, vector<8x32xf32>
    %451 = arith.mulf %449, %450 : vector<8x32xf32>
    %452 = vector.extract_strided_slice %438 {offsets = [0, 0], sizes = [8, 32], strides = [1, 1]} : vector<8x96xf32> to vector<8x32xf32>
    %453 = arith.mulf %452, %442 : vector<8x32xf32>
    %454 = arith.addf %451, %453 : vector<8x32xf32>
    %455 = vector.extract_strided_slice %432 {offsets = [0, 64], sizes = [8, 32], strides = [1, 1]} : vector<8x96xf32> to vector<8x32xf32>
    %456 = math.tanh %448 : vector<8x32xf32>
    %457 = arith.mulf %455, %456 : vector<8x32xf32>
    %458 = vector.extract_strided_slice %438 {offsets = [0, 64], sizes = [8, 32], strides = [1, 1]} : vector<8x96xf32> to vector<8x32xf32>
    %459 = math.tanh %454 : vector<8x32xf32>
    %460 = arith.mulf %458, %459 : vector<8x32xf32>
    %c0_227 = arith.constant 0 : index
    %c0_228 = arith.constant 0 : index
    %461 = vector.load %arg19[%c0_227, %c0_228] : memref<8x64xf32, #tpu.memory_space<vmem>>, vector<8x32xf32>
    tpu.vector_store %arg19[%c0_227, %c0_228], %448 {strides = array<i32>} : memref<8x64xf32, #tpu.memory_space<vmem>>, vector<8x32xf32>,
    %c0_229 = arith.constant 0 : index
    %c32_230 = arith.constant 32 : index
    %462 = vector.load %arg19[%c0_229, %c32_230] : memref<8x64xf32, #tpu.memory_space<vmem>>, vector<8x32xf32>
    tpu.vector_store %arg19[%c0_229, %c32_230], %454 {strides = array<i32>} : memref<8x64xf32, #tpu.memory_space<vmem>>, vector<8x32xf32>,
    %c0_231 = arith.constant 0 : index
    %c0_232 = arith.constant 0 : index
    %463 = vector.load %arg18[%c0_231, %c0_232] : memref<8x64xf32, #tpu.memory_space<vmem>>, vector<8x32xf32>
    tpu.vector_store %arg18[%c0_231, %c0_232], %457 {strides = array<i32>} : memref<8x64xf32, #tpu.memory_space<vmem>>, vector<8x32xf32>,
    %c0_233 = arith.constant 0 : index
    %c32_234 = arith.constant 32 : index
    %464 = vector.load %arg18[%c0_233, %c32_234] : memref<8x64xf32, #tpu.memory_space<vmem>>, vector<8x32xf32>
    tpu.vector_store %arg18[%c0_233, %c32_234], %460 {strides = array<i32>} : memref<8x64xf32, #tpu.memory_space<vmem>>, vector<8x32xf32>,
    %c7_235 = arith.constant 7 : index
    %c0_236 = arith.constant 0 : index
    %c0_237 = arith.constant 0 : index
    %465 = vector.load %arg16[%c7_235, %c0_236, %c0_237] : memref<8x8x32xf32, #tpu.memory_space<vmem>>, vector<1x8x32xf32>
    %466 = vector.shape_cast %465 : vector<1x8x32xf32> to vector<8x32xf32>
    %467 = vector.shape_cast %457 : vector<8x32xf32> to vector<1x8x32xf32>
    tpu.vector_store %arg16[%c7_235, %c0_236, %c0_237], %467 {strides = array<i32>} : memref<8x8x32xf32, #tpu.memory_space<vmem>>, vector<1x8x32xf32>,
    %c0_238 = arith.constant 0 : index
    %c0_239 = arith.constant 0 : index
    %c0_240 = arith.constant 0 : index
    %468 = vector.load %arg17[%c0_238, %c0_239, %c0_240] : memref<8x8x32xf32, #tpu.memory_space<vmem>>, vector<1x8x32xf32>
    %469 = vector.shape_cast %468 : vector<1x8x32xf32> to vector<8x32xf32>
    %470 = vector.shape_cast %460 : vector<8x32xf32> to vector<1x8x32xf32>
    tpu.vector_store %arg17[%c0_238, %c0_239, %c0_240], %470 {strides = array<i32>} : memref<8x8x32xf32, #tpu.memory_space<vmem>>, vector<1x8x32xf32>,
    %c0_241 = arith.constant 0 : index
    %c0_242 = arith.constant 0 : index
    %c0_243 = arith.constant 0 : index
    %471 = vector.load %arg16[%c0_241, %c0_242, %c0_243] : memref<8x8x32xf32, #tpu.memory_space<vmem>>, vector<8x8x32xf32>
    %472 = vector.shape_cast %471 : vector<8x8x32xf32> to vector<64x32xf32>
    %473 = arith.truncf %472 : vector<64x32xf32> to vector<64x32xbf16>
    %c0_244 = arith.constant 0 : index
    %c0_245 = arith.constant 0 : index
    %c0_246 = arith.constant 0 : index
    %474 = vector.load %arg17[%c0_244, %c0_245, %c0_246] : memref<8x8x32xf32, #tpu.memory_space<vmem>>, vector<8x8x32xf32>
    %475 = vector.shape_cast %474 : vector<8x8x32xf32> to vector<64x32xf32>
    %476 = arith.truncf %475 : vector<64x32xf32> to vector<64x32xbf16>
    %c0_247 = arith.constant 0 : index
    %c0_248 = arith.constant 0 : index
    %477 = vector.load %arg5[%c0_247, %c0_248] : memref<32x256xbf16, #tpu.memory_space<vmem>>, vector<32x256xbf16>
    %cst_249 = arith.constant dense<0.000000e+00> : vector<64x256xf32>
    %478 = tpu.matmul %473, %477, %cst_249 {dimension_numbers = #tpu.dot_dimension_numbers<[1], [0], [0], [1], [0, 0, 1, 1], [], []>} : vector<64x32xbf16>, vector<32x256xbf16>, vector<64x256xf32> -> vector<64x256xf32>
    %c0_250 = arith.constant 0 : index
    %c0_251 = arith.constant 0 : index
    %479 = vector.load %arg6[%c0_250, %c0_251] : memref<32x256xbf16, #tpu.memory_space<vmem>>, vector<32x256xbf16>
    %cst_252 = arith.constant dense<0.000000e+00> : vector<64x256xf32>
    %480 = tpu.matmul %476, %479, %cst_252 {dimension_numbers = #tpu.dot_dimension_numbers<[1], [0], [0], [1], [0, 0, 1, 1], [], []>} : vector<64x32xbf16>, vector<32x256xbf16>, vector<64x256xf32> -> vector<64x256xf32>
    %481 = arith.addf %478, %480 : vector<64x256xf32>
    %c0_253 = arith.constant 0 : index
    %c0_254 = arith.constant 0 : index
    %482 = vector.load %arg7[%c0_253, %c0_254] : memref<1x256xf32, #tpu.memory_space<vmem>>, vector<1x256xf32>
    %483 = vector.broadcast %482 : vector<1x256xf32> to vector<64x256xf32>
    %484 = arith.addf %481, %483 : vector<64x256xf32>
    %485 = vector.shape_cast %484 : vector<64x256xf32> to vector<8x8x256xf32>
    %c0_255 = arith.constant 0 : index
    %c0_256 = arith.constant 0 : index
    %c0_257 = arith.constant 0 : index
    %486 = vector.load %arg15[%c0_255, %c0_256, %c0_257] : memref<8x8x256xf32, #tpu.memory_space<vmem>>, vector<8x8x256xf32>
    tpu.vector_store %arg15[%c0_255, %c0_256, %c0_257], %485 {strides = array<i32>} : memref<8x8x256xf32, #tpu.memory_space<vmem>>, vector<8x8x256xf32>,
    %c0_258 = arith.constant 0 : index
    %c0_259 = arith.constant 0 : index
    %487 = vector.load %arg8[%c0_258, %c0_259] : memref<64x256xbf16, #tpu.memory_space<vmem>>, vector<64x256xbf16>
    %cst_260 = arith.constant 0.000000e+00 : f32
    %488 = vector.broadcast %cst_260 : f32 to vector<8x64xf32>
    %c0_261 = arith.constant 0 : index
    %c0_262 = arith.constant 0 : index
    %489 = vector.load %arg18[%c0_261, %c0_262] : memref<8x64xf32, #tpu.memory_space<vmem>>, vector<8x64xf32>
    tpu.vector_store %arg18[%c0_261, %c0_262], %488 {strides = array<i32>} : memref<8x64xf32, #tpu.memory_space<vmem>>, vector<8x64xf32>,
    %cst_263 = arith.constant 0.000000e+00 : f32
    %490 = vector.broadcast %cst_263 : f32 to vector<8x64xf32>
    %c0_264 = arith.constant 0 : index
    %c0_265 = arith.constant 0 : index
    %491 = vector.load %arg19[%c0_264, %c0_265] : memref<8x64xf32, #tpu.memory_space<vmem>>, vector<8x64xf32>
    tpu.vector_store %arg19[%c0_264, %c0_265], %490 {strides = array<i32>} : memref<8x64xf32, #tpu.memory_space<vmem>>, vector<8x64xf32>,
    %c0_266 = arith.constant 0 : index
    %c0_267 = arith.constant 0 : index
    %492 = vector.load %arg18[%c0_266, %c0_267] : memref<8x64xf32, #tpu.memory_space<vmem>>, vector<8x64xf32>
    %493 = arith.truncf %492 : vector<8x64xf32> to vector<8x64xbf16>
    %cst_268 = arith.constant dense<0.000000e+00> : vector<8x256xf32>
    %494 = tpu.matmul %493, %487, %cst_268 {dimension_numbers = #tpu.dot_dimension_numbers<[1], [0], [0], [1], [0, 0, 1, 1], [], []>} : vector<8x64xbf16>, vector<64x256xbf16>, vector<8x256xf32> -> vector<8x256xf32>
    %c0_269 = arith.constant 0 : index
    %c0_270 = arith.constant 0 : index
    %c0_271 = arith.constant 0 : index
    %495 = vector.load %arg15[%c0_269, %c0_270, %c0_271] : memref<8x8x256xf32, #tpu.memory_space<vmem>>, vector<1x8x256xf32>
    %496 = vector.shape_cast %495 : vector<1x8x256xf32> to vector<8x256xf32>
    %c7_272 = arith.constant 7 : index
    %c0_273 = arith.constant 0 : index
    %c0_274 = arith.constant 0 : index
    %497 = vector.load %arg15[%c7_272, %c0_273, %c0_274] : memref<8x8x256xf32, #tpu.memory_space<vmem>>, vector<1x8x256xf32>
    %498 = vector.shape_cast %497 : vector<1x8x256xf32> to vector<8x256xf32>
    %499 = vector.extract_strided_slice %494 {offsets = [0, 0], sizes = [8, 128], strides = [1, 1]} : vector<8x256xf32> to vector<8x128xf32>
    %500 = vector.extract_strided_slice %496 {offsets = [0, 0], sizes = [8, 128], strides = [1, 1]} : vector<8x256xf32> to vector<8x128xf32>
    %501 = arith.addf %499, %500 : vector<8x128xf32>
    %502 = vector.extract_strided_slice %494 {offsets = [0, 128], sizes = [8, 128], strides = [1, 1]} : vector<8x256xf32> to vector<8x128xf32>
    %503 = vector.extract_strided_slice %498 {offsets = [0, 128], sizes = [8, 128], strides = [1, 1]} : vector<8x256xf32> to vector<8x128xf32>
    %504 = arith.addf %502, %503 : vector<8x128xf32>
    %505 = vector.extract_strided_slice %501 {offsets = [0, 0], sizes = [8, 96], strides = [1, 1]} : vector<8x128xf32> to vector<8x96xf32>
    %506 = arith.negf %505 : vector<8x96xf32>
    %507 = math.exp %506 : vector<8x96xf32>
    %cst_275 = arith.constant 1.000000e+00 : f32
    %508 = vector.broadcast %cst_275 : f32 to vector<8x96xf32>
    %509 = arith.addf %508, %507 : vector<8x96xf32>
    %510 = arith.divf %508, %509 : vector<8x96xf32>
    %511 = vector.extract_strided_slice %504 {offsets = [0, 0], sizes = [8, 96], strides = [1, 1]} : vector<8x128xf32> to vector<8x96xf32>
    %512 = arith.negf %511 : vector<8x96xf32>
    %513 = math.exp %512 : vector<8x96xf32>
    %cst_276 = arith.constant 1.000000e+00 : f32
    %514 = vector.broadcast %cst_276 : f32 to vector<8x96xf32>
    %515 = arith.addf %514, %513 : vector<8x96xf32>
    %516 = arith.divf %514, %515 : vector<8x96xf32>
    %517 = vector.extract_strided_slice %501 {offsets = [0, 96], sizes = [8, 32], strides = [1, 1]} : vector<8x128xf32> to vector<8x32xf32>
    %518 = math.tanh %517 : vector<8x32xf32>
    %519 = vector.extract_strided_slice %504 {offsets = [0, 96], sizes = [8, 32], strides = [1, 1]} : vector<8x128xf32> to vector<8x32xf32>
    %520 = math.tanh %519 : vector<8x32xf32>
    %521 = vector.extract_strided_slice %510 {offsets = [0, 32], sizes = [8, 32], strides = [1, 1]} : vector<8x96xf32> to vector<8x32xf32>
    %c0_277 = arith.constant 0 : index
    %c0_278 = arith.constant 0 : index
    %522 = vector.load %arg19[%c0_277, %c0_278] : memref<8x64xf32, #tpu.memory_space<vmem>>, vector<8x32xf32>
    %523 = arith.mulf %521, %522 : vector<8x32xf32>
    %524 = vector.extract_strided_slice %510 {offsets = [0, 0], sizes = [8, 32], strides = [1, 1]} : vector<8x96xf32> to vector<8x32xf32>
    %525 = arith.mulf %524, %518 : vector<8x32xf32>
    %526 = arith.addf %523, %525 : vector<8x32xf32>
    %527 = vector.extract_strided_slice %516 {offsets = [0, 32], sizes = [8, 32], strides = [1, 1]} : vector<8x96xf32> to vector<8x32xf32>
    %c0_279 = arith.constant 0 : index
    %c32_280 = arith.constant 32 : index
    %528 = vector.load %arg19[%c0_279, %c32_280] : memref<8x64xf32, #tpu.memory_space<vmem>>, vector<8x32xf32>
    %529 = arith.mulf %527, %528 : vector<8x32xf32>
    %530 = vector.extract_strided_slice %516 {offsets = [0, 0], sizes = [8, 32], strides = [1, 1]} : vector<8x96xf32> to vector<8x32xf32>
    %531 = arith.mulf %530, %520 : vector<8x32xf32>
    %532 = arith.addf %529, %531 : vector<8x32xf32>
    %533 = vector.extract_strided_slice %510 {offsets = [0, 64], sizes = [8, 32], strides = [1, 1]} : vector<8x96xf32> to vector<8x32xf32>
    %534 = math.tanh %526 : vector<8x32xf32>
    %535 = arith.mulf %533, %534 : vector<8x32xf32>
    %536 = vector.extract_strided_slice %516 {offsets = [0, 64], sizes = [8, 32], strides = [1, 1]} : vector<8x96xf32> to vector<8x32xf32>
    %537 = math.tanh %532 : vector<8x32xf32>
    %538 = arith.mulf %536, %537 : vector<8x32xf32>
    %c0_281 = arith.constant 0 : index
    %c0_282 = arith.constant 0 : index
    %539 = vector.load %arg19[%c0_281, %c0_282] : memref<8x64xf32, #tpu.memory_space<vmem>>, vector<8x32xf32>
    tpu.vector_store %arg19[%c0_281, %c0_282], %526 {strides = array<i32>} : memref<8x64xf32, #tpu.memory_space<vmem>>, vector<8x32xf32>,
    %c0_283 = arith.constant 0 : index
    %c32_284 = arith.constant 32 : index
    %540 = vector.load %arg19[%c0_283, %c32_284] : memref<8x64xf32, #tpu.memory_space<vmem>>, vector<8x32xf32>
    tpu.vector_store %arg19[%c0_283, %c32_284], %532 {strides = array<i32>} : memref<8x64xf32, #tpu.memory_space<vmem>>, vector<8x32xf32>,
    %c0_285 = arith.constant 0 : index
    %c0_286 = arith.constant 0 : index
    %541 = vector.load %arg18[%c0_285, %c0_286] : memref<8x64xf32, #tpu.memory_space<vmem>>, vector<8x32xf32>
    tpu.vector_store %arg18[%c0_285, %c0_286], %535 {strides = array<i32>} : memref<8x64xf32, #tpu.memory_space<vmem>>, vector<8x32xf32>,
    %c0_287 = arith.constant 0 : index
    %c32_288 = arith.constant 32 : index
    %542 = vector.load %arg18[%c0_287, %c32_288] : memref<8x64xf32, #tpu.memory_space<vmem>>, vector<8x32xf32>
    tpu.vector_store %arg18[%c0_287, %c32_288], %538 {strides = array<i32>} : memref<8x64xf32, #tpu.memory_space<vmem>>, vector<8x32xf32>,
    %c0_289 = arith.constant 0 : index
    %c0_290 = arith.constant 0 : index
    %c0_291 = arith.constant 0 : index
    %543 = vector.load %arg16[%c0_289, %c0_290, %c0_291] : memref<8x8x32xf32, #tpu.memory_space<vmem>>, vector<1x8x32xf32>
    %544 = vector.shape_cast %543 : vector<1x8x32xf32> to vector<8x32xf32>
    %545 = vector.shape_cast %535 : vector<8x32xf32> to vector<1x8x32xf32>
    tpu.vector_store %arg16[%c0_289, %c0_290, %c0_291], %545 {strides = array<i32>} : memref<8x8x32xf32, #tpu.memory_space<vmem>>, vector<1x8x32xf32>,
    %c7_292 = arith.constant 7 : index
    %c0_293 = arith.constant 0 : index
    %c0_294 = arith.constant 0 : index
    %546 = vector.load %arg17[%c7_292, %c0_293, %c0_294] : memref<8x8x32xf32, #tpu.memory_space<vmem>>, vector<1x8x32xf32>
    %547 = vector.shape_cast %546 : vector<1x8x32xf32> to vector<8x32xf32>
    %548 = vector.shape_cast %538 : vector<8x32xf32> to vector<1x8x32xf32>
    tpu.vector_store %arg17[%c7_292, %c0_293, %c0_294], %548 {strides = array<i32>} : memref<8x8x32xf32, #tpu.memory_space<vmem>>, vector<1x8x32xf32>,
    %c0_295 = arith.constant 0 : index
    %c0_296 = arith.constant 0 : index
    %549 = vector.load %arg18[%c0_295, %c0_296] : memref<8x64xf32, #tpu.memory_space<vmem>>, vector<8x64xf32>
    %550 = arith.truncf %549 : vector<8x64xf32> to vector<8x64xbf16>
    %cst_297 = arith.constant dense<0.000000e+00> : vector<8x256xf32>
    %551 = tpu.matmul %550, %487, %cst_297 {dimension_numbers = #tpu.dot_dimension_numbers<[1], [0], [0], [1], [0, 0, 1, 1], [], []>} : vector<8x64xbf16>, vector<64x256xbf16>, vector<8x256xf32> -> vector<8x256xf32>
    %c1_298 = arith.constant 1 : index
    %c0_299 = arith.constant 0 : index
    %c0_300 = arith.constant 0 : index
    %552 = vector.load %arg15[%c1_298, %c0_299, %c0_300] : memref<8x8x256xf32, #tpu.memory_space<vmem>>, vector<1x8x256xf32>
    %553 = vector.shape_cast %552 : vector<1x8x256xf32> to vector<8x256xf32>
    %c6_301 = arith.constant 6 : index
    %c0_302 = arith.constant 0 : index
    %c0_303 = arith.constant 0 : index
    %554 = vector.load %arg15[%c6_301, %c0_302, %c0_303] : memref<8x8x256xf32, #tpu.memory_space<vmem>>, vector<1x8x256xf32>
    %555 = vector.shape_cast %554 : vector<1x8x256xf32> to vector<8x256xf32>
    %556 = vector.extract_strided_slice %551 {offsets = [0, 0], sizes = [8, 128], strides = [1, 1]} : vector<8x256xf32> to vector<8x128xf32>
    %557 = vector.extract_strided_slice %553 {offsets = [0, 0], sizes = [8, 128], strides = [1, 1]} : vector<8x256xf32> to vector<8x128xf32>
    %558 = arith.addf %556, %557 : vector<8x128xf32>
    %559 = vector.extract_strided_slice %551 {offsets = [0, 128], sizes = [8, 128], strides = [1, 1]} : vector<8x256xf32> to vector<8x128xf32>
    %560 = vector.extract_strided_slice %555 {offsets = [0, 128], sizes = [8, 128], strides = [1, 1]} : vector<8x256xf32> to vector<8x128xf32>
    %561 = arith.addf %559, %560 : vector<8x128xf32>
    %562 = vector.extract_strided_slice %558 {offsets = [0, 0], sizes = [8, 96], strides = [1, 1]} : vector<8x128xf32> to vector<8x96xf32>
    %563 = arith.negf %562 : vector<8x96xf32>
    %564 = math.exp %563 : vector<8x96xf32>
    %cst_304 = arith.constant 1.000000e+00 : f32
    %565 = vector.broadcast %cst_304 : f32 to vector<8x96xf32>
    %566 = arith.addf %565, %564 : vector<8x96xf32>
    %567 = arith.divf %565, %566 : vector<8x96xf32>
    %568 = vector.extract_strided_slice %561 {offsets = [0, 0], sizes = [8, 96], strides = [1, 1]} : vector<8x128xf32> to vector<8x96xf32>
    %569 = arith.negf %568 : vector<8x96xf32>
    %570 = math.exp %569 : vector<8x96xf32>
    %cst_305 = arith.constant 1.000000e+00 : f32
    %571 = vector.broadcast %cst_305 : f32 to vector<8x96xf32>
    %572 = arith.addf %571, %570 : vector<8x96xf32>
    %573 = arith.divf %571, %572 : vector<8x96xf32>
    %574 = vector.extract_strided_slice %558 {offsets = [0, 96], sizes = [8, 32], strides = [1, 1]} : vector<8x128xf32> to vector<8x32xf32>
    %575 = math.tanh %574 : vector<8x32xf32>
    %576 = vector.extract_strided_slice %561 {offsets = [0, 96], sizes = [8, 32], strides = [1, 1]} : vector<8x128xf32> to vector<8x32xf32>
    %577 = math.tanh %576 : vector<8x32xf32>
    %578 = vector.extract_strided_slice %567 {offsets = [0, 32], sizes = [8, 32], strides = [1, 1]} : vector<8x96xf32> to vector<8x32xf32>
    %c0_306 = arith.constant 0 : index
    %c0_307 = arith.constant 0 : index
    %579 = vector.load %arg19[%c0_306, %c0_307] : memref<8x64xf32, #tpu.memory_space<vmem>>, vector<8x32xf32>
    %580 = arith.mulf %578, %579 : vector<8x32xf32>
    %581 = vector.extract_strided_slice %567 {offsets = [0, 0], sizes = [8, 32], strides = [1, 1]} : vector<8x96xf32> to vector<8x32xf32>
    %582 = arith.mulf %581, %575 : vector<8x32xf32>
    %583 = arith.addf %580, %582 : vector<8x32xf32>
    %584 = vector.extract_strided_slice %573 {offsets = [0, 32], sizes = [8, 32], strides = [1, 1]} : vector<8x96xf32> to vector<8x32xf32>
    %c0_308 = arith.constant 0 : index
    %c32_309 = arith.constant 32 : index
    %585 = vector.load %arg19[%c0_308, %c32_309] : memref<8x64xf32, #tpu.memory_space<vmem>>, vector<8x32xf32>
    %586 = arith.mulf %584, %585 : vector<8x32xf32>
    %587 = vector.extract_strided_slice %573 {offsets = [0, 0], sizes = [8, 32], strides = [1, 1]} : vector<8x96xf32> to vector<8x32xf32>
    %588 = arith.mulf %587, %577 : vector<8x32xf32>
    %589 = arith.addf %586, %588 : vector<8x32xf32>
    %590 = vector.extract_strided_slice %567 {offsets = [0, 64], sizes = [8, 32], strides = [1, 1]} : vector<8x96xf32> to vector<8x32xf32>
    %591 = math.tanh %583 : vector<8x32xf32>
    %592 = arith.mulf %590, %591 : vector<8x32xf32>
    %593 = vector.extract_strided_slice %573 {offsets = [0, 64], sizes = [8, 32], strides = [1, 1]} : vector<8x96xf32> to vector<8x32xf32>
    %594 = math.tanh %589 : vector<8x32xf32>
    %595 = arith.mulf %593, %594 : vector<8x32xf32>
    %c0_310 = arith.constant 0 : index
    %c0_311 = arith.constant 0 : index
    %596 = vector.load %arg19[%c0_310, %c0_311] : memref<8x64xf32, #tpu.memory_space<vmem>>, vector<8x32xf32>
    tpu.vector_store %arg19[%c0_310, %c0_311], %583 {strides = array<i32>} : memref<8x64xf32, #tpu.memory_space<vmem>>, vector<8x32xf32>,
    %c0_312 = arith.constant 0 : index
    %c32_313 = arith.constant 32 : index
    %597 = vector.load %arg19[%c0_312, %c32_313] : memref<8x64xf32, #tpu.memory_space<vmem>>, vector<8x32xf32>
    tpu.vector_store %arg19[%c0_312, %c32_313], %589 {strides = array<i32>} : memref<8x64xf32, #tpu.memory_space<vmem>>, vector<8x32xf32>,
    %c0_314 = arith.constant 0 : index
    %c0_315 = arith.constant 0 : index
    %598 = vector.load %arg18[%c0_314, %c0_315] : memref<8x64xf32, #tpu.memory_space<vmem>>, vector<8x32xf32>
    tpu.vector_store %arg18[%c0_314, %c0_315], %592 {strides = array<i32>} : memref<8x64xf32, #tpu.memory_space<vmem>>, vector<8x32xf32>,
    %c0_316 = arith.constant 0 : index
    %c32_317 = arith.constant 32 : index
    %599 = vector.load %arg18[%c0_316, %c32_317] : memref<8x64xf32, #tpu.memory_space<vmem>>, vector<8x32xf32>
    tpu.vector_store %arg18[%c0_316, %c32_317], %595 {strides = array<i32>} : memref<8x64xf32, #tpu.memory_space<vmem>>, vector<8x32xf32>,
    %c1_318 = arith.constant 1 : index
    %c0_319 = arith.constant 0 : index
    %c0_320 = arith.constant 0 : index
    %600 = vector.load %arg16[%c1_318, %c0_319, %c0_320] : memref<8x8x32xf32, #tpu.memory_space<vmem>>, vector<1x8x32xf32>
    %601 = vector.shape_cast %600 : vector<1x8x32xf32> to vector<8x32xf32>
    %602 = vector.shape_cast %592 : vector<8x32xf32> to vector<1x8x32xf32>
    tpu.vector_store %arg16[%c1_318, %c0_319, %c0_320], %602 {strides = array<i32>} : memref<8x8x32xf32, #tpu.memory_space<vmem>>, vector<1x8x32xf32>,
    %c6_321 = arith.constant 6 : index
    %c0_322 = arith.constant 0 : index
    %c0_323 = arith.constant 0 : index
    %603 = vector.load %arg17[%c6_321, %c0_322, %c0_323] : memref<8x8x32xf32, #tpu.memory_space<vmem>>, vector<1x8x32xf32>
    %604 = vector.shape_cast %603 : vector<1x8x32xf32> to vector<8x32xf32>
    %605 = vector.shape_cast %595 : vector<8x32xf32> to vector<1x8x32xf32>
    tpu.vector_store %arg17[%c6_321, %c0_322, %c0_323], %605 {strides = array<i32>} : memref<8x8x32xf32, #tpu.memory_space<vmem>>, vector<1x8x32xf32>,
    %c0_324 = arith.constant 0 : index
    %c0_325 = arith.constant 0 : index
    %606 = vector.load %arg18[%c0_324, %c0_325] : memref<8x64xf32, #tpu.memory_space<vmem>>, vector<8x64xf32>
    %607 = arith.truncf %606 : vector<8x64xf32> to vector<8x64xbf16>
    %cst_326 = arith.constant dense<0.000000e+00> : vector<8x256xf32>
    %608 = tpu.matmul %607, %487, %cst_326 {dimension_numbers = #tpu.dot_dimension_numbers<[1], [0], [0], [1], [0, 0, 1, 1], [], []>} : vector<8x64xbf16>, vector<64x256xbf16>, vector<8x256xf32> -> vector<8x256xf32>
    %c2_327 = arith.constant 2 : index
    %c0_328 = arith.constant 0 : index
    %c0_329 = arith.constant 0 : index
    %609 = vector.load %arg15[%c2_327, %c0_328, %c0_329] : memref<8x8x256xf32, #tpu.memory_space<vmem>>, vector<1x8x256xf32>
    %610 = vector.shape_cast %609 : vector<1x8x256xf32> to vector<8x256xf32>
    %c5_330 = arith.constant 5 : index
    %c0_331 = arith.constant 0 : index
    %c0_332 = arith.constant 0 : index
    %611 = vector.load %arg15[%c5_330, %c0_331, %c0_332] : memref<8x8x256xf32, #tpu.memory_space<vmem>>, vector<1x8x256xf32>
    %612 = vector.shape_cast %611 : vector<1x8x256xf32> to vector<8x256xf32>
    %613 = vector.extract_strided_slice %608 {offsets = [0, 0], sizes = [8, 128], strides = [1, 1]} : vector<8x256xf32> to vector<8x128xf32>
    %614 = vector.extract_strided_slice %610 {offsets = [0, 0], sizes = [8, 128], strides = [1, 1]} : vector<8x256xf32> to vector<8x128xf32>
    %615 = arith.addf %613, %614 : vector<8x128xf32>
    %616 = vector.extract_strided_slice %608 {offsets = [0, 128], sizes = [8, 128], strides = [1, 1]} : vector<8x256xf32> to vector<8x128xf32>
    %617 = vector.extract_strided_slice %612 {offsets = [0, 128], sizes = [8, 128], strides = [1, 1]} : vector<8x256xf32> to vector<8x128xf32>
    %618 = arith.addf %616, %617 : vector<8x128xf32>
    %619 = vector.extract_strided_slice %615 {offsets = [0, 0], sizes = [8, 96], strides = [1, 1]} : vector<8x128xf32> to vector<8x96xf32>
    %620 = arith.negf %619 : vector<8x96xf32>
    %621 = math.exp %620 : vector<8x96xf32>
    %cst_333 = arith.constant 1.000000e+00 : f32
    %622 = vector.broadcast %cst_333 : f32 to vector<8x96xf32>
    %623 = arith.addf %622, %621 : vector<8x96xf32>
    %624 = arith.divf %622, %623 : vector<8x96xf32>
    %625 = vector.extract_strided_slice %618 {offsets = [0, 0], sizes = [8, 96], strides = [1, 1]} : vector<8x128xf32> to vector<8x96xf32>
    %626 = arith.negf %625 : vector<8x96xf32>
    %627 = math.exp %626 : vector<8x96xf32>
    %cst_334 = arith.constant 1.000000e+00 : f32
    %628 = vector.broadcast %cst_334 : f32 to vector<8x96xf32>
    %629 = arith.addf %628, %627 : vector<8x96xf32>
    %630 = arith.divf %628, %629 : vector<8x96xf32>
    %631 = vector.extract_strided_slice %615 {offsets = [0, 96], sizes = [8, 32], strides = [1, 1]} : vector<8x128xf32> to vector<8x32xf32>
    %632 = math.tanh %631 : vector<8x32xf32>
    %633 = vector.extract_strided_slice %618 {offsets = [0, 96], sizes = [8, 32], strides = [1, 1]} : vector<8x128xf32> to vector<8x32xf32>
    %634 = math.tanh %633 : vector<8x32xf32>
    %635 = vector.extract_strided_slice %624 {offsets = [0, 32], sizes = [8, 32], strides = [1, 1]} : vector<8x96xf32> to vector<8x32xf32>
    %c0_335 = arith.constant 0 : index
    %c0_336 = arith.constant 0 : index
    %636 = vector.load %arg19[%c0_335, %c0_336] : memref<8x64xf32, #tpu.memory_space<vmem>>, vector<8x32xf32>
    %637 = arith.mulf %635, %636 : vector<8x32xf32>
    %638 = vector.extract_strided_slice %624 {offsets = [0, 0], sizes = [8, 32], strides = [1, 1]} : vector<8x96xf32> to vector<8x32xf32>
    %639 = arith.mulf %638, %632 : vector<8x32xf32>
    %640 = arith.addf %637, %639 : vector<8x32xf32>
    %641 = vector.extract_strided_slice %630 {offsets = [0, 32], sizes = [8, 32], strides = [1, 1]} : vector<8x96xf32> to vector<8x32xf32>
    %c0_337 = arith.constant 0 : index
    %c32_338 = arith.constant 32 : index
    %642 = vector.load %arg19[%c0_337, %c32_338] : memref<8x64xf32, #tpu.memory_space<vmem>>, vector<8x32xf32>
    %643 = arith.mulf %641, %642 : vector<8x32xf32>
    %644 = vector.extract_strided_slice %630 {offsets = [0, 0], sizes = [8, 32], strides = [1, 1]} : vector<8x96xf32> to vector<8x32xf32>
    %645 = arith.mulf %644, %634 : vector<8x32xf32>
    %646 = arith.addf %643, %645 : vector<8x32xf32>
    %647 = vector.extract_strided_slice %624 {offsets = [0, 64], sizes = [8, 32], strides = [1, 1]} : vector<8x96xf32> to vector<8x32xf32>
    %648 = math.tanh %640 : vector<8x32xf32>
    %649 = arith.mulf %647, %648 : vector<8x32xf32>
    %650 = vector.extract_strided_slice %630 {offsets = [0, 64], sizes = [8, 32], strides = [1, 1]} : vector<8x96xf32> to vector<8x32xf32>
    %651 = math.tanh %646 : vector<8x32xf32>
    %652 = arith.mulf %650, %651 : vector<8x32xf32>
    %c0_339 = arith.constant 0 : index
    %c0_340 = arith.constant 0 : index
    %653 = vector.load %arg19[%c0_339, %c0_340] : memref<8x64xf32, #tpu.memory_space<vmem>>, vector<8x32xf32>
    tpu.vector_store %arg19[%c0_339, %c0_340], %640 {strides = array<i32>} : memref<8x64xf32, #tpu.memory_space<vmem>>, vector<8x32xf32>,
    %c0_341 = arith.constant 0 : index
    %c32_342 = arith.constant 32 : index
    %654 = vector.load %arg19[%c0_341, %c32_342] : memref<8x64xf32, #tpu.memory_space<vmem>>, vector<8x32xf32>
    tpu.vector_store %arg19[%c0_341, %c32_342], %646 {strides = array<i32>} : memref<8x64xf32, #tpu.memory_space<vmem>>, vector<8x32xf32>,
    %c0_343 = arith.constant 0 : index
    %c0_344 = arith.constant 0 : index
    %655 = vector.load %arg18[%c0_343, %c0_344] : memref<8x64xf32, #tpu.memory_space<vmem>>, vector<8x32xf32>
    tpu.vector_store %arg18[%c0_343, %c0_344], %649 {strides = array<i32>} : memref<8x64xf32, #tpu.memory_space<vmem>>, vector<8x32xf32>,
    %c0_345 = arith.constant 0 : index
    %c32_346 = arith.constant 32 : index
    %656 = vector.load %arg18[%c0_345, %c32_346] : memref<8x64xf32, #tpu.memory_space<vmem>>, vector<8x32xf32>
    tpu.vector_store %arg18[%c0_345, %c32_346], %652 {strides = array<i32>} : memref<8x64xf32, #tpu.memory_space<vmem>>, vector<8x32xf32>,
    %c2_347 = arith.constant 2 : index
    %c0_348 = arith.constant 0 : index
    %c0_349 = arith.constant 0 : index
    %657 = vector.load %arg16[%c2_347, %c0_348, %c0_349] : memref<8x8x32xf32, #tpu.memory_space<vmem>>, vector<1x8x32xf32>
    %658 = vector.shape_cast %657 : vector<1x8x32xf32> to vector<8x32xf32>
    %659 = vector.shape_cast %649 : vector<8x32xf32> to vector<1x8x32xf32>
    tpu.vector_store %arg16[%c2_347, %c0_348, %c0_349], %659 {strides = array<i32>} : memref<8x8x32xf32, #tpu.memory_space<vmem>>, vector<1x8x32xf32>,
    %c5_350 = arith.constant 5 : index
    %c0_351 = arith.constant 0 : index
    %c0_352 = arith.constant 0 : index
    %660 = vector.load %arg17[%c5_350, %c0_351, %c0_352] : memref<8x8x32xf32, #tpu.memory_space<vmem>>, vector<1x8x32xf32>
    %661 = vector.shape_cast %660 : vector<1x8x32xf32> to vector<8x32xf32>
    %662 = vector.shape_cast %652 : vector<8x32xf32> to vector<1x8x32xf32>
    tpu.vector_store %arg17[%c5_350, %c0_351, %c0_352], %662 {strides = array<i32>} : memref<8x8x32xf32, #tpu.memory_space<vmem>>, vector<1x8x32xf32>,
    %c0_353 = arith.constant 0 : index
    %c0_354 = arith.constant 0 : index
    %663 = vector.load %arg18[%c0_353, %c0_354] : memref<8x64xf32, #tpu.memory_space<vmem>>, vector<8x64xf32>
    %664 = arith.truncf %663 : vector<8x64xf32> to vector<8x64xbf16>
    %cst_355 = arith.constant dense<0.000000e+00> : vector<8x256xf32>
    %665 = tpu.matmul %664, %487, %cst_355 {dimension_numbers = #tpu.dot_dimension_numbers<[1], [0], [0], [1], [0, 0, 1, 1], [], []>} : vector<8x64xbf16>, vector<64x256xbf16>, vector<8x256xf32> -> vector<8x256xf32>
    %c3_356 = arith.constant 3 : index
    %c0_357 = arith.constant 0 : index
    %c0_358 = arith.constant 0 : index
    %666 = vector.load %arg15[%c3_356, %c0_357, %c0_358] : memref<8x8x256xf32, #tpu.memory_space<vmem>>, vector<1x8x256xf32>
    %667 = vector.shape_cast %666 : vector<1x8x256xf32> to vector<8x256xf32>
    %c4_359 = arith.constant 4 : index
    %c0_360 = arith.constant 0 : index
    %c0_361 = arith.constant 0 : index
    %668 = vector.load %arg15[%c4_359, %c0_360, %c0_361] : memref<8x8x256xf32, #tpu.memory_space<vmem>>, vector<1x8x256xf32>
    %669 = vector.shape_cast %668 : vector<1x8x256xf32> to vector<8x256xf32>
    %670 = vector.extract_strided_slice %665 {offsets = [0, 0], sizes = [8, 128], strides = [1, 1]} : vector<8x256xf32> to vector<8x128xf32>
    %671 = vector.extract_strided_slice %667 {offsets = [0, 0], sizes = [8, 128], strides = [1, 1]} : vector<8x256xf32> to vector<8x128xf32>
    %672 = arith.addf %670, %671 : vector<8x128xf32>
    %673 = vector.extract_strided_slice %665 {offsets = [0, 128], sizes = [8, 128], strides = [1, 1]} : vector<8x256xf32> to vector<8x128xf32>
    %674 = vector.extract_strided_slice %669 {offsets = [0, 128], sizes = [8, 128], strides = [1, 1]} : vector<8x256xf32> to vector<8x128xf32>
    %675 = arith.addf %673, %674 : vector<8x128xf32>
    %676 = vector.extract_strided_slice %672 {offsets = [0, 0], sizes = [8, 96], strides = [1, 1]} : vector<8x128xf32> to vector<8x96xf32>
    %677 = arith.negf %676 : vector<8x96xf32>
    %678 = math.exp %677 : vector<8x96xf32>
    %cst_362 = arith.constant 1.000000e+00 : f32
    %679 = vector.broadcast %cst_362 : f32 to vector<8x96xf32>
    %680 = arith.addf %679, %678 : vector<8x96xf32>
    %681 = arith.divf %679, %680 : vector<8x96xf32>
    %682 = vector.extract_strided_slice %675 {offsets = [0, 0], sizes = [8, 96], strides = [1, 1]} : vector<8x128xf32> to vector<8x96xf32>
    %683 = arith.negf %682 : vector<8x96xf32>
    %684 = math.exp %683 : vector<8x96xf32>
    %cst_363 = arith.constant 1.000000e+00 : f32
    %685 = vector.broadcast %cst_363 : f32 to vector<8x96xf32>
    %686 = arith.addf %685, %684 : vector<8x96xf32>
    %687 = arith.divf %685, %686 : vector<8x96xf32>
    %688 = vector.extract_strided_slice %672 {offsets = [0, 96], sizes = [8, 32], strides = [1, 1]} : vector<8x128xf32> to vector<8x32xf32>
    %689 = math.tanh %688 : vector<8x32xf32>
    %690 = vector.extract_strided_slice %675 {offsets = [0, 96], sizes = [8, 32], strides = [1, 1]} : vector<8x128xf32> to vector<8x32xf32>
    %691 = math.tanh %690 : vector<8x32xf32>
    %692 = vector.extract_strided_slice %681 {offsets = [0, 32], sizes = [8, 32], strides = [1, 1]} : vector<8x96xf32> to vector<8x32xf32>
    %c0_364 = arith.constant 0 : index
    %c0_365 = arith.constant 0 : index
    %693 = vector.load %arg19[%c0_364, %c0_365] : memref<8x64xf32, #tpu.memory_space<vmem>>, vector<8x32xf32>
    %694 = arith.mulf %692, %693 : vector<8x32xf32>
    %695 = vector.extract_strided_slice %681 {offsets = [0, 0], sizes = [8, 32], strides = [1, 1]} : vector<8x96xf32> to vector<8x32xf32>
    %696 = arith.mulf %695, %689 : vector<8x32xf32>
    %697 = arith.addf %694, %696 : vector<8x32xf32>
    %698 = vector.extract_strided_slice %687 {offsets = [0, 32], sizes = [8, 32], strides = [1, 1]} : vector<8x96xf32> to vector<8x32xf32>
    %c0_366 = arith.constant 0 : index
    %c32_367 = arith.constant 32 : index
    %699 = vector.load %arg19[%c0_366, %c32_367] : memref<8x64xf32, #tpu.memory_space<vmem>>, vector<8x32xf32>
    %700 = arith.mulf %698, %699 : vector<8x32xf32>
    %701 = vector.extract_strided_slice %687 {offsets = [0, 0], sizes = [8, 32], strides = [1, 1]} : vector<8x96xf32> to vector<8x32xf32>
    %702 = arith.mulf %701, %691 : vector<8x32xf32>
    %703 = arith.addf %700, %702 : vector<8x32xf32>
    %704 = vector.extract_strided_slice %681 {offsets = [0, 64], sizes = [8, 32], strides = [1, 1]} : vector<8x96xf32> to vector<8x32xf32>
    %705 = math.tanh %697 : vector<8x32xf32>
    %706 = arith.mulf %704, %705 : vector<8x32xf32>
    %707 = vector.extract_strided_slice %687 {offsets = [0, 64], sizes = [8, 32], strides = [1, 1]} : vector<8x96xf32> to vector<8x32xf32>
    %708 = math.tanh %703 : vector<8x32xf32>
    %709 = arith.mulf %707, %708 : vector<8x32xf32>
    %c0_368 = arith.constant 0 : index
    %c0_369 = arith.constant 0 : index
    %710 = vector.load %arg19[%c0_368, %c0_369] : memref<8x64xf32, #tpu.memory_space<vmem>>, vector<8x32xf32>
    tpu.vector_store %arg19[%c0_368, %c0_369], %697 {strides = array<i32>} : memref<8x64xf32, #tpu.memory_space<vmem>>, vector<8x32xf32>,
    %c0_370 = arith.constant 0 : index
    %c32_371 = arith.constant 32 : index
    %711 = vector.load %arg19[%c0_370, %c32_371] : memref<8x64xf32, #tpu.memory_space<vmem>>, vector<8x32xf32>
    tpu.vector_store %arg19[%c0_370, %c32_371], %703 {strides = array<i32>} : memref<8x64xf32, #tpu.memory_space<vmem>>, vector<8x32xf32>,
    %c0_372 = arith.constant 0 : index
    %c0_373 = arith.constant 0 : index
    %712 = vector.load %arg18[%c0_372, %c0_373] : memref<8x64xf32, #tpu.memory_space<vmem>>, vector<8x32xf32>
    tpu.vector_store %arg18[%c0_372, %c0_373], %706 {strides = array<i32>} : memref<8x64xf32, #tpu.memory_space<vmem>>, vector<8x32xf32>,
    %c0_374 = arith.constant 0 : index
    %c32_375 = arith.constant 32 : index
    %713 = vector.load %arg18[%c0_374, %c32_375] : memref<8x64xf32, #tpu.memory_space<vmem>>, vector<8x32xf32>
    tpu.vector_store %arg18[%c0_374, %c32_375], %709 {strides = array<i32>} : memref<8x64xf32, #tpu.memory_space<vmem>>, vector<8x32xf32>,
    %c3_376 = arith.constant 3 : index
    %c0_377 = arith.constant 0 : index
    %c0_378 = arith.constant 0 : index
    %714 = vector.load %arg16[%c3_376, %c0_377, %c0_378] : memref<8x8x32xf32, #tpu.memory_space<vmem>>, vector<1x8x32xf32>
    %715 = vector.shape_cast %714 : vector<1x8x32xf32> to vector<8x32xf32>
    %716 = vector.shape_cast %706 : vector<8x32xf32> to vector<1x8x32xf32>
    tpu.vector_store %arg16[%c3_376, %c0_377, %c0_378], %716 {strides = array<i32>} : memref<8x8x32xf32, #tpu.memory_space<vmem>>, vector<1x8x32xf32>,
    %c4_379 = arith.constant 4 : index
    %c0_380 = arith.constant 0 : index
    %c0_381 = arith.constant 0 : index
    %717 = vector.load %arg17[%c4_379, %c0_380, %c0_381] : memref<8x8x32xf32, #tpu.memory_space<vmem>>, vector<1x8x32xf32>
    %718 = vector.shape_cast %717 : vector<1x8x32xf32> to vector<8x32xf32>
    %719 = vector.shape_cast %709 : vector<8x32xf32> to vector<1x8x32xf32>
    tpu.vector_store %arg17[%c4_379, %c0_380, %c0_381], %719 {strides = array<i32>} : memref<8x8x32xf32, #tpu.memory_space<vmem>>, vector<1x8x32xf32>,
    %c0_382 = arith.constant 0 : index
    %c0_383 = arith.constant 0 : index
    %720 = vector.load %arg18[%c0_382, %c0_383] : memref<8x64xf32, #tpu.memory_space<vmem>>, vector<8x64xf32>
    %721 = arith.truncf %720 : vector<8x64xf32> to vector<8x64xbf16>
    %cst_384 = arith.constant dense<0.000000e+00> : vector<8x256xf32>
    %722 = tpu.matmul %721, %487, %cst_384 {dimension_numbers = #tpu.dot_dimension_numbers<[1], [0], [0], [1], [0, 0, 1, 1], [], []>} : vector<8x64xbf16>, vector<64x256xbf16>, vector<8x256xf32> -> vector<8x256xf32>
    %c4_385 = arith.constant 4 : index
    %c0_386 = arith.constant 0 : index
    %c0_387 = arith.constant 0 : index
    %723 = vector.load %arg15[%c4_385, %c0_386, %c0_387] : memref<8x8x256xf32, #tpu.memory_space<vmem>>, vector<1x8x256xf32>
    %724 = vector.shape_cast %723 : vector<1x8x256xf32> to vector<8x256xf32>
    %c3_388 = arith.constant 3 : index
    %c0_389 = arith.constant 0 : index
    %c0_390 = arith.constant 0 : index
    %725 = vector.load %arg15[%c3_388, %c0_389, %c0_390] : memref<8x8x256xf32, #tpu.memory_space<vmem>>, vector<1x8x256xf32>
    %726 = vector.shape_cast %725 : vector<1x8x256xf32> to vector<8x256xf32>
    %727 = vector.extract_strided_slice %722 {offsets = [0, 0], sizes = [8, 128], strides = [1, 1]} : vector<8x256xf32> to vector<8x128xf32>
    %728 = vector.extract_strided_slice %724 {offsets = [0, 0], sizes = [8, 128], strides = [1, 1]} : vector<8x256xf32> to vector<8x128xf32>
    %729 = arith.addf %727, %728 : vector<8x128xf32>
    %730 = vector.extract_strided_slice %722 {offsets = [0, 128], sizes = [8, 128], strides = [1, 1]} : vector<8x256xf32> to vector<8x128xf32>
    %731 = vector.extract_strided_slice %726 {offsets = [0, 128], sizes = [8, 128], strides = [1, 1]} : vector<8x256xf32> to vector<8x128xf32>
    %732 = arith.addf %730, %731 : vector<8x128xf32>
    %733 = vector.extract_strided_slice %729 {offsets = [0, 0], sizes = [8, 96], strides = [1, 1]} : vector<8x128xf32> to vector<8x96xf32>
    %734 = arith.negf %733 : vector<8x96xf32>
    %735 = math.exp %734 : vector<8x96xf32>
    %cst_391 = arith.constant 1.000000e+00 : f32
    %736 = vector.broadcast %cst_391 : f32 to vector<8x96xf32>
    %737 = arith.addf %736, %735 : vector<8x96xf32>
    %738 = arith.divf %736, %737 : vector<8x96xf32>
    %739 = vector.extract_strided_slice %732 {offsets = [0, 0], sizes = [8, 96], strides = [1, 1]} : vector<8x128xf32> to vector<8x96xf32>
    %740 = arith.negf %739 : vector<8x96xf32>
    %741 = math.exp %740 : vector<8x96xf32>
    %cst_392 = arith.constant 1.000000e+00 : f32
    %742 = vector.broadcast %cst_392 : f32 to vector<8x96xf32>
    %743 = arith.addf %742, %741 : vector<8x96xf32>
    %744 = arith.divf %742, %743 : vector<8x96xf32>
    %745 = vector.extract_strided_slice %729 {offsets = [0, 96], sizes = [8, 32], strides = [1, 1]} : vector<8x128xf32> to vector<8x32xf32>
    %746 = math.tanh %745 : vector<8x32xf32>
    %747 = vector.extract_strided_slice %732 {offsets = [0, 96], sizes = [8, 32], strides = [1, 1]} : vector<8x128xf32> to vector<8x32xf32>
    %748 = math.tanh %747 : vector<8x32xf32>
    %749 = vector.extract_strided_slice %738 {offsets = [0, 32], sizes = [8, 32], strides = [1, 1]} : vector<8x96xf32> to vector<8x32xf32>
    %c0_393 = arith.constant 0 : index
    %c0_394 = arith.constant 0 : index
    %750 = vector.load %arg19[%c0_393, %c0_394] : memref<8x64xf32, #tpu.memory_space<vmem>>, vector<8x32xf32>
    %751 = arith.mulf %749, %750 : vector<8x32xf32>
    %752 = vector.extract_strided_slice %738 {offsets = [0, 0], sizes = [8, 32], strides = [1, 1]} : vector<8x96xf32> to vector<8x32xf32>
    %753 = arith.mulf %752, %746 : vector<8x32xf32>
    %754 = arith.addf %751, %753 : vector<8x32xf32>
    %755 = vector.extract_strided_slice %744 {offsets = [0, 32], sizes = [8, 32], strides = [1, 1]} : vector<8x96xf32> to vector<8x32xf32>
    %c0_395 = arith.constant 0 : index
    %c32_396 = arith.constant 32 : index
    %756 = vector.load %arg19[%c0_395, %c32_396] : memref<8x64xf32, #tpu.memory_space<vmem>>, vector<8x32xf32>
    %757 = arith.mulf %755, %756 : vector<8x32xf32>
    %758 = vector.extract_strided_slice %744 {offsets = [0, 0], sizes = [8, 32], strides = [1, 1]} : vector<8x96xf32> to vector<8x32xf32>
    %759 = arith.mulf %758, %748 : vector<8x32xf32>
    %760 = arith.addf %757, %759 : vector<8x32xf32>
    %761 = vector.extract_strided_slice %738 {offsets = [0, 64], sizes = [8, 32], strides = [1, 1]} : vector<8x96xf32> to vector<8x32xf32>
    %762 = math.tanh %754 : vector<8x32xf32>
    %763 = arith.mulf %761, %762 : vector<8x32xf32>
    %764 = vector.extract_strided_slice %744 {offsets = [0, 64], sizes = [8, 32], strides = [1, 1]} : vector<8x96xf32> to vector<8x32xf32>
    %765 = math.tanh %760 : vector<8x32xf32>
    %766 = arith.mulf %764, %765 : vector<8x32xf32>
    %c0_397 = arith.constant 0 : index
    %c0_398 = arith.constant 0 : index
    %767 = vector.load %arg19[%c0_397, %c0_398] : memref<8x64xf32, #tpu.memory_space<vmem>>, vector<8x32xf32>
    tpu.vector_store %arg19[%c0_397, %c0_398], %754 {strides = array<i32>} : memref<8x64xf32, #tpu.memory_space<vmem>>, vector<8x32xf32>,
    %c0_399 = arith.constant 0 : index
    %c32_400 = arith.constant 32 : index
    %768 = vector.load %arg19[%c0_399, %c32_400] : memref<8x64xf32, #tpu.memory_space<vmem>>, vector<8x32xf32>
    tpu.vector_store %arg19[%c0_399, %c32_400], %760 {strides = array<i32>} : memref<8x64xf32, #tpu.memory_space<vmem>>, vector<8x32xf32>,
    %c0_401 = arith.constant 0 : index
    %c0_402 = arith.constant 0 : index
    %769 = vector.load %arg18[%c0_401, %c0_402] : memref<8x64xf32, #tpu.memory_space<vmem>>, vector<8x32xf32>
    tpu.vector_store %arg18[%c0_401, %c0_402], %763 {strides = array<i32>} : memref<8x64xf32, #tpu.memory_space<vmem>>, vector<8x32xf32>,
    %c0_403 = arith.constant 0 : index
    %c32_404 = arith.constant 32 : index
    %770 = vector.load %arg18[%c0_403, %c32_404] : memref<8x64xf32, #tpu.memory_space<vmem>>, vector<8x32xf32>
    tpu.vector_store %arg18[%c0_403, %c32_404], %766 {strides = array<i32>} : memref<8x64xf32, #tpu.memory_space<vmem>>, vector<8x32xf32>,
    %c4_405 = arith.constant 4 : index
    %c0_406 = arith.constant 0 : index
    %c0_407 = arith.constant 0 : index
    %771 = vector.load %arg16[%c4_405, %c0_406, %c0_407] : memref<8x8x32xf32, #tpu.memory_space<vmem>>, vector<1x8x32xf32>
    %772 = vector.shape_cast %771 : vector<1x8x32xf32> to vector<8x32xf32>
    %773 = vector.shape_cast %763 : vector<8x32xf32> to vector<1x8x32xf32>
    tpu.vector_store %arg16[%c4_405, %c0_406, %c0_407], %773 {strides = array<i32>} : memref<8x8x32xf32, #tpu.memory_space<vmem>>, vector<1x8x32xf32>,
    %c3_408 = arith.constant 3 : index
    %c0_409 = arith.constant 0 : index
    %c0_410 = arith.constant 0 : index
    %774 = vector.load %arg17[%c3_408, %c0_409, %c0_410] : memref<8x8x32xf32, #tpu.memory_space<vmem>>, vector<1x8x32xf32>
    %775 = vector.shape_cast %774 : vector<1x8x32xf32> to vector<8x32xf32>
    %776 = vector.shape_cast %766 : vector<8x32xf32> to vector<1x8x32xf32>
    tpu.vector_store %arg17[%c3_408, %c0_409, %c0_410], %776 {strides = array<i32>} : memref<8x8x32xf32, #tpu.memory_space<vmem>>, vector<1x8x32xf32>,
    %c0_411 = arith.constant 0 : index
    %c0_412 = arith.constant 0 : index
    %777 = vector.load %arg18[%c0_411, %c0_412] : memref<8x64xf32, #tpu.memory_space<vmem>>, vector<8x64xf32>
    %778 = arith.truncf %777 : vector<8x64xf32> to vector<8x64xbf16>
    %cst_413 = arith.constant dense<0.000000e+00> : vector<8x256xf32>
    %779 = tpu.matmul %778, %487, %cst_413 {dimension_numbers = #tpu.dot_dimension_numbers<[1], [0], [0], [1], [0, 0, 1, 1], [], []>} : vector<8x64xbf16>, vector<64x256xbf16>, vector<8x256xf32> -> vector<8x256xf32>
    %c5_414 = arith.constant 5 : index
    %c0_415 = arith.constant 0 : index
    %c0_416 = arith.constant 0 : index
    %780 = vector.load %arg15[%c5_414, %c0_415, %c0_416] : memref<8x8x256xf32, #tpu.memory_space<vmem>>, vector<1x8x256xf32>
    %781 = vector.shape_cast %780 : vector<1x8x256xf32> to vector<8x256xf32>
    %c2_417 = arith.constant 2 : index
    %c0_418 = arith.constant 0 : index
    %c0_419 = arith.constant 0 : index
    %782 = vector.load %arg15[%c2_417, %c0_418, %c0_419] : memref<8x8x256xf32, #tpu.memory_space<vmem>>, vector<1x8x256xf32>
    %783 = vector.shape_cast %782 : vector<1x8x256xf32> to vector<8x256xf32>
    %784 = vector.extract_strided_slice %779 {offsets = [0, 0], sizes = [8, 128], strides = [1, 1]} : vector<8x256xf32> to vector<8x128xf32>
    %785 = vector.extract_strided_slice %781 {offsets = [0, 0], sizes = [8, 128], strides = [1, 1]} : vector<8x256xf32> to vector<8x128xf32>
    %786 = arith.addf %784, %785 : vector<8x128xf32>
    %787 = vector.extract_strided_slice %779 {offsets = [0, 128], sizes = [8, 128], strides = [1, 1]} : vector<8x256xf32> to vector<8x128xf32>
    %788 = vector.extract_strided_slice %783 {offsets = [0, 128], sizes = [8, 128], strides = [1, 1]} : vector<8x256xf32> to vector<8x128xf32>
    %789 = arith.addf %787, %788 : vector<8x128xf32>
    %790 = vector.extract_strided_slice %786 {offsets = [0, 0], sizes = [8, 96], strides = [1, 1]} : vector<8x128xf32> to vector<8x96xf32>
    %791 = arith.negf %790 : vector<8x96xf32>
    %792 = math.exp %791 : vector<8x96xf32>
    %cst_420 = arith.constant 1.000000e+00 : f32
    %793 = vector.broadcast %cst_420 : f32 to vector<8x96xf32>
    %794 = arith.addf %793, %792 : vector<8x96xf32>
    %795 = arith.divf %793, %794 : vector<8x96xf32>
    %796 = vector.extract_strided_slice %789 {offsets = [0, 0], sizes = [8, 96], strides = [1, 1]} : vector<8x128xf32> to vector<8x96xf32>
    %797 = arith.negf %796 : vector<8x96xf32>
    %798 = math.exp %797 : vector<8x96xf32>
    %cst_421 = arith.constant 1.000000e+00 : f32
    %799 = vector.broadcast %cst_421 : f32 to vector<8x96xf32>
    %800 = arith.addf %799, %798 : vector<8x96xf32>
    %801 = arith.divf %799, %800 : vector<8x96xf32>
    %802 = vector.extract_strided_slice %786 {offsets = [0, 96], sizes = [8, 32], strides = [1, 1]} : vector<8x128xf32> to vector<8x32xf32>
    %803 = math.tanh %802 : vector<8x32xf32>
    %804 = vector.extract_strided_slice %789 {offsets = [0, 96], sizes = [8, 32], strides = [1, 1]} : vector<8x128xf32> to vector<8x32xf32>
    %805 = math.tanh %804 : vector<8x32xf32>
    %806 = vector.extract_strided_slice %795 {offsets = [0, 32], sizes = [8, 32], strides = [1, 1]} : vector<8x96xf32> to vector<8x32xf32>
    %c0_422 = arith.constant 0 : index
    %c0_423 = arith.constant 0 : index
    %807 = vector.load %arg19[%c0_422, %c0_423] : memref<8x64xf32, #tpu.memory_space<vmem>>, vector<8x32xf32>
    %808 = arith.mulf %806, %807 : vector<8x32xf32>
    %809 = vector.extract_strided_slice %795 {offsets = [0, 0], sizes = [8, 32], strides = [1, 1]} : vector<8x96xf32> to vector<8x32xf32>
    %810 = arith.mulf %809, %803 : vector<8x32xf32>
    %811 = arith.addf %808, %810 : vector<8x32xf32>
    %812 = vector.extract_strided_slice %801 {offsets = [0, 32], sizes = [8, 32], strides = [1, 1]} : vector<8x96xf32> to vector<8x32xf32>
    %c0_424 = arith.constant 0 : index
    %c32_425 = arith.constant 32 : index
    %813 = vector.load %arg19[%c0_424, %c32_425] : memref<8x64xf32, #tpu.memory_space<vmem>>, vector<8x32xf32>
    %814 = arith.mulf %812, %813 : vector<8x32xf32>
    %815 = vector.extract_strided_slice %801 {offsets = [0, 0], sizes = [8, 32], strides = [1, 1]} : vector<8x96xf32> to vector<8x32xf32>
    %816 = arith.mulf %815, %805 : vector<8x32xf32>
    %817 = arith.addf %814, %816 : vector<8x32xf32>
    %818 = vector.extract_strided_slice %795 {offsets = [0, 64], sizes = [8, 32], strides = [1, 1]} : vector<8x96xf32> to vector<8x32xf32>
    %819 = math.tanh %811 : vector<8x32xf32>
    %820 = arith.mulf %818, %819 : vector<8x32xf32>
    %821 = vector.extract_strided_slice %801 {offsets = [0, 64], sizes = [8, 32], strides = [1, 1]} : vector<8x96xf32> to vector<8x32xf32>
    %822 = math.tanh %817 : vector<8x32xf32>
    %823 = arith.mulf %821, %822 : vector<8x32xf32>
    %c0_426 = arith.constant 0 : index
    %c0_427 = arith.constant 0 : index
    %824 = vector.load %arg19[%c0_426, %c0_427] : memref<8x64xf32, #tpu.memory_space<vmem>>, vector<8x32xf32>
    tpu.vector_store %arg19[%c0_426, %c0_427], %811 {strides = array<i32>} : memref<8x64xf32, #tpu.memory_space<vmem>>, vector<8x32xf32>,
    %c0_428 = arith.constant 0 : index
    %c32_429 = arith.constant 32 : index
    %825 = vector.load %arg19[%c0_428, %c32_429] : memref<8x64xf32, #tpu.memory_space<vmem>>, vector<8x32xf32>
    tpu.vector_store %arg19[%c0_428, %c32_429], %817 {strides = array<i32>} : memref<8x64xf32, #tpu.memory_space<vmem>>, vector<8x32xf32>,
    %c0_430 = arith.constant 0 : index
    %c0_431 = arith.constant 0 : index
    %826 = vector.load %arg18[%c0_430, %c0_431] : memref<8x64xf32, #tpu.memory_space<vmem>>, vector<8x32xf32>
    tpu.vector_store %arg18[%c0_430, %c0_431], %820 {strides = array<i32>} : memref<8x64xf32, #tpu.memory_space<vmem>>, vector<8x32xf32>,
    %c0_432 = arith.constant 0 : index
    %c32_433 = arith.constant 32 : index
    %827 = vector.load %arg18[%c0_432, %c32_433] : memref<8x64xf32, #tpu.memory_space<vmem>>, vector<8x32xf32>
    tpu.vector_store %arg18[%c0_432, %c32_433], %823 {strides = array<i32>} : memref<8x64xf32, #tpu.memory_space<vmem>>, vector<8x32xf32>,
    %c5_434 = arith.constant 5 : index
    %c0_435 = arith.constant 0 : index
    %c0_436 = arith.constant 0 : index
    %828 = vector.load %arg16[%c5_434, %c0_435, %c0_436] : memref<8x8x32xf32, #tpu.memory_space<vmem>>, vector<1x8x32xf32>
    %829 = vector.shape_cast %828 : vector<1x8x32xf32> to vector<8x32xf32>
    %830 = vector.shape_cast %820 : vector<8x32xf32> to vector<1x8x32xf32>
    tpu.vector_store %arg16[%c5_434, %c0_435, %c0_436], %830 {strides = array<i32>} : memref<8x8x32xf32, #tpu.memory_space<vmem>>, vector<1x8x32xf32>,
    %c2_437 = arith.constant 2 : index
    %c0_438 = arith.constant 0 : index
    %c0_439 = arith.constant 0 : index
    %831 = vector.load %arg17[%c2_437, %c0_438, %c0_439] : memref<8x8x32xf32, #tpu.memory_space<vmem>>, vector<1x8x32xf32>
    %832 = vector.shape_cast %831 : vector<1x8x32xf32> to vector<8x32xf32>
    %833 = vector.shape_cast %823 : vector<8x32xf32> to vector<1x8x32xf32>
    tpu.vector_store %arg17[%c2_437, %c0_438, %c0_439], %833 {strides = array<i32>} : memref<8x8x32xf32, #tpu.memory_space<vmem>>, vector<1x8x32xf32>,
    %c0_440 = arith.constant 0 : index
    %c0_441 = arith.constant 0 : index
    %834 = vector.load %arg18[%c0_440, %c0_441] : memref<8x64xf32, #tpu.memory_space<vmem>>, vector<8x64xf32>
    %835 = arith.truncf %834 : vector<8x64xf32> to vector<8x64xbf16>
    %cst_442 = arith.constant dense<0.000000e+00> : vector<8x256xf32>
    %836 = tpu.matmul %835, %487, %cst_442 {dimension_numbers = #tpu.dot_dimension_numbers<[1], [0], [0], [1], [0, 0, 1, 1], [], []>} : vector<8x64xbf16>, vector<64x256xbf16>, vector<8x256xf32> -> vector<8x256xf32>
    %c6_443 = arith.constant 6 : index
    %c0_444 = arith.constant 0 : index
    %c0_445 = arith.constant 0 : index
    %837 = vector.load %arg15[%c6_443, %c0_444, %c0_445] : memref<8x8x256xf32, #tpu.memory_space<vmem>>, vector<1x8x256xf32>
    %838 = vector.shape_cast %837 : vector<1x8x256xf32> to vector<8x256xf32>
    %c1_446 = arith.constant 1 : index
    %c0_447 = arith.constant 0 : index
    %c0_448 = arith.constant 0 : index
    %839 = vector.load %arg15[%c1_446, %c0_447, %c0_448] : memref<8x8x256xf32, #tpu.memory_space<vmem>>, vector<1x8x256xf32>
    %840 = vector.shape_cast %839 : vector<1x8x256xf32> to vector<8x256xf32>
    %841 = vector.extract_strided_slice %836 {offsets = [0, 0], sizes = [8, 128], strides = [1, 1]} : vector<8x256xf32> to vector<8x128xf32>
    %842 = vector.extract_strided_slice %838 {offsets = [0, 0], sizes = [8, 128], strides = [1, 1]} : vector<8x256xf32> to vector<8x128xf32>
    %843 = arith.addf %841, %842 : vector<8x128xf32>
    %844 = vector.extract_strided_slice %836 {offsets = [0, 128], sizes = [8, 128], strides = [1, 1]} : vector<8x256xf32> to vector<8x128xf32>
    %845 = vector.extract_strided_slice %840 {offsets = [0, 128], sizes = [8, 128], strides = [1, 1]} : vector<8x256xf32> to vector<8x128xf32>
    %846 = arith.addf %844, %845 : vector<8x128xf32>
    %847 = vector.extract_strided_slice %843 {offsets = [0, 0], sizes = [8, 96], strides = [1, 1]} : vector<8x128xf32> to vector<8x96xf32>
    %848 = arith.negf %847 : vector<8x96xf32>
    %849 = math.exp %848 : vector<8x96xf32>
    %cst_449 = arith.constant 1.000000e+00 : f32
    %850 = vector.broadcast %cst_449 : f32 to vector<8x96xf32>
    %851 = arith.addf %850, %849 : vector<8x96xf32>
    %852 = arith.divf %850, %851 : vector<8x96xf32>
    %853 = vector.extract_strided_slice %846 {offsets = [0, 0], sizes = [8, 96], strides = [1, 1]} : vector<8x128xf32> to vector<8x96xf32>
    %854 = arith.negf %853 : vector<8x96xf32>
    %855 = math.exp %854 : vector<8x96xf32>
    %cst_450 = arith.constant 1.000000e+00 : f32
    %856 = vector.broadcast %cst_450 : f32 to vector<8x96xf32>
    %857 = arith.addf %856, %855 : vector<8x96xf32>
    %858 = arith.divf %856, %857 : vector<8x96xf32>
    %859 = vector.extract_strided_slice %843 {offsets = [0, 96], sizes = [8, 32], strides = [1, 1]} : vector<8x128xf32> to vector<8x32xf32>
    %860 = math.tanh %859 : vector<8x32xf32>
    %861 = vector.extract_strided_slice %846 {offsets = [0, 96], sizes = [8, 32], strides = [1, 1]} : vector<8x128xf32> to vector<8x32xf32>
    %862 = math.tanh %861 : vector<8x32xf32>
    %863 = vector.extract_strided_slice %852 {offsets = [0, 32], sizes = [8, 32], strides = [1, 1]} : vector<8x96xf32> to vector<8x32xf32>
    %c0_451 = arith.constant 0 : index
    %c0_452 = arith.constant 0 : index
    %864 = vector.load %arg19[%c0_451, %c0_452] : memref<8x64xf32, #tpu.memory_space<vmem>>, vector<8x32xf32>
    %865 = arith.mulf %863, %864 : vector<8x32xf32>
    %866 = vector.extract_strided_slice %852 {offsets = [0, 0], sizes = [8, 32], strides = [1, 1]} : vector<8x96xf32> to vector<8x32xf32>
    %867 = arith.mulf %866, %860 : vector<8x32xf32>
    %868 = arith.addf %865, %867 : vector<8x32xf32>
    %869 = vector.extract_strided_slice %858 {offsets = [0, 32], sizes = [8, 32], strides = [1, 1]} : vector<8x96xf32> to vector<8x32xf32>
    %c0_453 = arith.constant 0 : index
    %c32_454 = arith.constant 32 : index
    %870 = vector.load %arg19[%c0_453, %c32_454] : memref<8x64xf32, #tpu.memory_space<vmem>>, vector<8x32xf32>
    %871 = arith.mulf %869, %870 : vector<8x32xf32>
    %872 = vector.extract_strided_slice %858 {offsets = [0, 0], sizes = [8, 32], strides = [1, 1]} : vector<8x96xf32> to vector<8x32xf32>
    %873 = arith.mulf %872, %862 : vector<8x32xf32>
    %874 = arith.addf %871, %873 : vector<8x32xf32>
    %875 = vector.extract_strided_slice %852 {offsets = [0, 64], sizes = [8, 32], strides = [1, 1]} : vector<8x96xf32> to vector<8x32xf32>
    %876 = math.tanh %868 : vector<8x32xf32>
    %877 = arith.mulf %875, %876 : vector<8x32xf32>
    %878 = vector.extract_strided_slice %858 {offsets = [0, 64], sizes = [8, 32], strides = [1, 1]} : vector<8x96xf32> to vector<8x32xf32>
    %879 = math.tanh %874 : vector<8x32xf32>
    %880 = arith.mulf %878, %879 : vector<8x32xf32>
    %c0_455 = arith.constant 0 : index
    %c0_456 = arith.constant 0 : index
    %881 = vector.load %arg19[%c0_455, %c0_456] : memref<8x64xf32, #tpu.memory_space<vmem>>, vector<8x32xf32>
    tpu.vector_store %arg19[%c0_455, %c0_456], %868 {strides = array<i32>} : memref<8x64xf32, #tpu.memory_space<vmem>>, vector<8x32xf32>,
    %c0_457 = arith.constant 0 : index
    %c32_458 = arith.constant 32 : index
    %882 = vector.load %arg19[%c0_457, %c32_458] : memref<8x64xf32, #tpu.memory_space<vmem>>, vector<8x32xf32>
    tpu.vector_store %arg19[%c0_457, %c32_458], %874 {strides = array<i32>} : memref<8x64xf32, #tpu.memory_space<vmem>>, vector<8x32xf32>,
    %c0_459 = arith.constant 0 : index
    %c0_460 = arith.constant 0 : index
    %883 = vector.load %arg18[%c0_459, %c0_460] : memref<8x64xf32, #tpu.memory_space<vmem>>, vector<8x32xf32>
    tpu.vector_store %arg18[%c0_459, %c0_460], %877 {strides = array<i32>} : memref<8x64xf32, #tpu.memory_space<vmem>>, vector<8x32xf32>,
    %c0_461 = arith.constant 0 : index
    %c32_462 = arith.constant 32 : index
    %884 = vector.load %arg18[%c0_461, %c32_462] : memref<8x64xf32, #tpu.memory_space<vmem>>, vector<8x32xf32>
    tpu.vector_store %arg18[%c0_461, %c32_462], %880 {strides = array<i32>} : memref<8x64xf32, #tpu.memory_space<vmem>>, vector<8x32xf32>,
    %c6_463 = arith.constant 6 : index
    %c0_464 = arith.constant 0 : index
    %c0_465 = arith.constant 0 : index
    %885 = vector.load %arg16[%c6_463, %c0_464, %c0_465] : memref<8x8x32xf32, #tpu.memory_space<vmem>>, vector<1x8x32xf32>
    %886 = vector.shape_cast %885 : vector<1x8x32xf32> to vector<8x32xf32>
    %887 = vector.shape_cast %877 : vector<8x32xf32> to vector<1x8x32xf32>
    tpu.vector_store %arg16[%c6_463, %c0_464, %c0_465], %887 {strides = array<i32>} : memref<8x8x32xf32, #tpu.memory_space<vmem>>, vector<1x8x32xf32>,
    %c1_466 = arith.constant 1 : index
    %c0_467 = arith.constant 0 : index
    %c0_468 = arith.constant 0 : index
    %888 = vector.load %arg17[%c1_466, %c0_467, %c0_468] : memref<8x8x32xf32, #tpu.memory_space<vmem>>, vector<1x8x32xf32>
    %889 = vector.shape_cast %888 : vector<1x8x32xf32> to vector<8x32xf32>
    %890 = vector.shape_cast %880 : vector<8x32xf32> to vector<1x8x32xf32>
    tpu.vector_store %arg17[%c1_466, %c0_467, %c0_468], %890 {strides = array<i32>} : memref<8x8x32xf32, #tpu.memory_space<vmem>>, vector<1x8x32xf32>,
    %c0_469 = arith.constant 0 : index
    %c0_470 = arith.constant 0 : index
    %891 = vector.load %arg18[%c0_469, %c0_470] : memref<8x64xf32, #tpu.memory_space<vmem>>, vector<8x64xf32>
    %892 = arith.truncf %891 : vector<8x64xf32> to vector<8x64xbf16>
    %cst_471 = arith.constant dense<0.000000e+00> : vector<8x256xf32>
    %893 = tpu.matmul %892, %487, %cst_471 {dimension_numbers = #tpu.dot_dimension_numbers<[1], [0], [0], [1], [0, 0, 1, 1], [], []>} : vector<8x64xbf16>, vector<64x256xbf16>, vector<8x256xf32> -> vector<8x256xf32>
    %c7_472 = arith.constant 7 : index
    %c0_473 = arith.constant 0 : index
    %c0_474 = arith.constant 0 : index
    %894 = vector.load %arg15[%c7_472, %c0_473, %c0_474] : memref<8x8x256xf32, #tpu.memory_space<vmem>>, vector<1x8x256xf32>
    %895 = vector.shape_cast %894 : vector<1x8x256xf32> to vector<8x256xf32>
    %c0_475 = arith.constant 0 : index
    %c0_476 = arith.constant 0 : index
    %c0_477 = arith.constant 0 : index
    %896 = vector.load %arg15[%c0_475, %c0_476, %c0_477] : memref<8x8x256xf32, #tpu.memory_space<vmem>>, vector<1x8x256xf32>
    %897 = vector.shape_cast %896 : vector<1x8x256xf32> to vector<8x256xf32>
    %898 = vector.extract_strided_slice %893 {offsets = [0, 0], sizes = [8, 128], strides = [1, 1]} : vector<8x256xf32> to vector<8x128xf32>
    %899 = vector.extract_strided_slice %895 {offsets = [0, 0], sizes = [8, 128], strides = [1, 1]} : vector<8x256xf32> to vector<8x128xf32>
    %900 = arith.addf %898, %899 : vector<8x128xf32>
    %901 = vector.extract_strided_slice %893 {offsets = [0, 128], sizes = [8, 128], strides = [1, 1]} : vector<8x256xf32> to vector<8x128xf32>
    %902 = vector.extract_strided_slice %897 {offsets = [0, 128], sizes = [8, 128], strides = [1, 1]} : vector<8x256xf32> to vector<8x128xf32>
    %903 = arith.addf %901, %902 : vector<8x128xf32>
    %904 = vector.extract_strided_slice %900 {offsets = [0, 0], sizes = [8, 96], strides = [1, 1]} : vector<8x128xf32> to vector<8x96xf32>
    %905 = arith.negf %904 : vector<8x96xf32>
    %906 = math.exp %905 : vector<8x96xf32>
    %cst_478 = arith.constant 1.000000e+00 : f32
    %907 = vector.broadcast %cst_478 : f32 to vector<8x96xf32>
    %908 = arith.addf %907, %906 : vector<8x96xf32>
    %909 = arith.divf %907, %908 : vector<8x96xf32>
    %910 = vector.extract_strided_slice %903 {offsets = [0, 0], sizes = [8, 96], strides = [1, 1]} : vector<8x128xf32> to vector<8x96xf32>
    %911 = arith.negf %910 : vector<8x96xf32>
    %912 = math.exp %911 : vector<8x96xf32>
    %cst_479 = arith.constant 1.000000e+00 : f32
    %913 = vector.broadcast %cst_479 : f32 to vector<8x96xf32>
    %914 = arith.addf %913, %912 : vector<8x96xf32>
    %915 = arith.divf %913, %914 : vector<8x96xf32>
    %916 = vector.extract_strided_slice %900 {offsets = [0, 96], sizes = [8, 32], strides = [1, 1]} : vector<8x128xf32> to vector<8x32xf32>
    %917 = math.tanh %916 : vector<8x32xf32>
    %918 = vector.extract_strided_slice %903 {offsets = [0, 96], sizes = [8, 32], strides = [1, 1]} : vector<8x128xf32> to vector<8x32xf32>
    %919 = math.tanh %918 : vector<8x32xf32>
    %920 = vector.extract_strided_slice %909 {offsets = [0, 32], sizes = [8, 32], strides = [1, 1]} : vector<8x96xf32> to vector<8x32xf32>
    %c0_480 = arith.constant 0 : index
    %c0_481 = arith.constant 0 : index
    %921 = vector.load %arg19[%c0_480, %c0_481] : memref<8x64xf32, #tpu.memory_space<vmem>>, vector<8x32xf32>
    %922 = arith.mulf %920, %921 : vector<8x32xf32>
    %923 = vector.extract_strided_slice %909 {offsets = [0, 0], sizes = [8, 32], strides = [1, 1]} : vector<8x96xf32> to vector<8x32xf32>
    %924 = arith.mulf %923, %917 : vector<8x32xf32>
    %925 = arith.addf %922, %924 : vector<8x32xf32>
    %926 = vector.extract_strided_slice %915 {offsets = [0, 32], sizes = [8, 32], strides = [1, 1]} : vector<8x96xf32> to vector<8x32xf32>
    %c0_482 = arith.constant 0 : index
    %c32_483 = arith.constant 32 : index
    %927 = vector.load %arg19[%c0_482, %c32_483] : memref<8x64xf32, #tpu.memory_space<vmem>>, vector<8x32xf32>
    %928 = arith.mulf %926, %927 : vector<8x32xf32>
    %929 = vector.extract_strided_slice %915 {offsets = [0, 0], sizes = [8, 32], strides = [1, 1]} : vector<8x96xf32> to vector<8x32xf32>
    %930 = arith.mulf %929, %919 : vector<8x32xf32>
    %931 = arith.addf %928, %930 : vector<8x32xf32>
    %932 = vector.extract_strided_slice %909 {offsets = [0, 64], sizes = [8, 32], strides = [1, 1]} : vector<8x96xf32> to vector<8x32xf32>
    %933 = math.tanh %925 : vector<8x32xf32>
    %934 = arith.mulf %932, %933 : vector<8x32xf32>
    %935 = vector.extract_strided_slice %915 {offsets = [0, 64], sizes = [8, 32], strides = [1, 1]} : vector<8x96xf32> to vector<8x32xf32>
    %936 = math.tanh %931 : vector<8x32xf32>
    %937 = arith.mulf %935, %936 : vector<8x32xf32>
    %c0_484 = arith.constant 0 : index
    %c0_485 = arith.constant 0 : index
    %938 = vector.load %arg19[%c0_484, %c0_485] : memref<8x64xf32, #tpu.memory_space<vmem>>, vector<8x32xf32>
    tpu.vector_store %arg19[%c0_484, %c0_485], %925 {strides = array<i32>} : memref<8x64xf32, #tpu.memory_space<vmem>>, vector<8x32xf32>,
    %c0_486 = arith.constant 0 : index
    %c32_487 = arith.constant 32 : index
    %939 = vector.load %arg19[%c0_486, %c32_487] : memref<8x64xf32, #tpu.memory_space<vmem>>, vector<8x32xf32>
    tpu.vector_store %arg19[%c0_486, %c32_487], %931 {strides = array<i32>} : memref<8x64xf32, #tpu.memory_space<vmem>>, vector<8x32xf32>,
    %c0_488 = arith.constant 0 : index
    %c0_489 = arith.constant 0 : index
    %940 = vector.load %arg18[%c0_488, %c0_489] : memref<8x64xf32, #tpu.memory_space<vmem>>, vector<8x32xf32>
    tpu.vector_store %arg18[%c0_488, %c0_489], %934 {strides = array<i32>} : memref<8x64xf32, #tpu.memory_space<vmem>>, vector<8x32xf32>,
    %c0_490 = arith.constant 0 : index
    %c32_491 = arith.constant 32 : index
    %941 = vector.load %arg18[%c0_490, %c32_491] : memref<8x64xf32, #tpu.memory_space<vmem>>, vector<8x32xf32>
    tpu.vector_store %arg18[%c0_490, %c32_491], %937 {strides = array<i32>} : memref<8x64xf32, #tpu.memory_space<vmem>>, vector<8x32xf32>,
    %c7_492 = arith.constant 7 : index
    %c0_493 = arith.constant 0 : index
    %c0_494 = arith.constant 0 : index
    %942 = vector.load %arg16[%c7_492, %c0_493, %c0_494] : memref<8x8x32xf32, #tpu.memory_space<vmem>>, vector<1x8x32xf32>
    %943 = vector.shape_cast %942 : vector<1x8x32xf32> to vector<8x32xf32>
    %944 = vector.shape_cast %934 : vector<8x32xf32> to vector<1x8x32xf32>
    tpu.vector_store %arg16[%c7_492, %c0_493, %c0_494], %944 {strides = array<i32>} : memref<8x8x32xf32, #tpu.memory_space<vmem>>, vector<1x8x32xf32>,
    %c0_495 = arith.constant 0 : index
    %c0_496 = arith.constant 0 : index
    %c0_497 = arith.constant 0 : index
    %945 = vector.load %arg17[%c0_495, %c0_496, %c0_497] : memref<8x8x32xf32, #tpu.memory_space<vmem>>, vector<1x8x32xf32>
    %946 = vector.shape_cast %945 : vector<1x8x32xf32> to vector<8x32xf32>
    %947 = vector.shape_cast %937 : vector<8x32xf32> to vector<1x8x32xf32>
    tpu.vector_store %arg17[%c0_495, %c0_496, %c0_497], %947 {strides = array<i32>} : memref<8x8x32xf32, #tpu.memory_space<vmem>>, vector<1x8x32xf32>,
    %c0_498 = arith.constant 0 : index
    %c0_499 = arith.constant 0 : index
    %c0_500 = arith.constant 0 : index
    %948 = vector.load %arg16[%c0_498, %c0_499, %c0_500] : memref<8x8x32xf32, #tpu.memory_space<vmem>>, vector<8x8x32xf32>
    %949 = vector.shape_cast %948 : vector<8x8x32xf32> to vector<64x32xf32>
    %950 = arith.truncf %949 : vector<64x32xf32> to vector<64x32xbf16>
    %c0_501 = arith.constant 0 : index
    %c0_502 = arith.constant 0 : index
    %c0_503 = arith.constant 0 : index
    %951 = vector.load %arg17[%c0_501, %c0_502, %c0_503] : memref<8x8x32xf32, #tpu.memory_space<vmem>>, vector<8x8x32xf32>
    %952 = vector.shape_cast %951 : vector<8x8x32xf32> to vector<64x32xf32>
    %953 = arith.truncf %952 : vector<64x32xf32> to vector<64x32xbf16>
    %c0_504 = arith.constant 0 : index
    %c0_505 = arith.constant 0 : index
    %954 = vector.load %arg9[%c0_504, %c0_505] : memref<32x32xbf16, #tpu.memory_space<vmem>>, vector<32x32xbf16>
    %cst_506 = arith.constant dense<0.000000e+00> : vector<64x32xf32>
    %955 = tpu.matmul %950, %954, %cst_506 {dimension_numbers = #tpu.dot_dimension_numbers<[1], [0], [0], [1], [0, 0, 1, 1], [], []>} : vector<64x32xbf16>, vector<32x32xbf16>, vector<64x32xf32> -> vector<64x32xf32>
    %c0_507 = arith.constant 0 : index
    %c0_508 = arith.constant 0 : index
    %956 = vector.load %arg10[%c0_507, %c0_508] : memref<32x32xbf16, #tpu.memory_space<vmem>>, vector<32x32xbf16>
    %cst_509 = arith.constant dense<0.000000e+00> : vector<64x32xf32>
    %957 = tpu.matmul %953, %956, %cst_509 {dimension_numbers = #tpu.dot_dimension_numbers<[1], [0], [0], [1], [0, 0, 1, 1], [], []>} : vector<64x32xbf16>, vector<32x32xbf16>, vector<64x32xf32> -> vector<64x32xf32>
    %958 = arith.addf %955, %957 : vector<64x32xf32>
    %c0_510 = arith.constant 0 : index
    %c0_511 = arith.constant 0 : index
    %959 = vector.load %arg11[%c0_510, %c0_511] : memref<1x32xf32, #tpu.memory_space<vmem>>, vector<1x32xf32>
    %960 = vector.broadcast %959 : vector<1x32xf32> to vector<64x32xf32>
    %961 = arith.addf %958, %960 : vector<64x32xf32>
    %cst_512 = arith.constant 0.000000e+00 : f32
    %962 = vector.broadcast %cst_512 : f32 to vector<64x32xf32>
    %963 = arith.maximumf %961, %962 : vector<64x32xf32>
    %c0_513 = arith.constant 0 : index
    %c0_514 = arith.constant 0 : index
    %964 = vector.load %arg12[%c0_513, %c0_514] : memref<1x32xf32, #tpu.memory_space<vmem>>, vector<1x32xf32>
    %965 = vector.broadcast %964 : vector<1x32xf32> to vector<64x32xf32>
    %966 = arith.mulf %963, %965 : vector<64x32xf32>
    %cst_515 = arith.constant dense<0.000000e+00> : vector<64xf32>
    %967 = vector.multi_reduction <add>, %966, %cst_515 [1] : vector<64x32xf32> to vector<64xf32>
    %968 = vector.shape_cast %967 : vector<64xf32> to vector<64x1xf32>
    %c0_516 = arith.constant 0 : index
    %c0_517 = arith.constant 0 : index
    %969 = vector.load %arg13[%c0_516, %c0_517] : memref<1x1xf32, #tpu.memory_space<vmem>>, vector<1x1xf32>
    %970 = vector.broadcast %969 : vector<1x1xf32> to vector<64x1xf32>
    %971 = arith.addf %968, %970 : vector<64x1xf32>
    %972 = arith.negf %971 : vector<64x1xf32>
    %973 = math.exp %972 : vector<64x1xf32>
    %cst_518 = arith.constant 1.000000e+00 : f32
    %974 = vector.broadcast %cst_518 : f32 to vector<64x1xf32>
    %975 = arith.addf %974, %973 : vector<64x1xf32>
    %976 = arith.divf %974, %975 : vector<64x1xf32>
    %977 = vector.shape_cast %976 : vector<64x1xf32> to vector<8x8x1xf32>
    %c0_519 = arith.constant 0 : index
    %c0_520 = arith.constant 0 : index
    %c0_521 = arith.constant 0 : index
    %978 = vector.load %arg14[%c0_519, %c0_520, %c0_521] : memref<8x8x1xf32, #tpu.memory_space<vmem>>, vector<8x8x1xf32>
    tpu.vector_store %arg14[%c0_519, %c0_520, %c0_521], %977 {strides = array<i32>} : memref<8x8x1xf32, #tpu.memory_space<vmem>>, vector<8x8x1xf32>,
    return
  }
  func.func @transform_0(%arg0: i32) -> (i32, i32, i32) {
    %c0_i32 = arith.constant 0 : i32
    %c0_i32_0 = arith.constant 0 : i32
    %c0_i32_1 = arith.constant 0 : i32
    return %c0_i32, %arg0, %c0_i32_0 : i32, i32, i32
  }
  func.func @transform_1(%arg0: i32) -> (i32, i32) {
    %c0_i32 = arith.constant 0 : i32
    %c0_i32_0 = arith.constant 0 : i32
    %c0_i32_1 = arith.constant 0 : i32
    return %c0_i32, %c0_i32_0 : i32, i32
  }
  func.func @transform_2(%arg0: i32) -> (i32, i32) {
    %c0_i32 = arith.constant 0 : i32
    %c0_i32_0 = arith.constant 0 : i32
    %c0_i32_1 = arith.constant 0 : i32
    return %c0_i32, %c0_i32_0 : i32, i32
  }
  func.func @transform_3(%arg0: i32) -> (i32, i32) {
    %c0_i32 = arith.constant 0 : i32
    %c0_i32_0 = arith.constant 0 : i32
    %c0_i32_1 = arith.constant 0 : i32
    return %c0_i32, %c0_i32_0 : i32, i32
  }
  func.func @transform_4(%arg0: i32) -> (i32, i32) {
    %c0_i32 = arith.constant 0 : i32
    %c0_i32_0 = arith.constant 0 : i32
    %c0_i32_1 = arith.constant 0 : i32
    return %c0_i32, %c0_i32_0 : i32, i32
  }
  func.func @transform_5(%arg0: i32) -> (i32, i32) {
    %c0_i32 = arith.constant 0 : i32
    %c0_i32_0 = arith.constant 0 : i32
    %c0_i32_1 = arith.constant 0 : i32
    return %c0_i32, %c0_i32_0 : i32, i32
  }
  func.func @transform_6(%arg0: i32) -> (i32, i32) {
    %c0_i32 = arith.constant 0 : i32
    %c0_i32_0 = arith.constant 0 : i32
    %c0_i32_1 = arith.constant 0 : i32
    return %c0_i32, %c0_i32_0 : i32, i32
  }
  func.func @transform_7(%arg0: i32) -> (i32, i32) {
    %c0_i32 = arith.constant 0 : i32
    %c0_i32_0 = arith.constant 0 : i32
    %c0_i32_1 = arith.constant 0 : i32
    return %c0_i32, %c0_i32_0 : i32, i32
  }
  func.func @transform_8(%arg0: i32) -> (i32, i32) {
    %c0_i32 = arith.constant 0 : i32
    %c0_i32_0 = arith.constant 0 : i32
    %c0_i32_1 = arith.constant 0 : i32
    return %c0_i32, %c0_i32_0 : i32, i32
  }
  func.func @transform_9(%arg0: i32) -> (i32, i32) {
    %c0_i32 = arith.constant 0 : i32
    %c0_i32_0 = arith.constant 0 : i32
    %c0_i32_1 = arith.constant 0 : i32
    return %c0_i32, %c0_i32_0 : i32, i32
  }
  func.func @transform_10(%arg0: i32) -> (i32, i32) {
    %c0_i32 = arith.constant 0 : i32
    %c0_i32_0 = arith.constant 0 : i32
    %c0_i32_1 = arith.constant 0 : i32
    return %c0_i32, %c0_i32_0 : i32, i32
  }
  func.func @transform_11(%arg0: i32) -> (i32, i32) {
    %c0_i32 = arith.constant 0 : i32
    %c0_i32_0 = arith.constant 0 : i32
    %c0_i32_1 = arith.constant 0 : i32
    return %c0_i32, %c0_i32_0 : i32, i32
  }
  func.func @transform_12(%arg0: i32) -> (i32, i32) {
    %c0_i32 = arith.constant 0 : i32
    %c0_i32_0 = arith.constant 0 : i32
    %c0_i32_1 = arith.constant 0 : i32
    return %c0_i32, %c0_i32_0 : i32, i32
  }
  func.func @transform_13(%arg0: i32) -> (i32, i32, i32) {
    %c0_i32 = arith.constant 0 : i32
    %c0_i32_0 = arith.constant 0 : i32
    %c0_i32_1 = arith.constant 0 : i32
    return %c0_i32, %arg0, %c0_i32_0 : i32, i32, i32
  }
}

</mosaic_0001>

<llo_original>
// kernel: lstm_silence_classifier.1
$region0: #{lstm_silence_classifier.1}
  #allocation0 [shape = 'u32[]', space=smem, size = 0x4, offset = 0x4, fixed_abs, tag = 'smem constant byte address 0x4 - core index']
  #allocation1 [shape = 'u32[72,128]{1,0:T(1,128)}', space=vmem, size = 0x9000, scoped, tag = 'internal scratch']
  #allocation2 [shape = 'f32[8,8,256]{2,1,0:T(8,128)}', space=vmem, size = 0x10000, scoped, tag = 'scratch operand']
  #allocation3 [shape = 'f32[8,8,32]{2,1,0:T(8,128)}', space=vmem, size = 0x8000, scoped, tag = 'scratch operand']
  #allocation4 [shape = 'f32[8,8,32]{2,1,0:T(8,128)}', space=vmem, size = 0x8000, scoped, tag = 'scratch operand']
  #allocation5 [shape = 'f32[8,64]{1,0:T(8,128)}', space=vmem, size = 0x1000, scoped, tag = 'scratch operand']
  #allocation6 [shape = 'f32[8,64]{1,0:T(8,128)}', space=vmem, size = 0x1000, scoped, tag = 'scratch operand']
  #allocation7 [shape = 'f32[1,1]{1,0:T(1,128)S(1)}', space=vmem, size = 0x200, scoped, tag = 'scoped memory for lstm_silence_classifier.1']
  %s0 = inlined_call_operand.vmem [shape: f32[8,8,16], index: 0, kind: input, shape index: {}]
  %s1 = inlined_call_operand.vmem [shape: bf16[16,256], index: 1, kind: input, shape index: {}]
  %s2 = inlined_call_operand.vmem [shape: f32[1,256], index: 2, kind: input, shape index: {}]
  %s3 = inlined_call_operand.vmem [shape: bf16[64,256], index: 3, kind: input, shape index: {}]
  %s4 = inlined_call_operand.vmem [shape: bf16[32,256], index: 4, kind: input, shape index: {}]
  %s5 = inlined_call_operand.hbm [shape: bf16[32,256], index: 5, kind: input, shape index: {}]
  %s6 = inlined_call_operand.vmem [shape: f32[1,256], index: 6, kind: input, shape index: {}]
  %s7 = inlined_call_operand.hbm [shape: bf16[64,256], index: 7, kind: input, shape index: {}]
  %s8 = inlined_call_operand.hbm [shape: bf16[32,32], index: 8, kind: input, shape index: {}]
  %s9 = inlined_call_operand.hbm [shape: bf16[32,32], index: 9, kind: input, shape index: {}]
  %s10 = inlined_call_operand.vmem [shape: f32[1,32], index: 10, kind: input, shape index: {}]
  %s11 = inlined_call_operand.vmem [shape: f32[1,32], index: 11, kind: input, shape index: {}]
  %s12 = inlined_call_operand.<no memory space> [shape: f32[1,1], index: 12, kind: input, shape index: {}]
  %s13 = inlined_call_operand.vmem [shape: f32[8,8,1], index: 13, kind: output, shape index: {}]
  %s14 = sld [smem:[#allocation0]]
  $region78: #{lstm_silence_classifier.1} parent=0
    _
  %s16 = ssub.s32 1, %s14
  %s17 = scalar_select 0, %s16, %s14
  %v18 = vstv %s12
  %19 = vst [vmem:[#allocation7] sm:$0x1] %v18
  $region1: #{lstm_silence_classifier.1} parent=0
    #allocation8 [shape = 'u8[16384]{0}', space=vmem, size = 0x4000, scoped, tag = 'input window, operand 5, single buffered']
    #allocation9 [shape = 's32[1]{0}', space=sflag, size = 0x4, scoped, tag = 'scoped memory for lstm_silence_classifier.1']
    #allocation10 [shape = 'u8[32768]{0}', space=vmem, size = 0x8000, scoped, tag = 'input window, operand 7, single buffered']
    #allocation11 [shape = 's32[1]{0}', space=sflag, size = 0x4, scoped, tag = 'scoped memory for lstm_silence_classifier.1']
    #allocation12 [shape = 'u8[8192]{0}', space=vmem, size = 0x2000, scoped, tag = 'input window, operand 8, single buffered']
    #allocation13 [shape = 'u8[8192]{0}', space=vmem, size = 0x2000, scoped, tag = 'input window, operand 9, single buffered']
    #allocation14 [shape = 's32[1]{0}', space=sflag, size = 0x4, scoped, tag = 'scoped memory for lstm_silence_classifier.1']
    %20 = vsyncpa [#allocation9], 0
    %21 = vsyncpa [#allocation11], 0
    %22 = vsyncpa [#allocation14], 0
    // Predicated region
    $region2: #{lstm_silence_classifier.1} parent=1 // pred_check
      _
    $region3: #{lstm_silence_classifier.1} parent=1 // pred_check_branch
      %24 = sbr.rel (0) target = $region5
    $region4: #{lstm_silence_classifier.1} parent=1 // pred_region
      _
    $region5: #{lstm_silence_classifier.1} parent=1 // pred_fallthru
      _
    // Predicated region
    $region6: #{lstm_silence_classifier.1} parent=1 // pred_check
      _
    $region7: #{lstm_silence_classifier.1} parent=1 // pred_check_branch
      %26 = sbr.rel (0) target = $region9
    $region8: #{lstm_silence_classifier.1} parent=1 // pred_region
      _
    $region9: #{lstm_silence_classifier.1} parent=1 // pred_fallthru
      _
    // Predicated region
    $region10: #{lstm_silence_classifier.1} parent=1 // pred_check
      _
    $region11: #{lstm_silence_classifier.1} parent=1 // pred_check_branch
      %28 = sbr.rel (0) target = $region13
    $region12: #{lstm_silence_classifier.1} parent=1 // pred_region
      _
    $region13: #{lstm_silence_classifier.1} parent=1 // pred_fallthru
      _
    // Predicated region
    $region14: #{lstm_silence_classifier.1} parent=1 // pred_check
      _
    $region15: #{lstm_silence_classifier.1} parent=1 // pred_check_branch
      %30 = sbr.rel (0) target = $region17
    $region16: #{lstm_silence_classifier.1} parent=1 // pred_region
      _
    $region17: #{lstm_silence_classifier.1} parent=1 // pred_fallthru
      _
    // Predicated region
    $region18: #{lstm_silence_classifier.1} parent=1 // pred_check
      _
    $region19: #{lstm_silence_classifier.1} parent=1 // pred_check_branch
      %32 = sbr.rel (0) target = $region21
    $region20: #{lstm_silence_classifier.1} parent=1 // pred_region
      _
    $region21: #{lstm_silence_classifier.1} parent=1 // pred_fallthru
      _
    // Predicated region
    $region22: #{lstm_silence_classifier.1} parent=1 // pred_check
      _
    $region23: #{lstm_silence_classifier.1} parent=1 // pred_check_branch
      %34 = sbr.rel (0) target = $region25
    $region24: #{lstm_silence_classifier.1} parent=1 // pred_region
      %36 = vsyncadd [#allocation9], 0
      %s37 = sshll.u32 %s5, 4
      %s38 = int_to_ptr.hbm [resolvable:$true] %s37
      %s39 = sshll.u32 [#allocation8], 4
      %s40 = int_to_ptr.vmem [resolvable:$true] %s39
      %45 = dma.hbm_to_vmem [thread:$0]  %s38, 512, %s40, [#allocation9], 128, 128, 8
    $region25: #{lstm_silence_classifier.1} parent=1 // pred_fallthru
      _
    // Predicated region
    $region26: #{lstm_silence_classifier.1} parent=1 // pred_check
      _
    $region27: #{lstm_silence_classifier.1} parent=1 // pred_check_branch
      %47 = sbr.rel (0) target = $region29
    $region28: #{lstm_silence_classifier.1} parent=1 // pred_region
      _
    $region29: #{lstm_silence_classifier.1} parent=1 // pred_fallthru
      _
    // Predicated region
    $region30: #{lstm_silence_classifier.1} parent=1 // pred_check
      _
    $region31: #{lstm_silence_classifier.1} parent=1 // pred_check_branch
      %49 = sbr.rel (0) target = $region33
    $region32: #{lstm_silence_classifier.1} parent=1 // pred_region
      %51 = vsyncadd [#allocation11], 0
      %s52 = sshll.u32 %s7, 4
      %s53 = int_to_ptr.hbm [resolvable:$true] %s52
      %s54 = sshll.u32 [#allocation10], 4
      %s55 = int_to_ptr.vmem [resolvable:$true] %s54
      %60 = dma.hbm_to_vmem [thread:$0]  %s53, 1024, %s55, [#allocation11], 128, 128, 8
    $region33: #{lstm_silence_classifier.1} parent=1 // pred_fallthru
      _
    // Predicated region
    $region34: #{lstm_silence_classifier.1} parent=1 // pred_check
      _
    $region35: #{lstm_silence_classifier.1} parent=1 // pred_check_branch
      %62 = sbr.rel (0) target = $region37
    $region36: #{lstm_silence_classifier.1} parent=1 // pred_region
      %64 = vsyncadd [#allocation11], 0
      %s65 = sshll.u32 %s8, 4
      %s66 = int_to_ptr.hbm [resolvable:$true] %s65
      %s67 = sshll.u32 [#allocation12], 4
      %s68 = int_to_ptr.vmem [resolvable:$true] %s67
      %73 = dma.hbm_to_vmem [thread:$0]  %s66, 256, %s68, [#allocation11], 64, 64, 4
    $region37: #{lstm_silence_classifier.1} parent=1 // pred_fallthru
      _
    // Predicated region
    $region38: #{lstm_silence_classifier.1} parent=1 // pred_check
      _
    $region39: #{lstm_silence_classifier.1} parent=1 // pred_check_branch
      %75 = sbr.rel (0) target = $region41
    $region40: #{lstm_silence_classifier.1} parent=1 // pred_region
      %77 = vsyncadd [#allocation14], 0
      %s78 = sshll.u32 %s9, 4
      %s79 = int_to_ptr.hbm [resolvable:$true] %s78
      %s80 = sshll.u32 [#allocation13], 4
      %s81 = int_to_ptr.vmem [resolvable:$true] %s80
      %86 = dma.hbm_to_vmem [thread:$0]  %s79, 256, %s81, [#allocation14], 64, 64, 4
    $region41: #{lstm_silence_classifier.1} parent=1 // pred_fallthru
      _
    // Predicated region
    $region42: #{lstm_silence_classifier.1} parent=1 // pred_check
      _
    $region43: #{lstm_silence_classifier.1} parent=1 // pred_check_branch
      %88 = sbr.rel (0) target = $region45
    $region44: #{lstm_silence_classifier.1} parent=1 // pred_region
      _
    $region45: #{lstm_silence_classifier.1} parent=1 // pred_fallthru
      _
    // Predicated region
    $region46: #{lstm_silence_classifier.1} parent=1 // pred_check
      _
    $region47: #{lstm_silence_classifier.1} parent=1 // pred_check_branch
      %90 = sbr.rel (0) target = $region49
    $region48: #{lstm_silence_classifier.1} parent=1 // pred_region
      _
    $region49: #{lstm_silence_classifier.1} parent=1 // pred_fallthru
      _
    // Predicated region
    $region50: #{lstm_silence_classifier.1} parent=1 // pred_check
      _
    $region51: #{lstm_silence_classifier.1} parent=1 // pred_check_branch
      %92 = sbr.rel (0) target = $region53
    $region52: #{lstm_silence_classifier.1} parent=1 // pred_region
      _
    $region53: #{lstm_silence_classifier.1} parent=1 // pred_fallthru
      _
    // Predicated region
    $region54: #{lstm_silence_classifier.1} parent=1 // pred_check
      _
    $region55: #{lstm_silence_classifier.1} parent=1 // pred_check_branch
      %94 = sbr.rel (0) target = $region57
    $region56: #{lstm_silence_classifier.1} parent=1 // pred_region
      %96 = dma.done [#allocation9], 512
    $region57: #{lstm_silence_classifier.1} parent=1 // pred_fallthru
      _
    // Predicated region
    $region58: #{lstm_silence_classifier.1} parent=1 // pred_check
      _
    $region59: #{lstm_silence_classifier.1} parent=1 // pred_check_branch
      %98 = sbr.rel (0) target = $region61
    $region60: #{lstm_silence_classifier.1} parent=1 // pred_region
      %100 = dma.done [#allocation11], 1024
    $region61: #{lstm_silence_classifier.1} parent=1 // pred_fallthru
      _
    // Predicated region
    $region62: #{lstm_silence_classifier.1} parent=1 // pred_check
      _
    $region63: #{lstm_silence_classifier.1} parent=1 // pred_check_branch
      %102 = sbr.rel (0) target = $region65
    $region64: #{lstm_silence_classifier.1} parent=1 // pred_region
      %104 = dma.done [#allocation11], 256
    $region65: #{lstm_silence_classifier.1} parent=1 // pred_fallthru
      _
    // Predicated region
    $region66: #{lstm_silence_classifier.1} parent=1 // pred_check
      _
    $region67: #{lstm_silence_classifier.1} parent=1 // pred_check_branch
      %106 = sbr.rel (0) target = $region69
    $region68: #{lstm_silence_classifier.1} parent=1 // pred_region
      %108 = dma.done [#allocation14], 256
    $region69: #{lstm_silence_classifier.1} parent=1 // pred_fallthru
      _
    %v110 = vld [vmem:[%s0] sm:$0xff]
    %v111 = vld [vmem:[%s0 + $0x8] sm:$0xff]
    %v112 = vld [vmem:[%s0 + $0x10] sm:$0xff]
    %v113 = vld [vmem:[%s0 + $0x18] sm:$0xff]
    %v114 = vld [vmem:[%s0 + $0x20] sm:$0xff]
    %v115 = vld [vmem:[%s0 + $0x28] sm:$0xff]
    %v116 = vld [vmem:[%s0 + $0x30] sm:$0xff]
    %v117 = vld [vmem:[%s0 + $0x38] sm:$0xff]
    %v118 = vpack.c.bf16 %v111, %v110
    %v119 = vpack.c.bf16 %v113, %v112
    %v120 = vpack.c.bf16 %v115, %v114
    %v121 = vpack.c.bf16 %v117, %v116
    %v122 = vld [vmem:[%s1] sm:$0xff]
    %v123 = vld [vmem:[%s1 + $0x8] sm:$0xff]
    %v124 = vld [vmem:[%s2] sm:$0x3]
    %v126 = vperm.slane %v124, 0
    %v127 = vperm.slane %v124, 1
    %v132 = vunpack.c.l.b16 %v122
    %v133 = vunpack.c.h.b16 %v122
    %v134 = vunpack.c.l.b16 %v123
    %v135 = vunpack.c.h.b16 %v123
    %v136 = vpack.c.b16 %v134, %v132
    %v137 = vpack.c.b16 %v135, %v133
    %vm140 = vcmask 130048
    %v142 = vsel %vm140, %v118, 0
    %v145 = vsel %vm140, %v119, 0
    %v148 = vsel %vm140, %v120, 0
    %v151 = vsel %vm140, %v121, 0
    %153 = vmatpush.bf16.msra.mxu0 0
    %154 = vmatpush.bf16.msra.mxu0 0
    %155 = vmatpush.bf16.msra.mxu0 0
    %156 = vmatpush.bf16.msra.mxu0 0
    %157 = vmatpush.bf16.msra.mxu0 0
    %158 = vmatpush.bf16.msra.mxu0 0
    %159 = vmatpush.bf16.msra.mxu0 0
    %160 = vmatpush.bf16.msra.mxu0 %v136
    %161 = vmatmul.bf16.gmra.mxu0 %v142
    %v162 = vpop.f32.mrf.mxu0
    %v163 = vadd.f32 %v126, %v162
    %v164 = vpop.f32.mrf.mxu0
    %v165 = vadd.f32 %v126, %v164
    %166 = vmatmul.bf16.gmra.mxu0 %v145
    %v167 = vpop.f32.mrf.mxu0
    %v168 = vadd.f32 %v126, %v167
    %v169 = vpop.f32.mrf.mxu0
    %v170 = vadd.f32 %v126, %v169
    %171 = vmatmul.bf16.gmra.mxu0 %v148
    %v172 = vpop.f32.mrf.mxu0
    %v173 = vadd.f32 %v126, %v172
    %v174 = vpop.f32.mrf.mxu0
    %v175 = vadd.f32 %v126, %v174
    %176 = vmatmul.bf16.gmra.mxu0 %v151
    %v177 = vpop.f32.mrf.mxu0
    %v178 = vadd.f32 %v126, %v177
    %v179 = vpop.f32.mrf.mxu0
    %v180 = vadd.f32 %v126, %v179
    %181 = vdwg.mxu0
    %182 = vmatpush.bf16.msra.mxu0 0
    %183 = vmatpush.bf16.msra.mxu0 0
    %184 = vmatpush.bf16.msra.mxu0 0
    %185 = vmatpush.bf16.msra.mxu0 0
    %186 = vmatpush.bf16.msra.mxu0 0
    %187 = vmatpush.bf16.msra.mxu0 0
    %188 = vmatpush.bf16.msra.mxu0 0
    %189 = vmatpush.bf16.msra.mxu0 %v137
    %190 = vmatmul.bf16.gmra.mxu0 %v142
    %v191 = vpop.f32.mrf.mxu0
    %v192 = vadd.f32 %v127, %v191
    %v193 = vpop.f32.mrf.mxu0
    %v194 = vadd.f32 %v127, %v193
    %195 = vmatmul.bf16.gmra.mxu0 %v145
    %v196 = vpop.f32.mrf.mxu0
    %v197 = vadd.f32 %v127, %v196
    %v198 = vpop.f32.mrf.mxu0
    %v199 = vadd.f32 %v127, %v198
    %200 = vmatmul.bf16.gmra.mxu0 %v148
    %v201 = vpop.f32.mrf.mxu0
    %v202 = vadd.f32 %v127, %v201
    %v203 = vpop.f32.mrf.mxu0
    %v204 = vadd.f32 %v127, %v203
    %205 = vmatmul.bf16.gmra.mxu0 %v151
    %v206 = vpop.f32.mrf.mxu0
    %v207 = vadd.f32 %v127, %v206
    %v208 = vpop.f32.mrf.mxu0
    %v209 = vadd.f32 %v127, %v208
    %210 = vdwg.mxu0
    %211 = vst [vmem:[#allocation2] sm:$0xff] %v163
    %212 = vst [vmem:[#allocation2 + $0x8] sm:$0xff] %v192
    %213 = vst [vmem:[#allocation2 + $0x10] sm:$0xff] %v165
    %214 = vst [vmem:[#allocation2 + $0x18] sm:$0xff] %v194
    %215 = vst [vmem:[#allocation2 + $0x20] sm:$0xff] %v168
    %216 = vst [vmem:[#allocation2 + $0x28] sm:$0xff] %v197
    %217 = vst [vmem:[#allocation2 + $0x30] sm:$0xff] %v170
    %218 = vst [vmem:[#allocation2 + $0x38] sm:$0xff] %v199
    %219 = vst [vmem:[#allocation2 + $0x40] sm:$0xff] %v173
    %220 = vst [vmem:[#allocation2 + $0x48] sm:$0xff] %v202
    %221 = vst [vmem:[#allocation2 + $0x50] sm:$0xff] %v175
    %222 = vst [vmem:[#allocation2 + $0x58] sm:$0xff] %v204
    %223 = vst [vmem:[#allocation2 + $0x60] sm:$0xff] %v178
    %224 = vst [vmem:[#allocation2 + $0x68] sm:$0xff] %v207
    %225 = vst [vmem:[#allocation2 + $0x70] sm:$0xff] %v180
    %226 = vst [vmem:[#allocation2 + $0x78] sm:$0xff] %v209
    %v227 = vld [vmem:[%s3] sm:$0xff]
    %v228 = vld [vmem:[%s3 + $0x8] sm:$0xff]
    %v229 = vld [vmem:[%s3 + $0x10] sm:$0xff]
    %v230 = vld [vmem:[%s3 + $0x18] sm:$0xff]
    %v231 = vld [vmem:[%s3 + $0x20] sm:$0xff]
    %v232 = vld [vmem:[%s3 + $0x28] sm:$0xff]
    %v233 = vld [vmem:[%s3 + $0x30] sm:$0xff]
    %v234 = vld [vmem:[%s3 + $0x38] sm:$0xff]
    %vm235 = vcmask 523264
    %236 = vst.msk [vmem:[#allocation5] sm:$0xff] %vm235, 0.0
    %237 = vst.msk [vmem:[#allocation6] sm:$0xff] %vm235, 0.0
    %v238 = vld [vmem:[#allocation5] sm:$0xff]
    %v239 = vpack.c.bf16 %v238, %v238
    %v248 = vunpack.c.l.b16 %v227
    %v249 = vunpack.c.h.b16 %v227
    %v250 = vunpack.c.l.b16 %v228
    %v251 = vunpack.c.h.b16 %v228
    %v252 = vunpack.c.l.b16 %v229
    %v253 = vunpack.c.h.b16 %v229
    %v254 = vunpack.c.l.b16 %v230
    %v255 = vunpack.c.h.b16 %v230
    %v256 = vunpack.c.l.b16 %v231
    %v257 = vunpack.c.h.b16 %v231
    %v258 = vunpack.c.l.b16 %v232
    %v259 = vunpack.c.h.b16 %v232
    %v260 = vunpack.c.l.b16 %v233
    %v261 = vunpack.c.h.b16 %v233
    %v262 = vunpack.c.l.b16 %v234
    %v263 = vunpack.c.h.b16 %v234
    %v264 = vpack.c.b16 %v250, %v248
    %v265 = vpack.c.b16 %v251, %v249
    %v266 = vpack.c.b16 %v254, %v252
    %v267 = vpack.c.b16 %v255, %v253
    %v268 = vpack.c.b16 %v258, %v256
    %v269 = vpack.c.b16 %v259, %v257
    %v270 = vpack.c.b16 %v262, %v260
    %v271 = vpack.c.b16 %v263, %v261
    %v281 = vsel %vm235, %v239, 0
    %283 = vmatpush.bf16.msra.mxu0 0
    %284 = vmatpush.bf16.msra.mxu0 0
    %285 = vmatpush.bf16.msra.mxu0 0
    %286 = vmatpush.bf16.msra.mxu0 0
    %287 = vmatpush.bf16.msra.mxu0 %v270
    %288 = vmatpush.bf16.msra.mxu0 %v268
    %289 = vmatpush.bf16.msra.mxu0 %v266
    %290 = vmatpush.bf16.msra.mxu0 %v264
    %291 = vmatmul.bf16.gmra.mxu0 %v281
    %v292 = vpop.f32.mrf.mxu0
    %v293 = vadd.f32 0.0, %v292
    %v294 = vpop.f32.mrf.mxu0
    %295 = vdwg.mxu0
    %296 = vmatpush.bf16.msra.mxu0 0
    %297 = vmatpush.bf16.msra.mxu0 0
    %298 = vmatpush.bf16.msra.mxu0 0
    %299 = vmatpush.bf16.msra.mxu0 0
    %300 = vmatpush.bf16.msra.mxu0 %v271
    %301 = vmatpush.bf16.msra.mxu0 %v269
    %302 = vmatpush.bf16.msra.mxu0 %v267
    %303 = vmatpush.bf16.msra.mxu0 %v265
    %304 = vmatmul.bf16.gmra.mxu0 %v281
    %v305 = vpop.f32.mrf.mxu0
    %v306 = vadd.f32 0.0, %v305
    %v307 = vpop.f32.mrf.mxu0
    %308 = vdwg.mxu0
    %v309 = vld [vmem:[#allocation2] sm:$0xff]
    %s310 = scalar_lea.vmem [#allocation2], 112
    %v311 = vld [vmem:[%s310 + $0x8] sm:$0xff]
    %v312 = vadd.f32 %v293, %v309
    %v313 = vadd.f32 %v306, %v311
    %v314 = vxor.u32 %v312, 2147483648
    %v315 = vmul.f32 %v314, 1.442695
    %v316 = vpow.pop %v315
    %v317 = vadd.f32 %v316, 1.0
    %v318 = vrcp.pop %v317
    %v319 = vmul.f32 %v317, %v318
    %v320 = vsub.f32 1.0, %v319
    %v321 = vmul.f32 %v318, %v320
    %v322 = vadd.f32 %v318, %v321
    %vm323 = vweird.f32 %v317
    %vm324 = vweird.f32 %v318
    %vm325 = vmor %vm323, %vm324
    %v326 = vsel %vm325, %v318, %v322
    %v327 = vand.u32 2147483647, %v317
    %vm328 = vcmp.eq.f32.partialorder %v327, 8.507059e+37
    %v329 = vand.u32 %v317, 2147483648
    %v330 = vor.u32 1.1754944e-38, %v329
    %v331 = vsel %vm328, %v330, %v326
    %v332 = vmul.f32 1.0, %v331
    %v333 = vxor.u32 %v313, 2147483648
    %v334 = vmul.f32 %v333, 1.442695
    %v335 = vpow.pop %v334
    %v336 = vadd.f32 %v335, 1.0
    %v337 = vrcp.pop %v336
    %v338 = vmul.f32 %v336, %v337
    %v339 = vsub.f32 1.0, %v338
    %v340 = vmul.f32 %v337, %v339
    %v341 = vadd.f32 %v337, %v340
    %vm342 = vweird.f32 %v336
    %vm343 = vweird.f32 %v337
    %vm344 = vmor %vm342, %vm343
    %v345 = vsel %vm344, %v337, %v341
    %v346 = vand.u32 2147483647, %v336
    %vm347 = vcmp.eq.f32.partialorder %v346, 8.507059e+37
    %v348 = vand.u32 %v336, 2147483648
    %v349 = vor.u32 1.1754944e-38, %v348
    %v350 = vsel %vm347, %v349, %v345
    %v351 = vmul.f32 1.0, %v350
    %v352 = vtanh.pop %v312
    %v353 = vtanh.pop %v313
    %v354 = vld [vmem:[#allocation6] sm:$0xff]
    %356 = vrot.lane.b32.xlu0 %v354, 32
    %v357 = vpop.permute.xlu0 %356
    %v359 = vmul.f32 %v332, %v357
    %361 = vrot.lane.b32.xlu0 %v352, 32
    %v362 = vpop.permute.xlu0 %361
    %v364 = vmul.f32 %v332, %v362
    %366 = vrot.lane.b32.xlu0 %v364, 32
    %v367 = vpop.permute.xlu0 %366
    %v369 = vadd.f32 %v359, %v367
    %v370 = vmul.f32 %v351, %v354
    %372 = vrot.lane.b32.xlu0 %v353, 32
    %v373 = vpop.permute.xlu0 %372
    %v375 = vmul.f32 %v351, %v373
    %377 = vrot.lane.b32.xlu0 %v375, 32
    %v378 = vpop.permute.xlu0 %377
    %v380 = vadd.f32 %v370, %v378
    %v381 = vtanh.pop %v369
    %383 = vrot.lane.b32.xlu0 %v381, 32
    %v384 = vpop.permute.xlu0 %383
    %v386 = vmul.f32 %v332, %v384
    %v387 = vtanh.pop %v380
    %389 = vrot.lane.b32.xlu0 %v387, 32
    %v390 = vpop.permute.xlu0 %389
    %v392 = vmul.f32 %v351, %v390
    %394 = vrot.lane.b32.xlu0 %v369, 96
    %v395 = vpop.permute.xlu0 %394
    %vm397 = vcmask 261120
    %398 = vst.msk [vmem:[#allocation6] sm:$0xff] %vm397, %v395
    %vm399 = vcmask 523520
    %400 = vst.msk [vmem:[#allocation6] sm:$0xff] %vm399, %v380
    %402 = vrot.lane.b32.xlu0 %v386, 64
    %v403 = vpop.permute.xlu0 %402
    %405 = vst.msk [vmem:[#allocation5] sm:$0xff] %vm397, %v403
    %407 = vrot.lane.b32.xlu0 %v392, 96
    %v408 = vpop.permute.xlu0 %407
    %410 = vst.msk [vmem:[#allocation5] sm:$0xff] %vm399, %v408
    %411 = vst.msk [vmem:[#allocation3] sm:$0xff] %vm397, %v403
    %412 = vrot.lane.b32.xlu0 %v392, 64
    %v413 = vpop.permute.xlu0 %412
    %s415 = scalar_lea.vmem [#allocation4], 56
    %416 = vst.msk [vmem:[%s415] sm:$0xff] %vm397, %v413
    %v417 = vld [vmem:[#allocation5] sm:$0xff]
    %v418 = vpack.c.bf16 %v417, %v417
    %v420 = vsel %vm235, %v418, 0
    %422 = vmatpush.bf16.msra.mxu0 0
    %423 = vmatpush.bf16.msra.mxu0 0
    %424 = vmatpush.bf16.msra.mxu0 0
    %425 = vmatpush.bf16.msra.mxu0 0
    %426 = vmatpush.bf16.msra.mxu0 %v270
    %427 = vmatpush.bf16.msra.mxu0 %v268
    %428 = vmatpush.bf16.msra.mxu0 %v266
    %429 = vmatpush.bf16.msra.mxu0 %v264
    %430 = vmatmul.bf16.gmra.mxu0 %v420
    %v431 = vpop.f32.mrf.mxu0
    %v432 = vadd.f32 0.0, %v431
    %v433 = vpop.f32.mrf.mxu0
    %434 = vdwg.mxu0
    %435 = vmatpush.bf16.msra.mxu0 0
    %436 = vmatpush.bf16.msra.mxu0 0
    %437 = vmatpush.bf16.msra.mxu0 0
    %438 = vmatpush.bf16.msra.mxu0 0
    %439 = vmatpush.bf16.msra.mxu0 %v271
    %440 = vmatpush.bf16.msra.mxu0 %v269
    %441 = vmatpush.bf16.msra.mxu0 %v267
    %442 = vmatpush.bf16.msra.mxu0 %v265
    %443 = vmatmul.bf16.gmra.mxu0 %v420
    %v444 = vpop.f32.mrf.mxu0
    %v445 = vadd.f32 0.0, %v444
    %v446 = vpop.f32.mrf.mxu0
    %447 = vdwg.mxu0
    %s448 = scalar_lea.vmem [#allocation2], 16
    %v449 = vld [vmem:[%s448] sm:$0xff]
    %s450 = scalar_lea.vmem [#allocation2], 96
    %v451 = vld [vmem:[%s450 + $0x8] sm:$0xff]
    %v452 = vadd.f32 %v432, %v449
    %v453 = vadd.f32 %v445, %v451
    %v454 = vxor.u32 %v452, 2147483648
    %v455 = vmul.f32 %v454, 1.442695
    %v456 = vpow.pop %v455
    %v457 = vadd.f32 %v456, 1.0
    %v458 = vrcp.pop %v457
    %v459 = vmul.f32 %v457, %v458
    %v460 = vsub.f32 1.0, %v459
    %v461 = vmul.f32 %v458, %v460
    %v462 = vadd.f32 %v458, %v461
    %vm463 = vweird.f32 %v457
    %vm464 = vweird.f32 %v458
    %vm465 = vmor %vm463, %vm464
    %v466 = vsel %vm465, %v458, %v462
    %v467 = vand.u32 2147483647, %v457
    %vm468 = vcmp.eq.f32.partialorder %v467, 8.507059e+37
    %v469 = vand.u32 %v457, 2147483648
    %v470 = vor.u32 1.1754944e-38, %v469
    %v471 = vsel %vm468, %v470, %v466
    %v472 = vmul.f32 1.0, %v471
    %v473 = vxor.u32 %v453, 2147483648
    %v474 = vmul.f32 %v473, 1.442695
    %v475 = vpow.pop %v474
    %v476 = vadd.f32 %v475, 1.0
    %v477 = vrcp.pop %v476
    %v478 = vmul.f32 %v476, %v477
    %v479 = vsub.f32 1.0, %v478
    %v480 = vmul.f32 %v477, %v479
    %v481 = vadd.f32 %v477, %v480
    %vm482 = vweird.f32 %v476
    %vm483 = vweird.f32 %v477
    %vm484 = vmor %vm482, %vm483
    %v485 = vsel %vm484, %v477, %v481
    %v486 = vand.u32 2147483647, %v476
    %vm487 = vcmp.eq.f32.partialorder %v486, 8.507059e+37
    %v488 = vand.u32 %v476, 2147483648
    %v489 = vor.u32 1.1754944e-38, %v488
    %v490 = vsel %vm487, %v489, %v485
    %v491 = vmul.f32 1.0, %v490
    %v492 = vtanh.pop %v452
    %v493 = vtanh.pop %v453
    %v494 = vld [vmem:[#allocation6] sm:$0xff]
    %496 = vrot.lane.b32.xlu0 %v494, 32
    %v497 = vpop.permute.xlu0 %496
    %v499 = vmul.f32 %v472, %v497
    %501 = vrot.lane.b32.xlu0 %v492, 32
    %v502 = vpop.permute.xlu0 %501
    %v504 = vmul.f32 %v472, %v502
    %506 = vrot.lane.b32.xlu0 %v504, 32
    %v507 = vpop.permute.xlu0 %506
    %v509 = vadd.f32 %v499, %v507
    %v510 = vmul.f32 %v491, %v494
    %512 = vrot.lane.b32.xlu0 %v493, 32
    %v513 = vpop.permute.xlu0 %512
    %v515 = vmul.f32 %v491, %v513
    %517 = vrot.lane.b32.xlu0 %v515, 32
    %v518 = vpop.permute.xlu0 %517
    %v520 = vadd.f32 %v510, %v518
    %v521 = vtanh.pop %v509
    %523 = vrot.lane.b32.xlu0 %v521, 32
    %v524 = vpop.permute.xlu0 %523
    %v526 = vmul.f32 %v472, %v524
    %v527 = vtanh.pop %v520
    %529 = vrot.lane.b32.xlu0 %v527, 32
    %v530 = vpop.permute.xlu0 %529
    %v532 = vmul.f32 %v491, %v530
    %534 = vrot.lane.b32.xlu0 %v509, 96
    %v535 = vpop.permute.xlu0 %534
    %537 = vst.msk [vmem:[#allocation6] sm:$0xff] %vm397, %v535
    %538 = vst.msk [vmem:[#allocation6] sm:$0xff] %vm399, %v520
    %540 = vrot.lane.b32.xlu0 %v526, 64
    %v541 = vpop.permute.xlu0 %540
    %543 = vst.msk [vmem:[#allocation5] sm:$0xff] %vm397, %v541
    %545 = vrot.lane.b32.xlu0 %v532, 96
    %v546 = vpop.permute.xlu0 %545
    %548 = vst.msk [vmem:[#allocation5] sm:$0xff] %vm399, %v546
    %s549 = scalar_lea.vmem [#allocation3], 8
    %550 = vst.msk [vmem:[%s549] sm:$0xff] %vm397, %v541
    %551 = vrot.lane.b32.xlu0 %v532, 64
    %v552 = vpop.permute.xlu0 %551
    %s554 = scalar_lea.vmem [#allocation4], 48
    %555 = vst.msk [vmem:[%s554] sm:$0xff] %vm397, %v552
    %v556 = vld [vmem:[#allocation5] sm:$0xff]
    %v557 = vpack.c.bf16 %v556, %v556
    %v559 = vsel %vm235, %v557, 0
    %561 = vmatpush.bf16.msra.mxu0 0
    %562 = vmatpush.bf16.msra.mxu0 0
    %563 = vmatpush.bf16.msra.mxu0 0
    %564 = vmatpush.bf16.msra.mxu0 0
    %565 = vmatpush.bf16.msra.mxu0 %v270
    %566 = vmatpush.bf16.msra.mxu0 %v268
    %567 = vmatpush.bf16.msra.mxu0 %v266
    %568 = vmatpush.bf16.msra.mxu0 %v264
    %569 = vmatmul.bf16.gmra.mxu0 %v559
    %v570 = vpop.f32.mrf.mxu0
    %v571 = vadd.f32 0.0, %v570
    %v572 = vpop.f32.mrf.mxu0
    %573 = vdwg.mxu0
    %574 = vmatpush.bf16.msra.mxu0 0
    %575 = vmatpush.bf16.msra.mxu0 0
    %576 = vmatpush.bf16.msra.mxu0 0
    %577 = vmatpush.bf16.msra.mxu0 0
    %578 = vmatpush.bf16.msra.mxu0 %v271
    %579 = vmatpush.bf16.msra.mxu0 %v269
    %580 = vmatpush.bf16.msra.mxu0 %v267
    %581 = vmatpush.bf16.msra.mxu0 %v265
    %582 = vmatmul.bf16.gmra.mxu0 %v559
    %v583 = vpop.f32.mrf.mxu0
    %v584 = vadd.f32 0.0, %v583
    %v585 = vpop.f32.mrf.mxu0
    %586 = vdwg.mxu0
    %s587 = scalar_lea.vmem [#allocation2], 32
    %v588 = vld [vmem:[%s587] sm:$0xff]
    %s589 = scalar_lea.vmem [#allocation2], 80
    %v590 = vld [vmem:[%s589 + $0x8] sm:$0xff]
    %v591 = vadd.f32 %v571, %v588
    %v592 = vadd.f32 %v584, %v590
    %v593 = vxor.u32 %v591, 2147483648
    %v594 = vmul.f32 %v593, 1.442695
    %v595 = vpow.pop %v594
    %v596 = vadd.f32 %v595, 1.0
    %v597 = vrcp.pop %v596
    %v598 = vmul.f32 %v596, %v597
    %v599 = vsub.f32 1.0, %v598
    %v600 = vmul.f32 %v597, %v599
    %v601 = vadd.f32 %v597, %v600
    %vm602 = vweird.f32 %v596
    %vm603 = vweird.f32 %v597
    %vm604 = vmor %vm602, %vm603
    %v605 = vsel %vm604, %v597, %v601
    %v606 = vand.u32 2147483647, %v596
    %vm607 = vcmp.eq.f32.partialorder %v606, 8.507059e+37
    %v608 = vand.u32 %v596, 2147483648
    %v609 = vor.u32 1.1754944e-38, %v608
    %v610 = vsel %vm607, %v609, %v605
    %v611 = vmul.f32 1.0, %v610
    %v612 = vxor.u32 %v592, 2147483648
    %v613 = vmul.f32 %v612, 1.442695
    %v614 = vpow.pop %v613
    %v615 = vadd.f32 %v614, 1.0
    %v616 = vrcp.pop %v615
    %v617 = vmul.f32 %v615, %v616
    %v618 = vsub.f32 1.0, %v617
    %v619 = vmul.f32 %v616, %v618
    %v620 = vadd.f32 %v616, %v619
    %vm621 = vweird.f32 %v615
    %vm622 = vweird.f32 %v616
    %vm623 = vmor %vm621, %vm622
    %v624 = vsel %vm623, %v616, %v620
    %v625 = vand.u32 2147483647, %v615
    %vm626 = vcmp.eq.f32.partialorder %v625, 8.507059e+37
    %v627 = vand.u32 %v615, 2147483648
    %v628 = vor.u32 1.1754944e-38, %v627
    %v629 = vsel %vm626, %v628, %v624
    %v630 = vmul.f32 1.0, %v629
    %v631 = vtanh.pop %v591
    %v632 = vtanh.pop %v592
    %v633 = vld [vmem:[#allocation6] sm:$0xff]
    %635 = vrot.lane.b32.xlu0 %v633, 32
    %v636 = vpop.permute.xlu0 %635
    %v638 = vmul.f32 %v611, %v636
    %640 = vrot.lane.b32.xlu0 %v631, 32
    %v641 = vpop.permute.xlu0 %640
    %v643 = vmul.f32 %v611, %v641
    %645 = vrot.lane.b32.xlu0 %v643, 32
    %v646 = vpop.permute.xlu0 %645
    %v648 = vadd.f32 %v638, %v646
    %v649 = vmul.f32 %v630, %v633
    %651 = vrot.lane.b32.xlu0 %v632, 32
    %v652 = vpop.permute.xlu0 %651
    %v654 = vmul.f32 %v630, %v652
    %656 = vrot.lane.b32.xlu0 %v654, 32
    %v657 = vpop.permute.xlu0 %656
    %v659 = vadd.f32 %v649, %v657
    %v660 = vtanh.pop %v648
    %662 = vrot.lane.b32.xlu0 %v660, 32
    %v663 = vpop.permute.xlu0 %662
    %v665 = vmul.f32 %v611, %v663
    %v666 = vtanh.pop %v659
    %668 = vrot.lane.b32.xlu0 %v666, 32
    %v669 = vpop.permute.xlu0 %668
    %v671 = vmul.f32 %v630, %v669
    %673 = vrot.lane.b32.xlu0 %v648, 96
    %v674 = vpop.permute.xlu0 %673
    %676 = vst.msk [vmem:[#allocation6] sm:$0xff] %vm397, %v674
    %677 = vst.msk [vmem:[#allocation6] sm:$0xff] %vm399, %v659
    %679 = vrot.lane.b32.xlu0 %v665, 64
    %v680 = vpop.permute.xlu0 %679
    %682 = vst.msk [vmem:[#allocation5] sm:$0xff] %vm397, %v680
    %684 = vrot.lane.b32.xlu0 %v671, 96
    %v685 = vpop.permute.xlu0 %684
    %687 = vst.msk [vmem:[#allocation5] sm:$0xff] %vm399, %v685
    %s688 = scalar_lea.vmem [#allocation3], 16
    %689 = vst.msk [vmem:[%s688] sm:$0xff] %vm397, %v680
    %690 = vrot.lane.b32.xlu0 %v671, 64
    %v691 = vpop.permute.xlu0 %690
    %s693 = scalar_lea.vmem [#allocation4], 40
    %694 = vst.msk [vmem:[%s693] sm:$0xff] %vm397, %v691
    %v695 = vld [vmem:[#allocation5] sm:$0xff]
    %v696 = vpack.c.bf16 %v695, %v695
    %v698 = vsel %vm235, %v696, 0
    %700 = vmatpush.bf16.msra.mxu0 0
    %701 = vmatpush.bf16.msra.mxu0 0
    %702 = vmatpush.bf16.msra.mxu0 0
    %703 = vmatpush.bf16.msra.mxu0 0
    %704 = vmatpush.bf16.msra.mxu0 %v270
    %705 = vmatpush.bf16.msra.mxu0 %v268
    %706 = vmatpush.bf16.msra.mxu0 %v266
    %707 = vmatpush.bf16.msra.mxu0 %v264
    %708 = vmatmul.bf16.gmra.mxu0 %v698
    %v709 = vpop.f32.mrf.mxu0
    %v710 = vadd.f32 0.0, %v709
    %v711 = vpop.f32.mrf.mxu0
    %712 = vdwg.mxu0
    %713 = vmatpush.bf16.msra.mxu0 0
    %714 = vmatpush.bf16.msra.mxu0 0
    %715 = vmatpush.bf16.msra.mxu0 0
    %716 = vmatpush.bf16.msra.mxu0 0
    %717 = vmatpush.bf16.msra.mxu0 %v271
    %718 = vmatpush.bf16.msra.mxu0 %v269
    %719 = vmatpush.bf16.msra.mxu0 %v267
    %720 = vmatpush.bf16.msra.mxu0 %v265
    %721 = vmatmul.bf16.gmra.mxu0 %v698
    %v722 = vpop.f32.mrf.mxu0
    %v723 = vadd.f32 0.0, %v722
    %v724 = vpop.f32.mrf.mxu0
    %725 = vdwg.mxu0
    %s726 = scalar_lea.vmem [#allocation2], 48
    %v727 = vld [vmem:[%s726] sm:$0xff]
    %s728 = scalar_lea.vmem [#allocation2], 64
    %v729 = vld [vmem:[%s728 + $0x8] sm:$0xff]
    %v730 = vadd.f32 %v710, %v727
    %v731 = vadd.f32 %v723, %v729
    %v732 = vxor.u32 %v730, 2147483648
    %v733 = vmul.f32 %v732, 1.442695
    %v734 = vpow.pop %v733
    %v735 = vadd.f32 %v734, 1.0
    %v736 = vrcp.pop %v735
    %v737 = vmul.f32 %v735, %v736
    %v738 = vsub.f32 1.0, %v737
    %v739 = vmul.f32 %v736, %v738
    %v740 = vadd.f32 %v736, %v739
    %vm741 = vweird.f32 %v735
    %vm742 = vweird.f32 %v736
    %vm743 = vmor %vm741, %vm742
    %v744 = vsel %vm743, %v736, %v740
    %v745 = vand.u32 2147483647, %v735
    %vm746 = vcmp.eq.f32.partialorder %v745, 8.507059e+37
    %v747 = vand.u32 %v735, 2147483648
    %v748 = vor.u32 1.1754944e-38, %v747
    %v749 = vsel %vm746, %v748, %v744
    %v750 = vmul.f32 1.0, %v749
    %v751 = vxor.u32 %v731, 2147483648
    %v752 = vmul.f32 %v751, 1.442695
    %v753 = vpow.pop %v752
    %v754 = vadd.f32 %v753, 1.0
    %v755 = vrcp.pop %v754
    %v756 = vmul.f32 %v754, %v755
    %v757 = vsub.f32 1.0, %v756
    %v758 = vmul.f32 %v755, %v757
    %v759 = vadd.f32 %v755, %v758
    %vm760 = vweird.f32 %v754
    %vm761 = vweird.f32 %v755
    %vm762 = vmor %vm760, %vm761
    %v763 = vsel %vm762, %v755, %v759
    %v764 = vand.u32 2147483647, %v754
    %vm765 = vcmp.eq.f32.partialorder %v764, 8.507059e+37
    %v766 = vand.u32 %v754, 2147483648
    %v767 = vor.u32 1.1754944e-38, %v766
    %v768 = vsel %vm765, %v767, %v763
    %v769 = vmul.f32 1.0, %v768
    %v770 = vtanh.pop %v730
    %v771 = vtanh.pop %v731
    %v772 = vld [vmem:[#allocation6] sm:$0xff]
    %774 = vrot.lane.b32.xlu0 %v772, 32
    %v775 = vpop.permute.xlu0 %774
    %v777 = vmul.f32 %v750, %v775
    %779 = vrot.lane.b32.xlu0 %v770, 32
    %v780 = vpop.permute.xlu0 %779
    %v782 = vmul.f32 %v750, %v780
    %784 = vrot.lane.b32.xlu0 %v782, 32
    %v785 = vpop.permute.xlu0 %784
    %v787 = vadd.f32 %v777, %v785
    %v788 = vmul.f32 %v769, %v772
    %790 = vrot.lane.b32.xlu0 %v771, 32
    %v791 = vpop.permute.xlu0 %790
    %v793 = vmul.f32 %v769, %v791
    %795 = vrot.lane.b32.xlu0 %v793, 32
    %v796 = vpop.permute.xlu0 %795
    %v798 = vadd.f32 %v788, %v796
    %v799 = vtanh.pop %v787
    %801 = vrot.lane.b32.xlu0 %v799, 32
    %v802 = vpop.permute.xlu0 %801
    %v804 = vmul.f32 %v750, %v802
    %v805 = vtanh.pop %v798
    %807 = vrot.lane.b32.xlu0 %v805, 32
    %v808 = vpop.permute.xlu0 %807
    %v810 = vmul.f32 %v769, %v808
    %812 = vrot.lane.b32.xlu0 %v787, 96
    %v813 = vpop.permute.xlu0 %812
    %815 = vst.msk [vmem:[#allocation6] sm:$0xff] %vm397, %v813
    %816 = vst.msk [vmem:[#allocation6] sm:$0xff] %vm399, %v798
    %818 = vrot.lane.b32.xlu0 %v804, 64
    %v819 = vpop.permute.xlu0 %818
    %821 = vst.msk [vmem:[#allocation5] sm:$0xff] %vm397, %v819
    %823 = vrot.lane.b32.xlu0 %v810, 96
    %v824 = vpop.permute.xlu0 %823
    %826 = vst.msk [vmem:[#allocation5] sm:$0xff] %vm399, %v824
    %s827 = scalar_lea.vmem [#allocation3], 24
    %828 = vst.msk [vmem:[%s827] sm:$0xff] %vm397, %v819
    %829 = vrot.lane.b32.xlu0 %v810, 64
    %v830 = vpop.permute.xlu0 %829
    %s832 = scalar_lea.vmem [#allocation4], 32
    %833 = vst.msk [vmem:[%s832] sm:$0xff] %vm397, %v830
    %v834 = vld [vmem:[#allocation5] sm:$0xff]
    %v835 = vpack.c.bf16 %v834, %v834
    %v837 = vsel %vm235, %v835, 0
    %839 = vmatpush.bf16.msra.mxu0 0
    %840 = vmatpush.bf16.msra.mxu0 0
    %841 = vmatpush.bf16.msra.mxu0 0
    %842 = vmatpush.bf16.msra.mxu0 0
    %843 = vmatpush.bf16.msra.mxu0 %v270
    %844 = vmatpush.bf16.msra.mxu0 %v268
    %845 = vmatpush.bf16.msra.mxu0 %v266
    %846 = vmatpush.bf16.msra.mxu0 %v264
    %847 = vmatmul.bf16.gmra.mxu0 %v837
    %v848 = vpop.f32.mrf.mxu0
    %v849 = vadd.f32 0.0, %v848
    %v850 = vpop.f32.mrf.mxu0
    %851 = vdwg.mxu0
    %852 = vmatpush.bf16.msra.mxu0 0
    %853 = vmatpush.bf16.msra.mxu0 0
    %854 = vmatpush.bf16.msra.mxu0 0
    %855 = vmatpush.bf16.msra.mxu0 0
    %856 = vmatpush.bf16.msra.mxu0 %v271
    %857 = vmatpush.bf16.msra.mxu0 %v269
    %858 = vmatpush.bf16.msra.mxu0 %v267
    %859 = vmatpush.bf16.msra.mxu0 %v265
    %860 = vmatmul.bf16.gmra.mxu0 %v837
    %v861 = vpop.f32.mrf.mxu0
    %v862 = vadd.f32 0.0, %v861
    %v863 = vpop.f32.mrf.mxu0
    %864 = vdwg.mxu0
    %v865 = vld [vmem:[%s728] sm:$0xff]
    %v866 = vld [vmem:[%s726 + $0x8] sm:$0xff]
    %v867 = vadd.f32 %v849, %v865
    %v868 = vadd.f32 %v862, %v866
    %v869 = vxor.u32 %v867, 2147483648
    %v870 = vmul.f32 %v869, 1.442695
    %v871 = vpow.pop %v870
    %v872 = vadd.f32 %v871, 1.0
    %v873 = vrcp.pop %v872
    %v874 = vmul.f32 %v872, %v873
    %v875 = vsub.f32 1.0, %v874
    %v876 = vmul.f32 %v873, %v875
    %v877 = vadd.f32 %v873, %v876
    %vm878 = vweird.f32 %v872
    %vm879 = vweird.f32 %v873
    %vm880 = vmor %vm878, %vm879
    %v881 = vsel %vm880, %v873, %v877
    %v882 = vand.u32 2147483647, %v872
    %vm883 = vcmp.eq.f32.partialorder %v882, 8.507059e+37
    %v884 = vand.u32 %v872, 2147483648
    %v885 = vor.u32 1.1754944e-38, %v884
    %v886 = vsel %vm883, %v885, %v881
    %v887 = vmul.f32 1.0, %v886
    %v888 = vxor.u32 %v868, 2147483648
    %v889 = vmul.f32 %v888, 1.442695
    %v890 = vpow.pop %v889
    %v891 = vadd.f32 %v890, 1.0
    %v892 = vrcp.pop %v891
    %v893 = vmul.f32 %v891, %v892
    %v894 = vsub.f32 1.0, %v893
    %v895 = vmul.f32 %v892, %v894
    %v896 = vadd.f32 %v892, %v895
    %vm897 = vweird.f32 %v891
    %vm898 = vweird.f32 %v892
    %vm899 = vmor %vm897, %vm898
    %v900 = vsel %vm899, %v892, %v896
    %v901 = vand.u32 2147483647, %v891
    %vm902 = vcmp.eq.f32.partialorder %v901, 8.507059e+37
    %v903 = vand.u32 %v891, 2147483648
    %v904 = vor.u32 1.1754944e-38, %v903
    %v905 = vsel %vm902, %v904, %v900
    %v906 = vmul.f32 1.0, %v905
    %v907 = vtanh.pop %v867
    %v908 = vtanh.pop %v868
    %v909 = vld [vmem:[#allocation6] sm:$0xff]
    %911 = vrot.lane.b32.xlu0 %v909, 32
    %v912 = vpop.permute.xlu0 %911
    %v914 = vmul.f32 %v887, %v912
    %916 = vrot.lane.b32.xlu0 %v907, 32
    %v917 = vpop.permute.xlu0 %916
    %v919 = vmul.f32 %v887, %v917
    %921 = vrot.lane.b32.xlu0 %v919, 32
    %v922 = vpop.permute.xlu0 %921
    %v924 = vadd.f32 %v914, %v922
    %v925 = vmul.f32 %v906, %v909
    %927 = vrot.lane.b32.xlu0 %v908, 32
    %v928 = vpop.permute.xlu0 %927
    %v930 = vmul.f32 %v906, %v928
    %932 = vrot.lane.b32.xlu0 %v930, 32
    %v933 = vpop.permute.xlu0 %932
    %v935 = vadd.f32 %v925, %v933
    %v936 = vtanh.pop %v924
    %938 = vrot.lane.b32.xlu0 %v936, 32
    %v939 = vpop.permute.xlu0 %938
    %v941 = vmul.f32 %v887, %v939
    %v942 = vtanh.pop %v935
    %944 = vrot.lane.b32.xlu0 %v942, 32
    %v945 = vpop.permute.xlu0 %944
    %v947 = vmul.f32 %v906, %v945
    %949 = vrot.lane.b32.xlu0 %v924, 96
    %v950 = vpop.permute.xlu0 %949
    %952 = vst.msk [vmem:[#allocation6] sm:$0xff] %vm397, %v950
    %953 = vst.msk [vmem:[#allocation6] sm:$0xff] %vm399, %v935
    %955 = vrot.lane.b32.xlu0 %v941, 64
    %v956 = vpop.permute.xlu0 %955
    %958 = vst.msk [vmem:[#allocation5] sm:$0xff] %vm397, %v956
    %960 = vrot.lane.b32.xlu0 %v947, 96
    %v961 = vpop.permute.xlu0 %960
    %963 = vst.msk [vmem:[#allocation5] sm:$0xff] %vm399, %v961
    %s964 = scalar_lea.vmem [#allocation3], 32
    %965 = vst.msk [vmem:[%s964] sm:$0xff] %vm397, %v956
    %966 = vrot.lane.b32.xlu0 %v947, 64
    %v967 = vpop.permute.xlu0 %966
    %s969 = scalar_lea.vmem [#allocation4], 24
    %970 = vst.msk [vmem:[%s969] sm:$0xff] %vm397, %v967
    %v971 = vld [vmem:[#allocation5] sm:$0xff]
    %v972 = vpack.c.bf16 %v971, %v971
    %v974 = vsel %vm235, %v972, 0
    %976 = vmatpush.bf16.msra.mxu0 0
    %977 = vmatpush.bf16.msra.mxu0 0
    %978 = vmatpush.bf16.msra.mxu0 0
    %979 = vmatpush.bf16.msra.mxu0 0
    %980 = vmatpush.bf16.msra.mxu0 %v270
    %981 = vmatpush.bf16.msra.mxu0 %v268
    %982 = vmatpush.bf16.msra.mxu0 %v266
    %983 = vmatpush.bf16.msra.mxu0 %v264
    %984 = vmatmul.bf16.gmra.mxu0 %v974
    %v985 = vpop.f32.mrf.mxu0
    %v986 = vadd.f32 0.0, %v985
    %v987 = vpop.f32.mrf.mxu0
    %988 = vdwg.mxu0
    %989 = vmatpush.bf16.msra.mxu0 0
    %990 = vmatpush.bf16.msra.mxu0 0
    %991 = vmatpush.bf16.msra.mxu0 0
    %992 = vmatpush.bf16.msra.mxu0 0
    %993 = vmatpush.bf16.msra.mxu0 %v271
    %994 = vmatpush.bf16.msra.mxu0 %v269
    %995 = vmatpush.bf16.msra.mxu0 %v267
    %996 = vmatpush.bf16.msra.mxu0 %v265
    %997 = vmatmul.bf16.gmra.mxu0 %v974
    %v998 = vpop.f32.mrf.mxu0
    %v999 = vadd.f32 0.0, %v998
    %v1000 = vpop.f32.mrf.mxu0
    %1001 = vdwg.mxu0
    %v1002 = vld [vmem:[%s589] sm:$0xff]
    %v1003 = vld [vmem:[%s587 + $0x8] sm:$0xff]
    %v1004 = vadd.f32 %v986, %v1002
    %v1005 = vadd.f32 %v999, %v1003
    %v1006 = vxor.u32 %v1004, 2147483648
    %v1007 = vmul.f32 %v1006, 1.442695
    %v1008 = vpow.pop %v1007
    %v1009 = vadd.f32 %v1008, 1.0
    %v1010 = vrcp.pop %v1009
    %v1011 = vmul.f32 %v1009, %v1010
    %v1012 = vsub.f32 1.0, %v1011
    %v1013 = vmul.f32 %v1010, %v1012
    %v1014 = vadd.f32 %v1010, %v1013
    %vm1015 = vweird.f32 %v1009
    %vm1016 = vweird.f32 %v1010
    %vm1017 = vmor %vm1015, %vm1016
    %v1018 = vsel %vm1017, %v1010, %v1014
    %v1019 = vand.u32 2147483647, %v1009
    %vm1020 = vcmp.eq.f32.partialorder %v1019, 8.507059e+37
    %v1021 = vand.u32 %v1009, 2147483648
    %v1022 = vor.u32 1.1754944e-38, %v1021
    %v1023 = vsel %vm1020, %v1022, %v1018
    %v1024 = vmul.f32 1.0, %v1023
    %v1025 = vxor.u32 %v1005, 2147483648
    %v1026 = vmul.f32 %v1025, 1.442695
    %v1027 = vpow.pop %v1026
    %v1028 = vadd.f32 %v1027, 1.0
    %v1029 = vrcp.pop %v1028
    %v1030 = vmul.f32 %v1028, %v1029
    %v1031 = vsub.f32 1.0, %v1030
    %v1032 = vmul.f32 %v1029, %v1031
    %v1033 = vadd.f32 %v1029, %v1032
    %vm1034 = vweird.f32 %v1028
    %vm1035 = vweird.f32 %v1029
    %vm1036 = vmor %vm1034, %vm1035
    %v1037 = vsel %vm1036, %v1029, %v1033
    %v1038 = vand.u32 2147483647, %v1028
    %vm1039 = vcmp.eq.f32.partialorder %v1038, 8.507059e+37
    %v1040 = vand.u32 %v1028, 2147483648
    %v1041 = vor.u32 1.1754944e-38, %v1040
    %v1042 = vsel %vm1039, %v1041, %v1037
    %v1043 = vmul.f32 1.0, %v1042
    %v1044 = vtanh.pop %v1004
    %v1045 = vtanh.pop %v1005
    %v1046 = vld [vmem:[#allocation6] sm:$0xff]
    %1048 = vrot.lane.b32.xlu0 %v1046, 32
    %v1049 = vpop.permute.xlu0 %1048
    %v1051 = vmul.f32 %v1024, %v1049
    %1053 = vrot.lane.b32.xlu0 %v1044, 32
    %v1054 = vpop.permute.xlu0 %1053
    %v1056 = vmul.f32 %v1024, %v1054
    %1058 = vrot.lane.b32.xlu0 %v1056, 32
    %v1059 = vpop.permute.xlu0 %1058
    %v1061 = vadd.f32 %v1051, %v1059
    %v1062 = vmul.f32 %v1043, %v1046
    %1064 = vrot.lane.b32.xlu0 %v1045, 32
    %v1065 = vpop.permute.xlu0 %1064
    %v1067 = vmul.f32 %v1043, %v1065
    %1069 = vrot.lane.b32.xlu0 %v1067, 32
    %v1070 = vpop.permute.xlu0 %1069
    %v1072 = vadd.f32 %v1062, %v1070
    %v1073 = vtanh.pop %v1061
    %1075 = vrot.lane.b32.xlu0 %v1073, 32
    %v1076 = vpop.permute.xlu0 %1075
    %v1078 = vmul.f32 %v1024, %v1076
    %v1079 = vtanh.pop %v1072
    %1081 = vrot.lane.b32.xlu0 %v1079, 32
    %v1082 = vpop.permute.xlu0 %1081
    %v1084 = vmul.f32 %v1043, %v1082
    %1086 = vrot.lane.b32.xlu0 %v1061, 96
    %v1087 = vpop.permute.xlu0 %1086
    %1089 = vst.msk [vmem:[#allocation6] sm:$0xff] %vm397, %v1087
    %1090 = vst.msk [vmem:[#allocation6] sm:$0xff] %vm399, %v1072
    %1092 = vrot.lane.b32.xlu0 %v1078, 64
    %v1093 = vpop.permute.xlu0 %1092
    %1095 = vst.msk [vmem:[#allocation5] sm:$0xff] %vm397, %v1093
    %1097 = vrot.lane.b32.xlu0 %v1084, 96
    %v1098 = vpop.permute.xlu0 %1097
    %1100 = vst.msk [vmem:[#allocation5] sm:$0xff] %vm399, %v1098
    %s1101 = scalar_lea.vmem [#allocation3], 40
    %1102 = vst.msk [vmem:[%s1101] sm:$0xff] %vm397, %v1093
    %1103 = vrot.lane.b32.xlu0 %v1084, 64
    %v1104 = vpop.permute.xlu0 %1103
    %s1106 = scalar_lea.vmem [#allocation4], 16
    %1107 = vst.msk [vmem:[%s1106] sm:$0xff] %vm397, %v1104
    %v1108 = vld [vmem:[#allocation5] sm:$0xff]
    %v1109 = vpack.c.bf16 %v1108, %v1108
    %v1111 = vsel %vm235, %v1109, 0
    %1113 = vmatpush.bf16.msra.mxu0 0
    %1114 = vmatpush.bf16.msra.mxu0 0
    %1115 = vmatpush.bf16.msra.mxu0 0
    %1116 = vmatpush.bf16.msra.mxu0 0
    %1117 = vmatpush.bf16.msra.mxu0 %v270
    %1118 = vmatpush.bf16.msra.mxu0 %v268
    %1119 = vmatpush.bf16.msra.mxu0 %v266
    %1120 = vmatpush.bf16.msra.mxu0 %v264
    %1121 = vmatmul.bf16.gmra.mxu0 %v1111
    %v1122 = vpop.f32.mrf.mxu0
    %v1123 = vadd.f32 0.0, %v1122
    %v1124 = vpop.f32.mrf.mxu0
    %1125 = vdwg.mxu0
    %1126 = vmatpush.bf16.msra.mxu0 0
    %1127 = vmatpush.bf16.msra.mxu0 0
    %1128 = vmatpush.bf16.msra.mxu0 0
    %1129 = vmatpush.bf16.msra.mxu0 0
    %1130 = vmatpush.bf16.msra.mxu0 %v271
    %1131 = vmatpush.bf16.msra.mxu0 %v269
    %1132 = vmatpush.bf16.msra.mxu0 %v267
    %1133 = vmatpush.bf16.msra.mxu0 %v265
    %1134 = vmatmul.bf16.gmra.mxu0 %v1111
    %v1135 = vpop.f32.mrf.mxu0
    %v1136 = vadd.f32 0.0, %v1135
    %v1137 = vpop.f32.mrf.mxu0
    %1138 = vdwg.mxu0
    %v1139 = vld [vmem:[%s450] sm:$0xff]
    %v1140 = vld [vmem:[%s448 + $0x8] sm:$0xff]
    %v1141 = vadd.f32 %v1123, %v1139
    %v1142 = vadd.f32 %v1136, %v1140
    %v1143 = vxor.u32 %v1141, 2147483648
    %v1144 = vmul.f32 %v1143, 1.442695
    %v1145 = vpow.pop %v1144
    %v1146 = vadd.f32 %v1145, 1.0
    %v1147 = vrcp.pop %v1146
    %v1148 = vmul.f32 %v1146, %v1147
    %v1149 = vsub.f32 1.0, %v1148
    %v1150 = vmul.f32 %v1147, %v1149
    %v1151 = vadd.f32 %v1147, %v1150
    %vm1152 = vweird.f32 %v1146
    %vm1153 = vweird.f32 %v1147
    %vm1154 = vmor %vm1152, %vm1153
    %v1155 = vsel %vm1154, %v1147, %v1151
    %v1156 = vand.u32 2147483647, %v1146
    %vm1157 = vcmp.eq.f32.partialorder %v1156, 8.507059e+37
    %v1158 = vand.u32 %v1146, 2147483648
    %v1159 = vor.u32 1.1754944e-38, %v1158
    %v1160 = vsel %vm1157, %v1159, %v1155
    %v1161 = vmul.f32 1.0, %v1160
    %v1162 = vxor.u32 %v1142, 2147483648
    %v1163 = vmul.f32 %v1162, 1.442695
    %v1164 = vpow.pop %v1163
    %v1165 = vadd.f32 %v1164, 1.0
    %v1166 = vrcp.pop %v1165
    %v1167 = vmul.f32 %v1165, %v1166
    %v1168 = vsub.f32 1.0, %v1167
    %v1169 = vmul.f32 %v1166, %v1168
    %v1170 = vadd.f32 %v1166, %v1169
    %vm1171 = vweird.f32 %v1165
    %vm1172 = vweird.f32 %v1166
    %vm1173 = vmor %vm1171, %vm1172
    %v1174 = vsel %vm1173, %v1166, %v1170
    %v1175 = vand.u32 2147483647, %v1165
    %vm1176 = vcmp.eq.f32.partialorder %v1175, 8.507059e+37
    %v1177 = vand.u32 %v1165, 2147483648
    %v1178 = vor.u32 1.1754944e-38, %v1177
    %v1179 = vsel %vm1176, %v1178, %v1174
    %v1180 = vmul.f32 1.0, %v1179
    %v1181 = vtanh.pop %v1141
    %v1182 = vtanh.pop %v1142
    %v1183 = vld [vmem:[#allocation6] sm:$0xff]
    %1185 = vrot.lane.b32.xlu0 %v1183, 32
    %v1186 = vpop.permute.xlu0 %1185
    %v1188 = vmul.f32 %v1161, %v1186
    %1190 = vrot.lane.b32.xlu0 %v1181, 32
    %v1191 = vpop.permute.xlu0 %1190
    %v1193 = vmul.f32 %v1161, %v1191
    %1195 = vrot.lane.b32.xlu0 %v1193, 32
    %v1196 = vpop.permute.xlu0 %1195
    %v1198 = vadd.f32 %v1188, %v1196
    %v1199 = vmul.f32 %v1180, %v1183
    %1201 = vrot.lane.b32.xlu0 %v1182, 32
    %v1202 = vpop.permute.xlu0 %1201
    %v1204 = vmul.f32 %v1180, %v1202
    %1206 = vrot.lane.b32.xlu0 %v1204, 32
    %v1207 = vpop.permute.xlu0 %1206
    %v1209 = vadd.f32 %v1199, %v1207
    %v1210 = vtanh.pop %v1198
    %1212 = vrot.lane.b32.xlu0 %v1210, 32
    %v1213 = vpop.permute.xlu0 %1212
    %v1215 = vmul.f32 %v1161, %v1213
    %v1216 = vtanh.pop %v1209
    %1218 = vrot.lane.b32.xlu0 %v1216, 32
    %v1219 = vpop.permute.xlu0 %1218
    %v1221 = vmul.f32 %v1180, %v1219
    %1223 = vrot.lane.b32.xlu0 %v1198, 96
    %v1224 = vpop.permute.xlu0 %1223
    %1226 = vst.msk [vmem:[#allocation6] sm:$0xff] %vm397, %v1224
    %1227 = vst.msk [vmem:[#allocation6] sm:$0xff] %vm399, %v1209
    %1229 = vrot.lane.b32.xlu0 %v1215, 64
    %v1230 = vpop.permute.xlu0 %1229
    %1232 = vst.msk [vmem:[#allocation5] sm:$0xff] %vm397, %v1230
    %1234 = vrot.lane.b32.xlu0 %v1221, 96
    %v1235 = vpop.permute.xlu0 %1234
    %1237 = vst.msk [vmem:[#allocation5] sm:$0xff] %vm399, %v1235
    %s1238 = scalar_lea.vmem [#allocation3], 48
    %1239 = vst.msk [vmem:[%s1238] sm:$0xff] %vm397, %v1230
    %1240 = vrot.lane.b32.xlu0 %v1221, 64
    %v1241 = vpop.permute.xlu0 %1240
    %s1243 = scalar_lea.vmem [#allocation4], 8
    %1244 = vst.msk [vmem:[%s1243] sm:$0xff] %vm397, %v1241
    %v1245 = vld [vmem:[#allocation5] sm:$0xff]
    %v1246 = vpack.c.bf16 %v1245, %v1245
    %v1248 = vsel %vm235, %v1246, 0
    %1250 = vmatpush.bf16.msra.mxu0 0
    %1251 = vmatpush.bf16.msra.mxu0 0
    %1252 = vmatpush.bf16.msra.mxu0 0
    %1253 = vmatpush.bf16.msra.mxu0 0
    %1254 = vmatpush.bf16.msra.mxu0 %v270
    %1255 = vmatpush.bf16.msra.mxu0 %v268
    %1256 = vmatpush.bf16.msra.mxu0 %v266
    %1257 = vmatpush.bf16.msra.mxu0 %v264
    %1258 = vmatmul.bf16.gmra.mxu0 %v1248
    %v1259 = vpop.f32.mrf.mxu0
    %v1260 = vadd.f32 0.0, %v1259
    %v1261 = vpop.f32.mrf.mxu0
    %1262 = vdwg.mxu0
    %1263 = vmatpush.bf16.msra.mxu0 0
    %1264 = vmatpush.bf16.msra.mxu0 0
    %1265 = vmatpush.bf16.msra.mxu0 0
    %1266 = vmatpush.bf16.msra.mxu0 0
    %1267 = vmatpush.bf16.msra.mxu0 %v271
    %1268 = vmatpush.bf16.msra.mxu0 %v269
    %1269 = vmatpush.bf16.msra.mxu0 %v267
    %1270 = vmatpush.bf16.msra.mxu0 %v265
    %1271 = vmatmul.bf16.gmra.mxu0 %v1248
    %v1272 = vpop.f32.mrf.mxu0
    %v1273 = vadd.f32 0.0, %v1272
    %v1274 = vpop.f32.mrf.mxu0
    %1275 = vdwg.mxu0
    %v1276 = vld [vmem:[%s310] sm:$0xff]
    %v1277 = vld [vmem:[#allocation2 + $0x8] sm:$0xff]
    %v1278 = vadd.f32 %v1260, %v1276
    %v1279 = vadd.f32 %v1273, %v1277
    %v1280 = vxor.u32 %v1278, 2147483648
    %v1281 = vmul.f32 %v1280, 1.442695
    %v1282 = vpow.pop %v1281
    %v1283 = vadd.f32 %v1282, 1.0
    %v1284 = vrcp.pop %v1283
    %v1285 = vmul.f32 %v1283, %v1284
    %v1286 = vsub.f32 1.0, %v1285
    %v1287 = vmul.f32 %v1284, %v1286
    %v1288 = vadd.f32 %v1284, %v1287
    %vm1289 = vweird.f32 %v1283
    %vm1290 = vweird.f32 %v1284
    %vm1291 = vmor %vm1289, %vm1290
    %v1292 = vsel %vm1291, %v1284, %v1288
    %v1293 = vand.u32 2147483647, %v1283
    %vm1294 = vcmp.eq.f32.partialorder %v1293, 8.507059e+37
    %v1295 = vand.u32 %v1283, 2147483648
    %v1296 = vor.u32 1.1754944e-38, %v1295
    %v1297 = vsel %vm1294, %v1296, %v1292
    %v1298 = vmul.f32 1.0, %v1297
    %v1299 = vxor.u32 %v1279, 2147483648
    %v1300 = vmul.f32 %v1299, 1.442695
    %v1301 = vpow.pop %v1300
    %v1302 = vadd.f32 %v1301, 1.0
    %v1303 = vrcp.pop %v1302
    %v1304 = vmul.f32 %v1302, %v1303
    %v1305 = vsub.f32 1.0, %v1304
    %v1306 = vmul.f32 %v1303, %v1305
    %v1307 = vadd.f32 %v1303, %v1306
    %vm1308 = vweird.f32 %v1302
    %vm1309 = vweird.f32 %v1303
    %vm1310 = vmor %vm1308, %vm1309
    %v1311 = vsel %vm1310, %v1303, %v1307
    %v1312 = vand.u32 2147483647, %v1302
    %vm1313 = vcmp.eq.f32.partialorder %v1312, 8.507059e+37
    %v1314 = vand.u32 %v1302, 2147483648
    %v1315 = vor.u32 1.1754944e-38, %v1314
    %v1316 = vsel %vm1313, %v1315, %v1311
    %v1317 = vmul.f32 1.0, %v1316
    %v1318 = vtanh.pop %v1278
    %v1319 = vtanh.pop %v1279
    %v1320 = vld [vmem:[#allocation6] sm:$0xff]
    %1322 = vrot.lane.b32.xlu0 %v1320, 32
    %v1323 = vpop.permute.xlu0 %1322
    %v1325 = vmul.f32 %v1298, %v1323
    %1327 = vrot.lane.b32.xlu0 %v1318, 32
    %v1328 = vpop.permute.xlu0 %1327
    %v1330 = vmul.f32 %v1298, %v1328
    %1332 = vrot.lane.b32.xlu0 %v1330, 32
    %v1333 = vpop.permute.xlu0 %1332
    %v1335 = vadd.f32 %v1325, %v1333
    %v1336 = vmul.f32 %v1317, %v1320
    %1338 = vrot.lane.b32.xlu0 %v1319, 32
    %v1339 = vpop.permute.xlu0 %1338
    %v1341 = vmul.f32 %v1317, %v1339
    %1343 = vrot.lane.b32.xlu0 %v1341, 32
    %v1344 = vpop.permute.xlu0 %1343
    %v1346 = vadd.f32 %v1336, %v1344
    %v1347 = vtanh.pop %v1335
    %1349 = vrot.lane.b32.xlu0 %v1347, 32
    %v1350 = vpop.permute.xlu0 %1349
    %v1352 = vmul.f32 %v1298, %v1350
    %v1353 = vtanh.pop %v1346
    %1355 = vrot.lane.b32.xlu0 %v1353, 32
    %v1356 = vpop.permute.xlu0 %1355
    %v1358 = vmul.f32 %v1317, %v1356
    %1360 = vrot.lane.b32.xlu0 %v1335, 96
    %v1361 = vpop.permute.xlu0 %1360
    %1363 = vst.msk [vmem:[#allocation6] sm:$0xff] %vm397, %v1361
    %1364 = vst.msk [vmem:[#allocation6] sm:$0xff] %vm399, %v1346
    %1366 = vrot.lane.b32.xlu0 %v1352, 64
    %v1367 = vpop.permute.xlu0 %1366
    %1369 = vst.msk [vmem:[#allocation5] sm:$0xff] %vm397, %v1367
    %1371 = vrot.lane.b32.xlu0 %v1358, 96
    %v1372 = vpop.permute.xlu0 %1371
    %1374 = vst.msk [vmem:[#allocation5] sm:$0xff] %vm399, %v1372
    %s1375 = scalar_lea.vmem [#allocation3], 56
    %1376 = vst.msk [vmem:[%s1375] sm:$0xff] %vm397, %v1367
    %1377 = vrot.lane.b32.xlu0 %v1358, 64
    %v1378 = vpop.permute.xlu0 %1377
    %1380 = vst.msk [vmem:[#allocation4] sm:$0xff] %vm397, %v1378
    %v1381 = vld [vmem:[#allocation3] sm:$0xff]
    %v1382 = vld [vmem:[#allocation3 + $0x8] sm:$0xff]
    %v1383 = vld [vmem:[#allocation3 + $0x10] sm:$0xff]
    %v1384 = vld [vmem:[#allocation3 + $0x18] sm:$0xff]
    %v1385 = vld [vmem:[#allocation3 + $0x20] sm:$0xff]
    %v1386 = vld [vmem:[#allocation3 + $0x28] sm:$0xff]
    %v1387 = vld [vmem:[#allocation3 + $0x30] sm:$0xff]
    %v1388 = vld [vmem:[#allocation3 + $0x38] sm:$0xff]
    %v1389 = vpack.c.bf16 %v1382, %v1381
    %v1390 = vpack.c.bf16 %v1384, %v1383
    %v1391 = vpack.c.bf16 %v1386, %v1385
    %v1392 = vpack.c.bf16 %v1388, %v1387
    %v1393 = vld [vmem:[#allocation4] sm:$0xff]
    %v1394 = vld [vmem:[#allocation4 + $0x8] sm:$0xff]
    %v1395 = vld [vmem:[#allocation4 + $0x10] sm:$0xff]
    %v1396 = vld [vmem:[#allocation4 + $0x18] sm:$0xff]
    %v1397 = vld [vmem:[#allocation4 + $0x20] sm:$0xff]
    %v1398 = vld [vmem:[#allocation4 + $0x28] sm:$0xff]
    %v1399 = vld [vmem:[#allocation4 + $0x30] sm:$0xff]
    %v1400 = vld [vmem:[#allocation4 + $0x38] sm:$0xff]
    %v1401 = vpack.c.bf16 %v1394, %v1393
    %v1402 = vpack.c.bf16 %v1396, %v1395
    %v1403 = vpack.c.bf16 %v1398, %v1397
    %v1404 = vpack.c.bf16 %v1400, %v1399
    %v1405 = vld [vmem:[%s4] sm:$0xff]
    %v1406 = vld [vmem:[%s4 + $0x8] sm:$0xff]
    %v1407 = vld [vmem:[%s4 + $0x10] sm:$0xff]
    %v1408 = vld [vmem:[%s4 + $0x18] sm:$0xff]
    %v1409 = vld [vmem:[#allocation8] sm:$0xff]
    %v1410 = vld [vmem:[#allocation8 + $0x8] sm:$0xff]
    %v1411 = vld [vmem:[#allocation8 + $0x10] sm:$0xff]
    %v1412 = vld [vmem:[#allocation8 + $0x18] sm:$0xff]
    %v1417 = vunpack.c.l.b16 %v1409
    %v1418 = vunpack.c.h.b16 %v1409
    %v1419 = vunpack.c.l.b16 %v1410
    %v1420 = vunpack.c.h.b16 %v1410
    %v1421 = vunpack.c.l.b16 %v1411
    %v1422 = vunpack.c.h.b16 %v1411
    %v1423 = vunpack.c.l.b16 %v1412
    %v1424 = vunpack.c.h.b16 %v1412
    %v1425 = vpack.c.b16 %v1419, %v1417
    %v1426 = vpack.c.b16 %v1420, %v1418
    %v1427 = vpack.c.b16 %v1423, %v1421
    %v1428 = vpack.c.b16 %v1424, %v1422
    %v1434 = vsel %vm397, %v1401, 0
    %v1437 = vsel %vm397, %v1402, 0
    %v1440 = vsel %vm397, %v1403, 0
    %v1443 = vsel %vm397, %v1404, 0
    %1445 = vmatpush.bf16.msra.mxu0 0
    %1446 = vmatpush.bf16.msra.mxu0 0
    %1447 = vmatpush.bf16.msra.mxu0 0
    %1448 = vmatpush.bf16.msra.mxu0 0
    %1449 = vmatpush.bf16.msra.mxu0 0
    %1450 = vmatpush.bf16.msra.mxu0 0
    %1451 = vmatpush.bf16.msra.mxu0 %v1427
    %1452 = vmatpush.bf16.msra.mxu0 %v1425
    %1453 = vmatmul.bf16.gmra.mxu0 %v1434
    %v1454 = vpop.f32.mrf.mxu0
    %v1455 = vadd.f32 0.0, %v1454
    %v1456 = vpop.f32.mrf.mxu0
    %v1457 = vadd.f32 0.0, %v1456
    %1458 = vmatmul.bf16.gmra.mxu0 %v1437
    %v1459 = vpop.f32.mrf.mxu0
    %v1460 = vadd.f32 0.0, %v1459
    %v1461 = vpop.f32.mrf.mxu0
    %v1462 = vadd.f32 0.0, %v1461
    %1463 = vmatmul.bf16.gmra.mxu0 %v1440
    %v1464 = vpop.f32.mrf.mxu0
    %v1465 = vadd.f32 0.0, %v1464
    %v1466 = vpop.f32.mrf.mxu0
    %v1467 = vadd.f32 0.0, %v1466
    %1468 = vmatmul.bf16.gmra.mxu0 %v1443
    %v1469 = vpop.f32.mrf.mxu0
    %v1470 = vadd.f32 0.0, %v1469
    %v1471 = vpop.f32.mrf.mxu0
    %v1472 = vadd.f32 0.0, %v1471
    %1473 = vdwg.mxu0
    %1474 = vmatpush.bf16.msra.mxu0 0
    %1475 = vmatpush.bf16.msra.mxu0 0
    %1476 = vmatpush.bf16.msra.mxu0 0
    %1477 = vmatpush.bf16.msra.mxu0 0
    %1478 = vmatpush.bf16.msra.mxu0 0
    %1479 = vmatpush.bf16.msra.mxu0 0
    %1480 = vmatpush.bf16.msra.mxu0 %v1428
    %1481 = vmatpush.bf16.msra.mxu0 %v1426
    %1482 = vmatmul.bf16.gmra.mxu0 %v1434
    %v1483 = vpop.f32.mrf.mxu0
    %v1484 = vadd.f32 0.0, %v1483
    %v1485 = vpop.f32.mrf.mxu0
    %v1486 = vadd.f32 0.0, %v1485
    %1487 = vmatmul.bf16.gmra.mxu0 %v1437
    %v1488 = vpop.f32.mrf.mxu0
    %v1489 = vadd.f32 0.0, %v1488
    %v1490 = vpop.f32.mrf.mxu0
    %v1491 = vadd.f32 0.0, %v1490
    %1492 = vmatmul.bf16.gmra.mxu0 %v1440
    %v1493 = vpop.f32.mrf.mxu0
    %v1494 = vadd.f32 0.0, %v1493
    %v1495 = vpop.f32.mrf.mxu0
    %v1496 = vadd.f32 0.0, %v1495
    %1497 = vmatmul.bf16.gmra.mxu0 %v1443
    %v1498 = vpop.f32.mrf.mxu0
    %v1499 = vadd.f32 0.0, %v1498
    %v1500 = vpop.f32.mrf.mxu0
    %v1501 = vadd.f32 0.0, %v1500
    %1502 = vdwg.mxu0
    %v1507 = vunpack.c.l.b16 %v1405
    %v1508 = vunpack.c.h.b16 %v1405
    %v1509 = vunpack.c.l.b16 %v1406
    %v1510 = vunpack.c.h.b16 %v1406
    %v1511 = vunpack.c.l.b16 %v1407
    %v1512 = vunpack.c.h.b16 %v1407
    %v1513 = vunpack.c.l.b16 %v1408
    %v1514 = vunpack.c.h.b16 %v1408
    %v1515 = vpack.c.b16 %v1509, %v1507
    %v1516 = vpack.c.b16 %v1510, %v1508
    %v1517 = vpack.c.b16 %v1513, %v1511
    %v1518 = vpack.c.b16 %v1514, %v1512
    %v1524 = vsel %vm397, %v1389, 0
    %v1527 = vsel %vm397, %v1390, 0
    %v1530 = vsel %vm397, %v1391, 0
    %v1533 = vsel %vm397, %v1392, 0
    %1535 = vmatpush.bf16.msra.mxu0 0
    %1536 = vmatpush.bf16.msra.mxu0 0
    %1537 = vmatpush.bf16.msra.mxu0 0
    %1538 = vmatpush.bf16.msra.mxu0 0
    %1539 = vmatpush.bf16.msra.mxu0 0
    %1540 = vmatpush.bf16.msra.mxu0 0
    %1541 = vmatpush.bf16.msra.mxu0 %v1517
    %1542 = vmatpush.bf16.msra.mxu0 %v1515
    %1543 = vmatmul.bf16.gmra.mxu0 %v1524
    %v1544 = vpop.f32.mrf.mxu0
    %v1545 = vadd.f32 %v1455, %v1544
    %v1546 = vpop.f32.mrf.mxu0
    %v1547 = vadd.f32 %v1457, %v1546
    %1548 = vmatmul.bf16.gmra.mxu0 %v1527
    %v1549 = vpop.f32.mrf.mxu0
    %v1550 = vadd.f32 %v1460, %v1549
    %v1551 = vpop.f32.mrf.mxu0
    %v1552 = vadd.f32 %v1462, %v1551
    %1553 = vmatmul.bf16.gmra.mxu0 %v1530
    %v1554 = vpop.f32.mrf.mxu0
    %v1555 = vadd.f32 %v1465, %v1554
    %v1556 = vpop.f32.mrf.mxu0
    %v1557 = vadd.f32 %v1467, %v1556
    %1558 = vmatmul.bf16.gmra.mxu0 %v1533
    %v1559 = vpop.f32.mrf.mxu0
    %v1560 = vadd.f32 %v1470, %v1559
    %v1561 = vpop.f32.mrf.mxu0
    %v1562 = vadd.f32 %v1472, %v1561
    %1563 = vdwg.mxu0
    %1564 = vmatpush.bf16.msra.mxu0 0
    %1565 = vmatpush.bf16.msra.mxu0 0
    %1566 = vmatpush.bf16.msra.mxu0 0
    %1567 = vmatpush.bf16.msra.mxu0 0
    %1568 = vmatpush.bf16.msra.mxu0 0
    %1569 = vmatpush.bf16.msra.mxu0 0
    %1570 = vmatpush.bf16.msra.mxu0 %v1518
    %1571 = vmatpush.bf16.msra.mxu0 %v1516
    %1572 = vmatmul.bf16.gmra.mxu0 %v1524
    %v1573 = vpop.f32.mrf.mxu0
    %v1574 = vadd.f32 %v1484, %v1573
    %v1575 = vpop.f32.mrf.mxu0
    %v1576 = vadd.f32 %v1486, %v1575
    %1577 = vmatmul.bf16.gmra.mxu0 %v1527
    %v1578 = vpop.f32.mrf.mxu0
    %v1579 = vadd.f32 %v1489, %v1578
    %v1580 = vpop.f32.mrf.mxu0
    %v1581 = vadd.f32 %v1491, %v1580
    %1582 = vmatmul.bf16.gmra.mxu0 %v1530
    %v1583 = vpop.f32.mrf.mxu0
    %v1584 = vadd.f32 %v1494, %v1583
    %v1585 = vpop.f32.mrf.mxu0
    %v1586 = vadd.f32 %v1496, %v1585
    %1587 = vmatmul.bf16.gmra.mxu0 %v1533
    %v1588 = vpop.f32.mrf.mxu0
    %v1589 = vadd.f32 %v1499, %v1588
    %v1590 = vpop.f32.mrf.mxu0
    %v1591 = vadd.f32 %v1501, %v1590
    %1592 = vdwg.mxu0
    %v1593 = vld [vmem:[%s6] sm:$0x3]
    %v1595 = vperm.slane %v1593, 0
    %v1596 = vperm.slane %v1593, 1
    %v1599 = vadd.f32 %v1545, %v1595
    %v1600 = vadd.f32 %v1574, %v1596
    %v1601 = vadd.f32 %v1547, %v1595
    %v1602 = vadd.f32 %v1576, %v1596
    %v1603 = vadd.f32 %v1550, %v1595
    %v1604 = vadd.f32 %v1579, %v1596
    %v1605 = vadd.f32 %v1552, %v1595
    %v1606 = vadd.f32 %v1581, %v1596
    %v1607 = vadd.f32 %v1555, %v1595
    %v1608 = vadd.f32 %v1584, %v1596
    %v1609 = vadd.f32 %v1557, %v1595
    %v1610 = vadd.f32 %v1586, %v1596
    %v1611 = vadd.f32 %v1560, %v1595
    %v1612 = vadd.f32 %v1589, %v1596
    %v1613 = vadd.f32 %v1562, %v1595
    %v1614 = vadd.f32 %v1591, %v1596
    %1615 = vst [vmem:[#allocation2] sm:$0xff] %v1599
    %1616 = vst [vmem:[#allocation2 + $0x8] sm:$0xff] %v1600
    %1617 = vst [vmem:[#allocation2 + $0x10] sm:$0xff] %v1601
    %1618 = vst [vmem:[#allocation2 + $0x18] sm:$0xff] %v1602
    %1619 = vst [vmem:[#allocation2 + $0x20] sm:$0xff] %v1603
    %1620 = vst [vmem:[#allocation2 + $0x28] sm:$0xff] %v1604
    %1621 = vst [vmem:[#allocation2 + $0x30] sm:$0xff] %v1605
    %1622 = vst [vmem:[#allocation2 + $0x38] sm:$0xff] %v1606
    %1623 = vst [vmem:[#allocation2 + $0x40] sm:$0xff] %v1607
    %1624 = vst [vmem:[#allocation2 + $0x48] sm:$0xff] %v1608
    %1625 = vst [vmem:[#allocation2 + $0x50] sm:$0xff] %v1609
    %1626 = vst [vmem:[#allocation2 + $0x58] sm:$0xff] %v1610
    %1627 = vst [vmem:[#allocation2 + $0x60] sm:$0xff] %v1611
    %1628 = vst [vmem:[#allocation2 + $0x68] sm:$0xff] %v1612
    %1629 = vst [vmem:[#allocation2 + $0x70] sm:$0xff] %v1613
    %1630 = vst [vmem:[#allocation2 + $0x78] sm:$0xff] %v1614
    %v1631 = vld [vmem:[#allocation10] sm:$0xff]
    %v1632 = vld [vmem:[#allocation10 + $0x8] sm:$0xff]
    %v1633 = vld [vmem:[#allocation10 + $0x10] sm:$0xff]
    %v1634 = vld [vmem:[#allocation10 + $0x18] sm:$0xff]
    %v1635 = vld [vmem:[#allocation10 + $0x20] sm:$0xff]
    %v1636 = vld [vmem:[#allocation10 + $0x28] sm:$0xff]
    %v1637 = vld [vmem:[#allocation10 + $0x30] sm:$0xff]
    %v1638 = vld [vmem:[#allocation10 + $0x38] sm:$0xff]
    %1639 = vst.msk [vmem:[#allocation5] sm:$0xff] %vm235, 0.0
    %1640 = vst.msk [vmem:[#allocation6] sm:$0xff] %vm235, 0.0
    %v1641 = vld [vmem:[#allocation5] sm:$0xff]
    %v1642 = vpack.c.bf16 %v1641, %v1641
    %v1651 = vunpack.c.l.b16 %v1631
    %v1652 = vunpack.c.h.b16 %v1631
    %v1653 = vunpack.c.l.b16 %v1632
    %v1654 = vunpack.c.h.b16 %v1632
    %v1655 = vunpack.c.l.b16 %v1633
    %v1656 = vunpack.c.h.b16 %v1633
    %v1657 = vunpack.c.l.b16 %v1634
    %v1658 = vunpack.c.h.b16 %v1634
    %v1659 = vunpack.c.l.b16 %v1635
    %v1660 = vunpack.c.h.b16 %v1635
    %v1661 = vunpack.c.l.b16 %v1636
    %v1662 = vunpack.c.h.b16 %v1636
    %v1663 = vunpack.c.l.b16 %v1637
    %v1664 = vunpack.c.h.b16 %v1637
    %v1665 = vunpack.c.l.b16 %v1638
    %v1666 = vunpack.c.h.b16 %v1638
    %v1667 = vpack.c.b16 %v1653, %v1651
    %v1668 = vpack.c.b16 %v1654, %v1652
    %v1669 = vpack.c.b16 %v1657, %v1655
    %v1670 = vpack.c.b16 %v1658, %v1656
    %v1671 = vpack.c.b16 %v1661, %v1659
    %v1672 = vpack.c.b16 %v1662, %v1660
    %v1673 = vpack.c.b16 %v1665, %v1663
    %v1674 = vpack.c.b16 %v1666, %v1664
    %v1684 = vsel %vm235, %v1642, 0
    %1686 = vmatpush.bf16.msra.mxu0 0
    %1687 = vmatpush.bf16.msra.mxu0 0
    %1688 = vmatpush.bf16.msra.mxu0 0
    %1689 = vmatpush.bf16.msra.mxu0 0
    %1690 = vmatpush.bf16.msra.mxu0 %v1673
    %1691 = vmatpush.bf16.msra.mxu0 %v1671
    %1692 = vmatpush.bf16.msra.mxu0 %v1669
    %1693 = vmatpush.bf16.msra.mxu0 %v1667
    %1694 = vmatmul.bf16.gmra.mxu0 %v1684
    %v1695 = vpop.f32.mrf.mxu0
    %v1696 = vadd.f32 0.0, %v1695
    %v1697 = vpop.f32.mrf.mxu0
    %1698 = vdwg.mxu0
    %1699 = vmatpush.bf16.msra.mxu0 0
    %1700 = vmatpush.bf16.msra.mxu0 0
    %1701 = vmatpush.bf16.msra.mxu0 0
    %1702 = vmatpush.bf16.msra.mxu0 0
    %1703 = vmatpush.bf16.msra.mxu0 %v1674
    %1704 = vmatpush.bf16.msra.mxu0 %v1672
    %1705 = vmatpush.bf16.msra.mxu0 %v1670
    %1706 = vmatpush.bf16.msra.mxu0 %v1668
    %1707 = vmatmul.bf16.gmra.mxu0 %v1684
    %v1708 = vpop.f32.mrf.mxu0
    %v1709 = vadd.f32 0.0, %v1708
    %v1710 = vpop.f32.mrf.mxu0
    %1711 = vdwg.mxu0
    %v1712 = vld [vmem:[#allocation2] sm:$0xff]
    %v1713 = vld [vmem:[%s310 + $0x8] sm:$0xff]
    %v1714 = vadd.f32 %v1696, %v1712
    %v1715 = vadd.f32 %v1709, %v1713
    %v1716 = vxor.u32 %v1714, 2147483648
    %v1717 = vmul.f32 %v1716, 1.442695
    %v1718 = vpow.pop %v1717
    %v1719 = vadd.f32 %v1718, 1.0
    %v1720 = vrcp.pop %v1719
    %v1721 = vmul.f32 %v1719, %v1720
    %v1722 = vsub.f32 1.0, %v1721
    %v1723 = vmul.f32 %v1720, %v1722
    %v1724 = vadd.f32 %v1720, %v1723
    %vm1725 = vweird.f32 %v1719
    %vm1726 = vweird.f32 %v1720
    %vm1727 = vmor %vm1725, %vm1726
    %v1728 = vsel %vm1727, %v1720, %v1724
    %v1729 = vand.u32 2147483647, %v1719
    %vm1730 = vcmp.eq.f32.partialorder %v1729, 8.507059e+37
    %v1731 = vand.u32 %v1719, 2147483648
    %v1732 = vor.u32 1.1754944e-38, %v1731
    %v1733 = vsel %vm1730, %v1732, %v1728
    %v1734 = vmul.f32 1.0, %v1733
    %v1735 = vxor.u32 %v1715, 2147483648
    %v1736 = vmul.f32 %v1735, 1.442695
    %v1737 = vpow.pop %v1736
    %v1738 = vadd.f32 %v1737, 1.0
    %v1739 = vrcp.pop %v1738
    %v1740 = vmul.f32 %v1738, %v1739
    %v1741 = vsub.f32 1.0, %v1740
    %v1742 = vmul.f32 %v1739, %v1741
    %v1743 = vadd.f32 %v1739, %v1742
    %vm1744 = vweird.f32 %v1738
    %vm1745 = vweird.f32 %v1739
    %vm1746 = vmor %vm1744, %vm1745
    %v1747 = vsel %vm1746, %v1739, %v1743
    %v1748 = vand.u32 2147483647, %v1738
    %vm1749 = vcmp.eq.f32.partialorder %v1748, 8.507059e+37
    %v1750 = vand.u32 %v1738, 2147483648
    %v1751 = vor.u32 1.1754944e-38, %v1750
    %v1752 = vsel %vm1749, %v1751, %v1747
    %v1753 = vmul.f32 1.0, %v1752
    %v1754 = vtanh.pop %v1714
    %v1755 = vtanh.pop %v1715
    %v1756 = vld [vmem:[#allocation6] sm:$0xff]
    %1758 = vrot.lane.b32.xlu0 %v1756, 32
    %v1759 = vpop.permute.xlu0 %1758
    %v1761 = vmul.f32 %v1734, %v1759
    %1763 = vrot.lane.b32.xlu0 %v1754, 32
    %v1764 = vpop.permute.xlu0 %1763
    %v1766 = vmul.f32 %v1734, %v1764
    %1768 = vrot.lane.b32.xlu0 %v1766, 32
    %v1769 = vpop.permute.xlu0 %1768
    %v1771 = vadd.f32 %v1761, %v1769
    %v1772 = vmul.f32 %v1753, %v1756
    %1774 = vrot.lane.b32.xlu0 %v1755, 32
    %v1775 = vpop.permute.xlu0 %1774
    %v1777 = vmul.f32 %v1753, %v1775
    %1779 = vrot.lane.b32.xlu0 %v1777, 32
    %v1780 = vpop.permute.xlu0 %1779
    %v1782 = vadd.f32 %v1772, %v1780
    %v1783 = vtanh.pop %v1771
    %1785 = vrot.lane.b32.xlu0 %v1783, 32
    %v1786 = vpop.permute.xlu0 %1785
    %v1788 = vmul.f32 %v1734, %v1786
    %v1789 = vtanh.pop %v1782
    %1791 = vrot.lane.b32.xlu0 %v1789, 32
    %v1792 = vpop.permute.xlu0 %1791
    %v1794 = vmul.f32 %v1753, %v1792
    %1796 = vrot.lane.b32.xlu0 %v1771, 96
    %v1797 = vpop.permute.xlu0 %1796
    %1799 = vst.msk [vmem:[#allocation6] sm:$0xff] %vm397, %v1797
    %1800 = vst.msk [vmem:[#allocation6] sm:$0xff] %vm399, %v1782
    %1802 = vrot.lane.b32.xlu0 %v1788, 64
    %v1803 = vpop.permute.xlu0 %1802
    %1805 = vst.msk [vmem:[#allocation5] sm:$0xff] %vm397, %v1803
    %1807 = vrot.lane.b32.xlu0 %v1794, 96
    %v1808 = vpop.permute.xlu0 %1807
    %1810 = vst.msk [vmem:[#allocation5] sm:$0xff] %vm399, %v1808
    %1811 = vst.msk [vmem:[#allocation3] sm:$0xff] %vm397, %v1803
    %1812 = vrot.lane.b32.xlu0 %v1794, 64
    %v1813 = vpop.permute.xlu0 %1812
    %1815 = vst.msk [vmem:[%s415] sm:$0xff] %vm397, %v1813
    %v1816 = vld [vmem:[#allocation5] sm:$0xff]
    %v1817 = vpack.c.bf16 %v1816, %v1816
    %v1819 = vsel %vm235, %v1817, 0
    %1821 = vmatpush.bf16.msra.mxu0 0
    %1822 = vmatpush.bf16.msra.mxu0 0
    %1823 = vmatpush.bf16.msra.mxu0 0
    %1824 = vmatpush.bf16.msra.mxu0 0
    %1825 = vmatpush.bf16.msra.mxu0 %v1673
    %1826 = vmatpush.bf16.msra.mxu0 %v1671
    %1827 = vmatpush.bf16.msra.mxu0 %v1669
    %1828 = vmatpush.bf16.msra.mxu0 %v1667
    %1829 = vmatmul.bf16.gmra.mxu0 %v1819
    %v1830 = vpop.f32.mrf.mxu0
    %v1831 = vadd.f32 0.0, %v1830
    %v1832 = vpop.f32.mrf.mxu0
    %1833 = vdwg.mxu0
    %1834 = vmatpush.bf16.msra.mxu0 0
    %1835 = vmatpush.bf16.msra.mxu0 0
    %1836 = vmatpush.bf16.msra.mxu0 0
    %1837 = vmatpush.bf16.msra.mxu0 0
    %1838 = vmatpush.bf16.msra.mxu0 %v1674
    %1839 = vmatpush.bf16.msra.mxu0 %v1672
    %1840 = vmatpush.bf16.msra.mxu0 %v1670
    %1841 = vmatpush.bf16.msra.mxu0 %v1668
    %1842 = vmatmul.bf16.gmra.mxu0 %v1819
    %v1843 = vpop.f32.mrf.mxu0
    %v1844 = vadd.f32 0.0, %v1843
    %v1845 = vpop.f32.mrf.mxu0
    %1846 = vdwg.mxu0
    %v1847 = vld [vmem:[%s448] sm:$0xff]
    %v1848 = vld [vmem:[%s450 + $0x8] sm:$0xff]
    %v1849 = vadd.f32 %v1831, %v1847
    %v1850 = vadd.f32 %v1844, %v1848
    %v1851 = vxor.u32 %v1849, 2147483648
    %v1852 = vmul.f32 %v1851, 1.442695
    %v1853 = vpow.pop %v1852
    %v1854 = vadd.f32 %v1853, 1.0
    %v1855 = vrcp.pop %v1854
    %v1856 = vmul.f32 %v1854, %v1855
    %v1857 = vsub.f32 1.0, %v1856
    %v1858 = vmul.f32 %v1855, %v1857
    %v1859 = vadd.f32 %v1855, %v1858
    %vm1860 = vweird.f32 %v1854
    %vm1861 = vweird.f32 %v1855
    %vm1862 = vmor %vm1860, %vm1861
    %v1863 = vsel %vm1862, %v1855, %v1859
    %v1864 = vand.u32 2147483647, %v1854
    %vm1865 = vcmp.eq.f32.partialorder %v1864, 8.507059e+37
    %v1866 = vand.u32 %v1854, 2147483648
    %v1867 = vor.u32 1.1754944e-38, %v1866
    %v1868 = vsel %vm1865, %v1867, %v1863
    %v1869 = vmul.f32 1.0, %v1868
    %v1870 = vxor.u32 %v1850, 2147483648
    %v1871 = vmul.f32 %v1870, 1.442695
    %v1872 = vpow.pop %v1871
    %v1873 = vadd.f32 %v1872, 1.0
    %v1874 = vrcp.pop %v1873
    %v1875 = vmul.f32 %v1873, %v1874
    %v1876 = vsub.f32 1.0, %v1875
    %v1877 = vmul.f32 %v1874, %v1876
    %v1878 = vadd.f32 %v1874, %v1877
    %vm1879 = vweird.f32 %v1873
    %vm1880 = vweird.f32 %v1874
    %vm1881 = vmor %vm1879, %vm1880
    %v1882 = vsel %vm1881, %v1874, %v1878
    %v1883 = vand.u32 2147483647, %v1873
    %vm1884 = vcmp.eq.f32.partialorder %v1883, 8.507059e+37
    %v1885 = vand.u32 %v1873, 2147483648
    %v1886 = vor.u32 1.1754944e-38, %v1885
    %v1887 = vsel %vm1884, %v1886, %v1882
    %v1888 = vmul.f32 1.0, %v1887
    %v1889 = vtanh.pop %v1849
    %v1890 = vtanh.pop %v1850
    %v1891 = vld [vmem:[#allocation6] sm:$0xff]
    %1893 = vrot.lane.b32.xlu0 %v1891, 32
    %v1894 = vpop.permute.xlu0 %1893
    %v1896 = vmul.f32 %v1869, %v1894
    %1898 = vrot.lane.b32.xlu0 %v1889, 32
    %v1899 = vpop.permute.xlu0 %1898
    %v1901 = vmul.f32 %v1869, %v1899
    %1903 = vrot.lane.b32.xlu0 %v1901, 32
    %v1904 = vpop.permute.xlu0 %1903
    %v1906 = vadd.f32 %v1896, %v1904
    %v1907 = vmul.f32 %v1888, %v1891
    %1909 = vrot.lane.b32.xlu0 %v1890, 32
    %v1910 = vpop.permute.xlu0 %1909
    %v1912 = vmul.f32 %v1888, %v1910
    %1914 = vrot.lane.b32.xlu0 %v1912, 32
    %v1915 = vpop.permute.xlu0 %1914
    %v1917 = vadd.f32 %v1907, %v1915
    %v1918 = vtanh.pop %v1906
    %1920 = vrot.lane.b32.xlu0 %v1918, 32
    %v1921 = vpop.permute.xlu0 %1920
    %v1923 = vmul.f32 %v1869, %v1921
    %v1924 = vtanh.pop %v1917
    %1926 = vrot.lane.b32.xlu0 %v1924, 32
    %v1927 = vpop.permute.xlu0 %1926
    %v1929 = vmul.f32 %v1888, %v1927
    %1931 = vrot.lane.b32.xlu0 %v1906, 96
    %v1932 = vpop.permute.xlu0 %1931
    %1934 = vst.msk [vmem:[#allocation6] sm:$0xff] %vm397, %v1932
    %1935 = vst.msk [vmem:[#allocation6] sm:$0xff] %vm399, %v1917
    %1937 = vrot.lane.b32.xlu0 %v1923, 64
    %v1938 = vpop.permute.xlu0 %1937
    %1940 = vst.msk [vmem:[#allocation5] sm:$0xff] %vm397, %v1938
    %1942 = vrot.lane.b32.xlu0 %v1929, 96
    %v1943 = vpop.permute.xlu0 %1942
    %1945 = vst.msk [vmem:[#allocation5] sm:$0xff] %vm399, %v1943
    %1946 = vst.msk [vmem:[%s549] sm:$0xff] %vm397, %v1938
    %1947 = vrot.lane.b32.xlu0 %v1929, 64
    %v1948 = vpop.permute.xlu0 %1947
    %1950 = vst.msk [vmem:[%s554] sm:$0xff] %vm397, %v1948
    %v1951 = vld [vmem:[#allocation5] sm:$0xff]
    %v1952 = vpack.c.bf16 %v1951, %v1951
    %v1954 = vsel %vm235, %v1952, 0
    %1956 = vmatpush.bf16.msra.mxu0 0
    %1957 = vmatpush.bf16.msra.mxu0 0
    %1958 = vmatpush.bf16.msra.mxu0 0
    %1959 = vmatpush.bf16.msra.mxu0 0
    %1960 = vmatpush.bf16.msra.mxu0 %v1673
    %1961 = vmatpush.bf16.msra.mxu0 %v1671
    %1962 = vmatpush.bf16.msra.mxu0 %v1669
    %1963 = vmatpush.bf16.msra.mxu0 %v1667
    %1964 = vmatmul.bf16.gmra.mxu0 %v1954
    %v1965 = vpop.f32.mrf.mxu0
    %v1966 = vadd.f32 0.0, %v1965
    %v1967 = vpop.f32.mrf.mxu0
    %1968 = vdwg.mxu0
    %1969 = vmatpush.bf16.msra.mxu0 0
    %1970 = vmatpush.bf16.msra.mxu0 0
    %1971 = vmatpush.bf16.msra.mxu0 0
    %1972 = vmatpush.bf16.msra.mxu0 0
    %1973 = vmatpush.bf16.msra.mxu0 %v1674
    %1974 = vmatpush.bf16.msra.mxu0 %v1672
    %1975 = vmatpush.bf16.msra.mxu0 %v1670
    %1976 = vmatpush.bf16.msra.mxu0 %v1668
    %1977 = vmatmul.bf16.gmra.mxu0 %v1954
    %v1978 = vpop.f32.mrf.mxu0
    %v1979 = vadd.f32 0.0, %v1978
    %v1980 = vpop.f32.mrf.mxu0
    %1981 = vdwg.mxu0
    %v1982 = vld [vmem:[%s587] sm:$0xff]
    %v1983 = vld [vmem:[%s589 + $0x8] sm:$0xff]
    %v1984 = vadd.f32 %v1966, %v1982
    %v1985 = vadd.f32 %v1979, %v1983
    %v1986 = vxor.u32 %v1984, 2147483648
    %v1987 = vmul.f32 %v1986, 1.442695
    %v1988 = vpow.pop %v1987
    %v1989 = vadd.f32 %v1988, 1.0
    %v1990 = vrcp.pop %v1989
    %v1991 = vmul.f32 %v1989, %v1990
    %v1992 = vsub.f32 1.0, %v1991
    %v1993 = vmul.f32 %v1990, %v1992
    %v1994 = vadd.f32 %v1990, %v1993
    %vm1995 = vweird.f32 %v1989
    %vm1996 = vweird.f32 %v1990
    %vm1997 = vmor %vm1995, %vm1996
    %v1998 = vsel %vm1997, %v1990, %v1994
    %v1999 = vand.u32 2147483647, %v1989
    %vm2000 = vcmp.eq.f32.partialorder %v1999, 8.507059e+37
    %v2001 = vand.u32 %v1989, 2147483648
    %v2002 = vor.u32 1.1754944e-38, %v2001
    %v2003 = vsel %vm2000, %v2002, %v1998
    %v2004 = vmul.f32 1.0, %v2003
    %v2005 = vxor.u32 %v1985, 2147483648
    %v2006 = vmul.f32 %v2005, 1.442695
    %v2007 = vpow.pop %v2006
    %v2008 = vadd.f32 %v2007, 1.0
    %v2009 = vrcp.pop %v2008
    %v2010 = vmul.f32 %v2008, %v2009
    %v2011 = vsub.f32 1.0, %v2010
    %v2012 = vmul.f32 %v2009, %v2011
    %v2013 = vadd.f32 %v2009, %v2012
    %vm2014 = vweird.f32 %v2008
    %vm2015 = vweird.f32 %v2009
    %vm2016 = vmor %vm2014, %vm2015
    %v2017 = vsel %vm2016, %v2009, %v2013
    %v2018 = vand.u32 2147483647, %v2008
    %vm2019 = vcmp.eq.f32.partialorder %v2018, 8.507059e+37
    %v2020 = vand.u32 %v2008, 2147483648
    %v2021 = vor.u32 1.1754944e-38, %v2020
    %v2022 = vsel %vm2019, %v2021, %v2017
    %v2023 = vmul.f32 1.0, %v2022
    %v2024 = vtanh.pop %v1984
    %v2025 = vtanh.pop %v1985
    %v2026 = vld [vmem:[#allocation6] sm:$0xff]
    %2028 = vrot.lane.b32.xlu0 %v2026, 32
    %v2029 = vpop.permute.xlu0 %2028
    %v2031 = vmul.f32 %v2004, %v2029
    %2033 = vrot.lane.b32.xlu0 %v2024, 32
    %v2034 = vpop.permute.xlu0 %2033
    %v2036 = vmul.f32 %v2004, %v2034
    %2038 = vrot.lane.b32.xlu0 %v2036, 32
    %v2039 = vpop.permute.xlu0 %2038
    %v2041 = vadd.f32 %v2031, %v2039
    %v2042 = vmul.f32 %v2023, %v2026
    %2044 = vrot.lane.b32.xlu0 %v2025, 32
    %v2045 = vpop.permute.xlu0 %2044
    %v2047 = vmul.f32 %v2023, %v2045
    %2049 = vrot.lane.b32.xlu0 %v2047, 32
    %v2050 = vpop.permute.xlu0 %2049
    %v2052 = vadd.f32 %v2042, %v2050
    %v2053 = vtanh.pop %v2041
    %2055 = vrot.lane.b32.xlu0 %v2053, 32
    %v2056 = vpop.permute.xlu0 %2055
    %v2058 = vmul.f32 %v2004, %v2056
    %v2059 = vtanh.pop %v2052
    %2061 = vrot.lane.b32.xlu0 %v2059, 32
    %v2062 = vpop.permute.xlu0 %2061
    %v2064 = vmul.f32 %v2023, %v2062
    %2066 = vrot.lane.b32.xlu0 %v2041, 96
    %v2067 = vpop.permute.xlu0 %2066
    %2069 = vst.msk [vmem:[#allocation6] sm:$0xff] %vm397, %v2067
    %2070 = vst.msk [vmem:[#allocation6] sm:$0xff] %vm399, %v2052
    %2072 = vrot.lane.b32.xlu0 %v2058, 64
    %v2073 = vpop.permute.xlu0 %2072
    %2075 = vst.msk [vmem:[#allocation5] sm:$0xff] %vm397, %v2073
    %2077 = vrot.lane.b32.xlu0 %v2064, 96
    %v2078 = vpop.permute.xlu0 %2077
    %2080 = vst.msk [vmem:[#allocation5] sm:$0xff] %vm399, %v2078
    %2081 = vst.msk [vmem:[%s688] sm:$0xff] %vm397, %v2073
    %2082 = vrot.lane.b32.xlu0 %v2064, 64
    %v2083 = vpop.permute.xlu0 %2082
    %2085 = vst.msk [vmem:[%s693] sm:$0xff] %vm397, %v2083
    %v2086 = vld [vmem:[#allocation5] sm:$0xff]
    %v2087 = vpack.c.bf16 %v2086, %v2086
    %v2089 = vsel %vm235, %v2087, 0
    %2091 = vmatpush.bf16.msra.mxu0 0
    %2092 = vmatpush.bf16.msra.mxu0 0
    %2093 = vmatpush.bf16.msra.mxu0 0
    %2094 = vmatpush.bf16.msra.mxu0 0
    %2095 = vmatpush.bf16.msra.mxu0 %v1673
    %2096 = vmatpush.bf16.msra.mxu0 %v1671
    %2097 = vmatpush.bf16.msra.mxu0 %v1669
    %2098 = vmatpush.bf16.msra.mxu0 %v1667
    %2099 = vmatmul.bf16.gmra.mxu0 %v2089
    %v2100 = vpop.f32.mrf.mxu0
    %v2101 = vadd.f32 0.0, %v2100
    %v2102 = vpop.f32.mrf.mxu0
    %2103 = vdwg.mxu0
    %2104 = vmatpush.bf16.msra.mxu0 0
    %2105 = vmatpush.bf16.msra.mxu0 0
    %2106 = vmatpush.bf16.msra.mxu0 0
    %2107 = vmatpush.bf16.msra.mxu0 0
    %2108 = vmatpush.bf16.msra.mxu0 %v1674
    %2109 = vmatpush.bf16.msra.mxu0 %v1672
    %2110 = vmatpush.bf16.msra.mxu0 %v1670
    %2111 = vmatpush.bf16.msra.mxu0 %v1668
    %2112 = vmatmul.bf16.gmra.mxu0 %v2089
    %v2113 = vpop.f32.mrf.mxu0
    %v2114 = vadd.f32 0.0, %v2113
    %v2115 = vpop.f32.mrf.mxu0
    %2116 = vdwg.mxu0
    %v2117 = vld [vmem:[%s726] sm:$0xff]
    %v2118 = vld [vmem:[%s728 + $0x8] sm:$0xff]
    %v2119 = vadd.f32 %v2101, %v2117
    %v2120 = vadd.f32 %v2114, %v2118
    %v2121 = vxor.u32 %v2119, 2147483648
    %v2122 = vmul.f32 %v2121, 1.442695
    %v2123 = vpow.pop %v2122
    %v2124 = vadd.f32 %v2123, 1.0
    %v2125 = vrcp.pop %v2124
    %v2126 = vmul.f32 %v2124, %v2125
    %v2127 = vsub.f32 1.0, %v2126
    %v2128 = vmul.f32 %v2125, %v2127
    %v2129 = vadd.f32 %v2125, %v2128
    %vm2130 = vweird.f32 %v2124
    %vm2131 = vweird.f32 %v2125
    %vm2132 = vmor %vm2130, %vm2131
    %v2133 = vsel %vm2132, %v2125, %v2129
    %v2134 = vand.u32 2147483647, %v2124
    %vm2135 = vcmp.eq.f32.partialorder %v2134, 8.507059e+37
    %v2136 = vand.u32 %v2124, 2147483648
    %v2137 = vor.u32 1.1754944e-38, %v2136
    %v2138 = vsel %vm2135, %v2137, %v2133
    %v2139 = vmul.f32 1.0, %v2138
    %v2140 = vxor.u32 %v2120, 2147483648
    %v2141 = vmul.f32 %v2140, 1.442695
    %v2142 = vpow.pop %v2141
    %v2143 = vadd.f32 %v2142, 1.0
    %v2144 = vrcp.pop %v2143
    %v2145 = vmul.f32 %v2143, %v2144
    %v2146 = vsub.f32 1.0, %v2145
    %v2147 = vmul.f32 %v2144, %v2146
    %v2148 = vadd.f32 %v2144, %v2147
    %vm2149 = vweird.f32 %v2143
    %vm2150 = vweird.f32 %v2144
    %vm2151 = vmor %vm2149, %vm2150
    %v2152 = vsel %vm2151, %v2144, %v2148
    %v2153 = vand.u32 2147483647, %v2143
    %vm2154 = vcmp.eq.f32.partialorder %v2153, 8.507059e+37
    %v2155 = vand.u32 %v2143, 2147483648
    %v2156 = vor.u32 1.1754944e-38, %v2155
    %v2157 = vsel %vm2154, %v2156, %v2152
    %v2158 = vmul.f32 1.0, %v2157
    %v2159 = vtanh.pop %v2119
    %v2160 = vtanh.pop %v2120
    %v2161 = vld [vmem:[#allocation6] sm:$0xff]
    %2163 = vrot.lane.b32.xlu0 %v2161, 32
    %v2164 = vpop.permute.xlu0 %2163
    %v2166 = vmul.f32 %v2139, %v2164
    %2168 = vrot.lane.b32.xlu0 %v2159, 32
    %v2169 = vpop.permute.xlu0 %2168
    %v2171 = vmul.f32 %v2139, %v2169
    %2173 = vrot.lane.b32.xlu0 %v2171, 32
    %v2174 = vpop.permute.xlu0 %2173
    %v2176 = vadd.f32 %v2166, %v2174
    %v2177 = vmul.f32 %v2158, %v2161
    %2179 = vrot.lane.b32.xlu0 %v2160, 32
    %v2180 = vpop.permute.xlu0 %2179
    %v2182 = vmul.f32 %v2158, %v2180
    %2184 = vrot.lane.b32.xlu0 %v2182, 32
    %v2185 = vpop.permute.xlu0 %2184
    %v2187 = vadd.f32 %v2177, %v2185
    %v2188 = vtanh.pop %v2176
    %2190 = vrot.lane.b32.xlu0 %v2188, 32
    %v2191 = vpop.permute.xlu0 %2190
    %v2193 = vmul.f32 %v2139, %v2191
    %v2194 = vtanh.pop %v2187
    %2196 = vrot.lane.b32.xlu0 %v2194, 32
    %v2197 = vpop.permute.xlu0 %2196
    %v2199 = vmul.f32 %v2158, %v2197
    %2201 = vrot.lane.b32.xlu0 %v2176, 96
    %v2202 = vpop.permute.xlu0 %2201
    %2204 = vst.msk [vmem:[#allocation6] sm:$0xff] %vm397, %v2202
    %2205 = vst.msk [vmem:[#allocation6] sm:$0xff] %vm399, %v2187
    %2207 = vrot.lane.b32.xlu0 %v2193, 64
    %v2208 = vpop.permute.xlu0 %2207
    %2210 = vst.msk [vmem:[#allocation5] sm:$0xff] %vm397, %v2208
    %2212 = vrot.lane.b32.xlu0 %v2199, 96
    %v2213 = vpop.permute.xlu0 %2212
    %2215 = vst.msk [vmem:[#allocation5] sm:$0xff] %vm399, %v2213
    %2216 = vst.msk [vmem:[%s827] sm:$0xff] %vm397, %v2208
    %2217 = vrot.lane.b32.xlu0 %v2199, 64
    %v2218 = vpop.permute.xlu0 %2217
    %2220 = vst.msk [vmem:[%s832] sm:$0xff] %vm397, %v2218
    %v2221 = vld [vmem:[#allocation5] sm:$0xff]
    %v2222 = vpack.c.bf16 %v2221, %v2221
    %v2224 = vsel %vm235, %v2222, 0
    %2226 = vmatpush.bf16.msra.mxu0 0
    %2227 = vmatpush.bf16.msra.mxu0 0
    %2228 = vmatpush.bf16.msra.mxu0 0
    %2229 = vmatpush.bf16.msra.mxu0 0
    %2230 = vmatpush.bf16.msra.mxu0 %v1673
    %2231 = vmatpush.bf16.msra.mxu0 %v1671
    %2232 = vmatpush.bf16.msra.mxu0 %v1669
    %2233 = vmatpush.bf16.msra.mxu0 %v1667
    %2234 = vmatmul.bf16.gmra.mxu0 %v2224
    %v2235 = vpop.f32.mrf.mxu0
    %v2236 = vadd.f32 0.0, %v2235
    %v2237 = vpop.f32.mrf.mxu0
    %2238 = vdwg.mxu0
    %2239 = vmatpush.bf16.msra.mxu0 0
    %2240 = vmatpush.bf16.msra.mxu0 0
    %2241 = vmatpush.bf16.msra.mxu0 0
    %2242 = vmatpush.bf16.msra.mxu0 0
    %2243 = vmatpush.bf16.msra.mxu0 %v1674
    %2244 = vmatpush.bf16.msra.mxu0 %v1672
    %2245 = vmatpush.bf16.msra.mxu0 %v1670
    %2246 = vmatpush.bf16.msra.mxu0 %v1668
    %2247 = vmatmul.bf16.gmra.mxu0 %v2224
    %v2248 = vpop.f32.mrf.mxu0
    %v2249 = vadd.f32 0.0, %v2248
    %v2250 = vpop.f32.mrf.mxu0
    %2251 = vdwg.mxu0
    %v2252 = vld [vmem:[%s728] sm:$0xff]
    %v2253 = vld [vmem:[%s726 + $0x8] sm:$0xff]
    %v2254 = vadd.f32 %v2236, %v2252
    %v2255 = vadd.f32 %v2249, %v2253
    %v2256 = vxor.u32 %v2254, 2147483648
    %v2257 = vmul.f32 %v2256, 1.442695
    %v2258 = vpow.pop %v2257
    %v2259 = vadd.f32 %v2258, 1.0
    %v2260 = vrcp.pop %v2259
    %v2261 = vmul.f32 %v2259, %v2260
    %v2262 = vsub.f32 1.0, %v2261
    %v2263 = vmul.f32 %v2260, %v2262
    %v2264 = vadd.f32 %v2260, %v2263
    %vm2265 = vweird.f32 %v2259
    %vm2266 = vweird.f32 %v2260
    %vm2267 = vmor %vm2265, %vm2266
    %v2268 = vsel %vm2267, %v2260, %v2264
    %v2269 = vand.u32 2147483647, %v2259
    %vm2270 = vcmp.eq.f32.partialorder %v2269, 8.507059e+37
    %v2271 = vand.u32 %v2259, 2147483648
    %v2272 = vor.u32 1.1754944e-38, %v2271
    %v2273 = vsel %vm2270, %v2272, %v2268
    %v2274 = vmul.f32 1.0, %v2273
    %v2275 = vxor.u32 %v2255, 2147483648
    %v2276 = vmul.f32 %v2275, 1.442695
    %v2277 = vpow.pop %v2276
    %v2278 = vadd.f32 %v2277, 1.0
    %v2279 = vrcp.pop %v2278
    %v2280 = vmul.f32 %v2278, %v2279
    %v2281 = vsub.f32 1.0, %v2280
    %v2282 = vmul.f32 %v2279, %v2281
    %v2283 = vadd.f32 %v2279, %v2282
    %vm2284 = vweird.f32 %v2278
    %vm2285 = vweird.f32 %v2279
    %vm2286 = vmor %vm2284, %vm2285
    %v2287 = vsel %vm2286, %v2279, %v2283
    %v2288 = vand.u32 2147483647, %v2278
    %vm2289 = vcmp.eq.f32.partialorder %v2288, 8.507059e+37
    %v2290 = vand.u32 %v2278, 2147483648
    %v2291 = vor.u32 1.1754944e-38, %v2290
    %v2292 = vsel %vm2289, %v2291, %v2287
    %v2293 = vmul.f32 1.0, %v2292
    %v2294 = vtanh.pop %v2254
    %v2295 = vtanh.pop %v2255
    %v2296 = vld [vmem:[#allocation6] sm:$0xff]
    %2298 = vrot.lane.b32.xlu0 %v2296, 32
    %v2299 = vpop.permute.xlu0 %2298
    %v2301 = vmul.f32 %v2274, %v2299
    %2303 = vrot.lane.b32.xlu0 %v2294, 32
    %v2304 = vpop.permute.xlu0 %2303
    %v2306 = vmul.f32 %v2274, %v2304
    %2308 = vrot.lane.b32.xlu0 %v2306, 32
    %v2309 = vpop.permute.xlu0 %2308
    %v2311 = vadd.f32 %v2301, %v2309
    %v2312 = vmul.f32 %v2293, %v2296
    %2314 = vrot.lane.b32.xlu0 %v2295, 32
    %v2315 = vpop.permute.xlu0 %2314
    %v2317 = vmul.f32 %v2293, %v2315
    %2319 = vrot.lane.b32.xlu0 %v2317, 32
    %v2320 = vpop.permute.xlu0 %2319
    %v2322 = vadd.f32 %v2312, %v2320
    %v2323 = vtanh.pop %v2311
    %2325 = vrot.lane.b32.xlu0 %v2323, 32
    %v2326 = vpop.permute.xlu0 %2325
    %v2328 = vmul.f32 %v2274, %v2326
    %v2329 = vtanh.pop %v2322
    %2331 = vrot.lane.b32.xlu0 %v2329, 32
    %v2332 = vpop.permute.xlu0 %2331
    %v2334 = vmul.f32 %v2293, %v2332
    %2336 = vrot.lane.b32.xlu0 %v2311, 96
    %v2337 = vpop.permute.xlu0 %2336
    %2339 = vst.msk [vmem:[#allocation6] sm:$0xff] %vm397, %v2337
    %2340 = vst.msk [vmem:[#allocation6] sm:$0xff] %vm399, %v2322
    %2342 = vrot.lane.b32.xlu0 %v2328, 64
    %v2343 = vpop.permute.xlu0 %2342
    %2345 = vst.msk [vmem:[#allocation5] sm:$0xff] %vm397, %v2343
    %2347 = vrot.lane.b32.xlu0 %v2334, 96
    %v2348 = vpop.permute.xlu0 %2347
    %2350 = vst.msk [vmem:[#allocation5] sm:$0xff] %vm399, %v2348
    %2351 = vst.msk [vmem:[%s964] sm:$0xff] %vm397, %v2343
    %2352 = vrot.lane.b32.xlu0 %v2334, 64
    %v2353 = vpop.permute.xlu0 %2352
    %2355 = vst.msk [vmem:[%s969] sm:$0xff] %vm397, %v2353
    %v2356 = vld [vmem:[#allocation5] sm:$0xff]
    %v2357 = vpack.c.bf16 %v2356, %v2356
    %v2359 = vsel %vm235, %v2357, 0
    %2361 = vmatpush.bf16.msra.mxu0 0
    %2362 = vmatpush.bf16.msra.mxu0 0
    %2363 = vmatpush.bf16.msra.mxu0 0
    %2364 = vmatpush.bf16.msra.mxu0 0
    %2365 = vmatpush.bf16.msra.mxu0 %v1673
    %2366 = vmatpush.bf16.msra.mxu0 %v1671
    %2367 = vmatpush.bf16.msra.mxu0 %v1669
    %2368 = vmatpush.bf16.msra.mxu0 %v1667
    %2369 = vmatmul.bf16.gmra.mxu0 %v2359
    %v2370 = vpop.f32.mrf.mxu0
    %v2371 = vadd.f32 0.0, %v2370
    %v2372 = vpop.f32.mrf.mxu0
    %2373 = vdwg.mxu0
    %2374 = vmatpush.bf16.msra.mxu0 0
    %2375 = vmatpush.bf16.msra.mxu0 0
    %2376 = vmatpush.bf16.msra.mxu0 0
    %2377 = vmatpush.bf16.msra.mxu0 0
    %2378 = vmatpush.bf16.msra.mxu0 %v1674
    %2379 = vmatpush.bf16.msra.mxu0 %v1672
    %2380 = vmatpush.bf16.msra.mxu0 %v1670
    %2381 = vmatpush.bf16.msra.mxu0 %v1668
    %2382 = vmatmul.bf16.gmra.mxu0 %v2359
    %v2383 = vpop.f32.mrf.mxu0
    %v2384 = vadd.f32 0.0, %v2383
    %v2385 = vpop.f32.mrf.mxu0
    %2386 = vdwg.mxu0
    %v2387 = vld [vmem:[%s589] sm:$0xff]
    %v2388 = vld [vmem:[%s587 + $0x8] sm:$0xff]
    %v2389 = vadd.f32 %v2371, %v2387
    %v2390 = vadd.f32 %v2384, %v2388
    %v2391 = vxor.u32 %v2389, 2147483648
    %v2392 = vmul.f32 %v2391, 1.442695
    %v2393 = vpow.pop %v2392
    %v2394 = vadd.f32 %v2393, 1.0
    %v2395 = vrcp.pop %v2394
    %v2396 = vmul.f32 %v2394, %v2395
    %v2397 = vsub.f32 1.0, %v2396
    %v2398 = vmul.f32 %v2395, %v2397
    %v2399 = vadd.f32 %v2395, %v2398
    %vm2400 = vweird.f32 %v2394
    %vm2401 = vweird.f32 %v2395
    %vm2402 = vmor %vm2400, %vm2401
    %v2403 = vsel %vm2402, %v2395, %v2399
    %v2404 = vand.u32 2147483647, %v2394
    %vm2405 = vcmp.eq.f32.partialorder %v2404, 8.507059e+37
    %v2406 = vand.u32 %v2394, 2147483648
    %v2407 = vor.u32 1.1754944e-38, %v2406
    %v2408 = vsel %vm2405, %v2407, %v2403
    %v2409 = vmul.f32 1.0, %v2408
    %v2410 = vxor.u32 %v2390, 2147483648
    %v2411 = vmul.f32 %v2410, 1.442695
    %v2412 = vpow.pop %v2411
    %v2413 = vadd.f32 %v2412, 1.0
    %v2414 = vrcp.pop %v2413
    %v2415 = vmul.f32 %v2413, %v2414
    %v2416 = vsub.f32 1.0, %v2415
    %v2417 = vmul.f32 %v2414, %v2416
    %v2418 = vadd.f32 %v2414, %v2417
    %vm2419 = vweird.f32 %v2413
    %vm2420 = vweird.f32 %v2414
    %vm2421 = vmor %vm2419, %vm2420
    %v2422 = vsel %vm2421, %v2414, %v2418
    %v2423 = vand.u32 2147483647, %v2413
    %vm2424 = vcmp.eq.f32.partialorder %v2423, 8.507059e+37
    %v2425 = vand.u32 %v2413, 2147483648
    %v2426 = vor.u32 1.1754944e-38, %v2425
    %v2427 = vsel %vm2424, %v2426, %v2422
    %v2428 = vmul.f32 1.0, %v2427
    %v2429 = vtanh.pop %v2389
    %v2430 = vtanh.pop %v2390
    %v2431 = vld [vmem:[#allocation6] sm:$0xff]
    %2433 = vrot.lane.b32.xlu0 %v2431, 32
    %v2434 = vpop.permute.xlu0 %2433
    %v2436 = vmul.f32 %v2409, %v2434
    %2438 = vrot.lane.b32.xlu0 %v2429, 32
    %v2439 = vpop.permute.xlu0 %2438
    %v2441 = vmul.f32 %v2409, %v2439
    %2443 = vrot.lane.b32.xlu0 %v2441, 32
    %v2444 = vpop.permute.xlu0 %2443
    %v2446 = vadd.f32 %v2436, %v2444
    %v2447 = vmul.f32 %v2428, %v2431
    %2449 = vrot.lane.b32.xlu0 %v2430, 32
    %v2450 = vpop.permute.xlu0 %2449
    %v2452 = vmul.f32 %v2428, %v2450
    %2454 = vrot.lane.b32.xlu0 %v2452, 32
    %v2455 = vpop.permute.xlu0 %2454
    %v2457 = vadd.f32 %v2447, %v2455
    %v2458 = vtanh.pop %v2446
    %2460 = vrot.lane.b32.xlu0 %v2458, 32
    %v2461 = vpop.permute.xlu0 %2460
    %v2463 = vmul.f32 %v2409, %v2461
    %v2464 = vtanh.pop %v2457
    %2466 = vrot.lane.b32.xlu0 %v2464, 32
    %v2467 = vpop.permute.xlu0 %2466
    %v2469 = vmul.f32 %v2428, %v2467
    %2471 = vrot.lane.b32.xlu0 %v2446, 96
    %v2472 = vpop.permute.xlu0 %2471
    %2474 = vst.msk [vmem:[#allocation6] sm:$0xff] %vm397, %v2472
    %2475 = vst.msk [vmem:[#allocation6] sm:$0xff] %vm399, %v2457
    %2477 = vrot.lane.b32.xlu0 %v2463, 64
    %v2478 = vpop.permute.xlu0 %2477
    %2480 = vst.msk [vmem:[#allocation5] sm:$0xff] %vm397, %v2478
    %2482 = vrot.lane.b32.xlu0 %v2469, 96
    %v2483 = vpop.permute.xlu0 %2482
    %2485 = vst.msk [vmem:[#allocation5] sm:$0xff] %vm399, %v2483
    %2486 = vst.msk [vmem:[%s1101] sm:$0xff] %vm397, %v2478
    %2487 = vrot.lane.b32.xlu0 %v2469, 64
    %v2488 = vpop.permute.xlu0 %2487
    %2490 = vst.msk [vmem:[%s1106] sm:$0xff] %vm397, %v2488
    %v2491 = vld [vmem:[#allocation5] sm:$0xff]
    %v2492 = vpack.c.bf16 %v2491, %v2491
    %v2494 = vsel %vm235, %v2492, 0
    %2496 = vmatpush.bf16.msra.mxu0 0
    %2497 = vmatpush.bf16.msra.mxu0 0
    %2498 = vmatpush.bf16.msra.mxu0 0
    %2499 = vmatpush.bf16.msra.mxu0 0
    %2500 = vmatpush.bf16.msra.mxu0 %v1673
    %2501 = vmatpush.bf16.msra.mxu0 %v1671
    %2502 = vmatpush.bf16.msra.mxu0 %v1669
    %2503 = vmatpush.bf16.msra.mxu0 %v1667
    %2504 = vmatmul.bf16.gmra.mxu0 %v2494
    %v2505 = vpop.f32.mrf.mxu0
    %v2506 = vadd.f32 0.0, %v2505
    %v2507 = vpop.f32.mrf.mxu0
    %2508 = vdwg.mxu0
    %2509 = vmatpush.bf16.msra.mxu0 0
    %2510 = vmatpush.bf16.msra.mxu0 0
    %2511 = vmatpush.bf16.msra.mxu0 0
    %2512 = vmatpush.bf16.msra.mxu0 0
    %2513 = vmatpush.bf16.msra.mxu0 %v1674
    %2514 = vmatpush.bf16.msra.mxu0 %v1672
    %2515 = vmatpush.bf16.msra.mxu0 %v1670
    %2516 = vmatpush.bf16.msra.mxu0 %v1668
    %2517 = vmatmul.bf16.gmra.mxu0 %v2494
    %v2518 = vpop.f32.mrf.mxu0
    %v2519 = vadd.f32 0.0, %v2518
    %v2520 = vpop.f32.mrf.mxu0
    %2521 = vdwg.mxu0
    %v2522 = vld [vmem:[%s450] sm:$0xff]
    %v2523 = vld [vmem:[%s448 + $0x8] sm:$0xff]
    %v2524 = vadd.f32 %v2506, %v2522
    %v2525 = vadd.f32 %v2519, %v2523
    %v2526 = vxor.u32 %v2524, 2147483648
    %v2527 = vmul.f32 %v2526, 1.442695
    %v2528 = vpow.pop %v2527
    %v2529 = vadd.f32 %v2528, 1.0
    %v2530 = vrcp.pop %v2529
    %v2531 = vmul.f32 %v2529, %v2530
    %v2532 = vsub.f32 1.0, %v2531
    %v2533 = vmul.f32 %v2530, %v2532
    %v2534 = vadd.f32 %v2530, %v2533
    %vm2535 = vweird.f32 %v2529
    %vm2536 = vweird.f32 %v2530
    %vm2537 = vmor %vm2535, %vm2536
    %v2538 = vsel %vm2537, %v2530, %v2534
    %v2539 = vand.u32 2147483647, %v2529
    %vm2540 = vcmp.eq.f32.partialorder %v2539, 8.507059e+37
    %v2541 = vand.u32 %v2529, 2147483648
    %v2542 = vor.u32 1.1754944e-38, %v2541
    %v2543 = vsel %vm2540, %v2542, %v2538
    %v2544 = vmul.f32 1.0, %v2543
    %v2545 = vxor.u32 %v2525, 2147483648
    %v2546 = vmul.f32 %v2545, 1.442695
    %v2547 = vpow.pop %v2546
    %v2548 = vadd.f32 %v2547, 1.0
    %v2549 = vrcp.pop %v2548
    %v2550 = vmul.f32 %v2548, %v2549
    %v2551 = vsub.f32 1.0, %v2550
    %v2552 = vmul.f32 %v2549, %v2551
    %v2553 = vadd.f32 %v2549, %v2552
    %vm2554 = vweird.f32 %v2548
    %vm2555 = vweird.f32 %v2549
    %vm2556 = vmor %vm2554, %vm2555
    %v2557 = vsel %vm2556, %v2549, %v2553
    %v2558 = vand.u32 2147483647, %v2548
    %vm2559 = vcmp.eq.f32.partialorder %v2558, 8.507059e+37
    %v2560 = vand.u32 %v2548, 2147483648
    %v2561 = vor.u32 1.1754944e-38, %v2560
    %v2562 = vsel %vm2559, %v2561, %v2557
    %v2563 = vmul.f32 1.0, %v2562
    %v2564 = vtanh.pop %v2524
    %v2565 = vtanh.pop %v2525
    %v2566 = vld [vmem:[#allocation6] sm:$0xff]
    %2568 = vrot.lane.b32.xlu0 %v2566, 32
    %v2569 = vpop.permute.xlu0 %2568
    %v2571 = vmul.f32 %v2544, %v2569
    %2573 = vrot.lane.b32.xlu0 %v2564, 32
    %v2574 = vpop.permute.xlu0 %2573
    %v2576 = vmul.f32 %v2544, %v2574
    %2578 = vrot.lane.b32.xlu0 %v2576, 32
    %v2579 = vpop.permute.xlu0 %2578
    %v2581 = vadd.f32 %v2571, %v2579
    %v2582 = vmul.f32 %v2563, %v2566
    %2584 = vrot.lane.b32.xlu0 %v2565, 32
    %v2585 = vpop.permute.xlu0 %2584
    %v2587 = vmul.f32 %v2563, %v2585
    %2589 = vrot.lane.b32.xlu0 %v2587, 32
    %v2590 = vpop.permute.xlu0 %2589
    %v2592 = vadd.f32 %v2582, %v2590
    %v2593 = vtanh.pop %v2581
    %2595 = vrot.lane.b32.xlu0 %v2593, 32
    %v2596 = vpop.permute.xlu0 %2595
    %v2598 = vmul.f32 %v2544, %v2596
    %v2599 = vtanh.pop %v2592
    %2601 = vrot.lane.b32.xlu0 %v2599, 32
    %v2602 = vpop.permute.xlu0 %2601
    %v2604 = vmul.f32 %v2563, %v2602
    %2606 = vrot.lane.b32.xlu0 %v2581, 96
    %v2607 = vpop.permute.xlu0 %2606
    %2609 = vst.msk [vmem:[#allocation6] sm:$0xff] %vm397, %v2607
    %2610 = vst.msk [vmem:[#allocation6] sm:$0xff] %vm399, %v2592
    %2612 = vrot.lane.b32.xlu0 %v2598, 64
    %v2613 = vpop.permute.xlu0 %2612
    %2615 = vst.msk [vmem:[#allocation5] sm:$0xff] %vm397, %v2613
    %2617 = vrot.lane.b32.xlu0 %v2604, 96
    %v2618 = vpop.permute.xlu0 %2617
    %2620 = vst.msk [vmem:[#allocation5] sm:$0xff] %vm399, %v2618
    %2621 = vst.msk [vmem:[%s1238] sm:$0xff] %vm397, %v2613
    %2622 = vrot.lane.b32.xlu0 %v2604, 64
    %v2623 = vpop.permute.xlu0 %2622
    %2625 = vst.msk [vmem:[%s1243] sm:$0xff] %vm397, %v2623
    %v2626 = vld [vmem:[#allocation5] sm:$0xff]
    %v2627 = vpack.c.bf16 %v2626, %v2626
    %v2629 = vsel %vm235, %v2627, 0
    %2631 = vmatpush.bf16.msra.mxu0 0
    %2632 = vmatpush.bf16.msra.mxu0 0
    %2633 = vmatpush.bf16.msra.mxu0 0
    %2634 = vmatpush.bf16.msra.mxu0 0
    %2635 = vmatpush.bf16.msra.mxu0 %v1673
    %2636 = vmatpush.bf16.msra.mxu0 %v1671
    %2637 = vmatpush.bf16.msra.mxu0 %v1669
    %2638 = vmatpush.bf16.msra.mxu0 %v1667
    %2639 = vmatmul.bf16.gmra.mxu0 %v2629
    %v2640 = vpop.f32.mrf.mxu0
    %v2641 = vadd.f32 0.0, %v2640
    %v2642 = vpop.f32.mrf.mxu0
    %2643 = vdwg.mxu0
    %2644 = vmatpush.bf16.msra.mxu0 0
    %2645 = vmatpush.bf16.msra.mxu0 0
    %2646 = vmatpush.bf16.msra.mxu0 0
    %2647 = vmatpush.bf16.msra.mxu0 0
    %2648 = vmatpush.bf16.msra.mxu0 %v1674
    %2649 = vmatpush.bf16.msra.mxu0 %v1672
    %2650 = vmatpush.bf16.msra.mxu0 %v1670
    %2651 = vmatpush.bf16.msra.mxu0 %v1668
    %2652 = vmatmul.bf16.gmra.mxu0 %v2629
    %v2653 = vpop.f32.mrf.mxu0
    %v2654 = vadd.f32 0.0, %v2653
    %v2655 = vpop.f32.mrf.mxu0
    %2656 = vdwg.mxu0
    %v2657 = vld [vmem:[%s310] sm:$0xff]
    %v2658 = vld [vmem:[#allocation2 + $0x8] sm:$0xff]
    %v2659 = vadd.f32 %v2641, %v2657
    %v2660 = vadd.f32 %v2654, %v2658
    %v2661 = vxor.u32 %v2659, 2147483648
    %v2662 = vmul.f32 %v2661, 1.442695
    %v2663 = vpow.pop %v2662
    %v2664 = vadd.f32 %v2663, 1.0
    %v2665 = vrcp.pop %v2664
    %v2666 = vmul.f32 %v2664, %v2665
    %v2667 = vsub.f32 1.0, %v2666
    %v2668 = vmul.f32 %v2665, %v2667
    %v2669 = vadd.f32 %v2665, %v2668
    %vm2670 = vweird.f32 %v2664
    %vm2671 = vweird.f32 %v2665
    %vm2672 = vmor %vm2670, %vm2671
    %v2673 = vsel %vm2672, %v2665, %v2669
    %v2674 = vand.u32 2147483647, %v2664
    %vm2675 = vcmp.eq.f32.partialorder %v2674, 8.507059e+37
    %v2676 = vand.u32 %v2664, 2147483648
    %v2677 = vor.u32 1.1754944e-38, %v2676
    %v2678 = vsel %vm2675, %v2677, %v2673
    %v2679 = vmul.f32 1.0, %v2678
    %v2680 = vxor.u32 %v2660, 2147483648
    %v2681 = vmul.f32 %v2680, 1.442695
    %v2682 = vpow.pop %v2681
    %v2683 = vadd.f32 %v2682, 1.0
    %v2684 = vrcp.pop %v2683
    %v2685 = vmul.f32 %v2683, %v2684
    %v2686 = vsub.f32 1.0, %v2685
    %v2687 = vmul.f32 %v2684, %v2686
    %v2688 = vadd.f32 %v2684, %v2687
    %vm2689 = vweird.f32 %v2683
    %vm2690 = vweird.f32 %v2684
    %vm2691 = vmor %vm2689, %vm2690
    %v2692 = vsel %vm2691, %v2684, %v2688
    %v2693 = vand.u32 2147483647, %v2683
    %vm2694 = vcmp.eq.f32.partialorder %v2693, 8.507059e+37
    %v2695 = vand.u32 %v2683, 2147483648
    %v2696 = vor.u32 1.1754944e-38, %v2695
    %v2697 = vsel %vm2694, %v2696, %v2692
    %v2698 = vmul.f32 1.0, %v2697
    %v2699 = vtanh.pop %v2659
    %v2700 = vtanh.pop %v2660
    %v2701 = vld [vmem:[#allocation6] sm:$0xff]
    %2703 = vrot.lane.b32.xlu0 %v2701, 32
    %v2704 = vpop.permute.xlu0 %2703
    %v2706 = vmul.f32 %v2679, %v2704
    %2708 = vrot.lane.b32.xlu0 %v2699, 32
    %v2709 = vpop.permute.xlu0 %2708
    %v2711 = vmul.f32 %v2679, %v2709
    %2713 = vrot.lane.b32.xlu0 %v2711, 32
    %v2714 = vpop.permute.xlu0 %2713
    %v2716 = vadd.f32 %v2706, %v2714
    %v2717 = vmul.f32 %v2698, %v2701
    %2719 = vrot.lane.b32.xlu0 %v2700, 32
    %v2720 = vpop.permute.xlu0 %2719
    %v2722 = vmul.f32 %v2698, %v2720
    %2724 = vrot.lane.b32.xlu0 %v2722, 32
    %v2725 = vpop.permute.xlu0 %2724
    %v2727 = vadd.f32 %v2717, %v2725
    %v2728 = vtanh.pop %v2716
    %2730 = vrot.lane.b32.xlu0 %v2728, 32
    %v2731 = vpop.permute.xlu0 %2730
    %v2733 = vmul.f32 %v2679, %v2731
    %v2734 = vtanh.pop %v2727
    %2736 = vrot.lane.b32.xlu0 %v2734, 32
    %v2737 = vpop.permute.xlu0 %2736
    %v2739 = vmul.f32 %v2698, %v2737
    %2741 = vrot.lane.b32.xlu0 %v2716, 96
    %v2742 = vpop.permute.xlu0 %2741
    %2744 = vst.msk [vmem:[#allocation6] sm:$0xff] %vm397, %v2742
    %2745 = vst.msk [vmem:[#allocation6] sm:$0xff] %vm399, %v2727
    %2747 = vrot.lane.b32.xlu0 %v2733, 64
    %v2748 = vpop.permute.xlu0 %2747
    %2750 = vst.msk [vmem:[#allocation5] sm:$0xff] %vm397, %v2748
    %2752 = vrot.lane.b32.xlu0 %v2739, 96
    %v2753 = vpop.permute.xlu0 %2752
    %2755 = vst.msk [vmem:[#allocation5] sm:$0xff] %vm399, %v2753
    %2756 = vst.msk [vmem:[%s1375] sm:$0xff] %vm397, %v2748
    %2757 = vrot.lane.b32.xlu0 %v2739, 64
    %v2758 = vpop.permute.xlu0 %2757
    %2760 = vst.msk [vmem:[#allocation4] sm:$0xff] %vm397, %v2758
    %v2761 = vld [vmem:[#allocation3] sm:$0xff]
    %v2762 = vld [vmem:[#allocation3 + $0x8] sm:$0xff]
    %v2763 = vld [vmem:[#allocation3 + $0x10] sm:$0xff]
    %v2764 = vld [vmem:[#allocation3 + $0x18] sm:$0xff]
    %v2765 = vld [vmem:[#allocation3 + $0x20] sm:$0xff]
    %v2766 = vld [vmem:[#allocation3 + $0x28] sm:$0xff]
    %v2767 = vld [vmem:[#allocation3 + $0x30] sm:$0xff]
    %v2768 = vld [vmem:[#allocation3 + $0x38] sm:$0xff]
    %v2769 = vpack.c.bf16 %v2762, %v2761
    %v2770 = vpack.c.bf16 %v2764, %v2763
    %v2771 = vpack.c.bf16 %v2766, %v2765
    %v2772 = vpack.c.bf16 %v2768, %v2767
    %v2773 = vld [vmem:[#allocation4] sm:$0xff]
    %v2774 = vld [vmem:[#allocation4 + $0x8] sm:$0xff]
    %v2775 = vld [vmem:[#allocation4 + $0x10] sm:$0xff]
    %v2776 = vld [vmem:[#allocation4 + $0x18] sm:$0xff]
    %v2777 = vld [vmem:[#allocation4 + $0x20] sm:$0xff]
    %v2778 = vld [vmem:[#allocation4 + $0x28] sm:$0xff]
    %v2779 = vld [vmem:[#allocation4 + $0x30] sm:$0xff]
    %v2780 = vld [vmem:[#allocation4 + $0x38] sm:$0xff]
    %v2781 = vpack.c.bf16 %v2774, %v2773
    %v2782 = vpack.c.bf16 %v2776, %v2775
    %v2783 = vpack.c.bf16 %v2778, %v2777
    %v2784 = vpack.c.bf16 %v2780, %v2779
    %v2785 = vld [vmem:[#allocation12] sm:$0xf]
    %v2786 = vld [vmem:[#allocation12 + $0x4] sm:$0xf]
    %v2787 = vld [vmem:[#allocation12 + $0x8] sm:$0xf]
    %v2788 = vld [vmem:[#allocation12 + $0xc] sm:$0xf]
    %v2789 = vld [vmem:[#allocation13] sm:$0xf]
    %v2790 = vld [vmem:[#allocation13 + $0x4] sm:$0xf]
    %v2791 = vld [vmem:[#allocation13 + $0x8] sm:$0xf]
    %v2792 = vld [vmem:[#allocation13 + $0xc] sm:$0xf]
    %v2797 = vunpack.c.l.b16 %v2789
    %v2798 = vunpack.c.l.b16 %v2790
    %v2799 = vunpack.c.l.b16 %v2791
    %v2800 = vunpack.c.l.b16 %v2792
    %v2801 = vpack.c.b16 %v2798, %v2797
    %v2802 = vpack.c.b16 %v2800, %v2799
    %v2806 = vsel %vm397, %v2781, 0
    %v2809 = vsel %vm397, %v2782, 0
    %v2812 = vsel %vm397, %v2783, 0
    %v2815 = vsel %vm397, %v2784, 0
    %2817 = vmatpush.bf16.msra.mxu0 0
    %2818 = vmatpush.bf16.msra.mxu0 0
    %2819 = vmatpush.bf16.msra.mxu0 0
    %2820 = vmatpush.bf16.msra.mxu0 0
    %2821 = vmatpush.bf16.msra.mxu0 0
    %2822 = vmatpush.bf16.msra.mxu0 0
    %2823 = vmatpush.bf16.msra.mxu0 %v2802
    %2824 = vmatpush.bf16.msra.mxu0 %v2801
    %2825 = vmatmul.bf16.gmra.mxu0 %v2806
    %v2826 = vpop.f32.mrf.mxu0
    %v2827 = vadd.f32 0.0, %v2826
    %v2828 = vpop.f32.mrf.mxu0
    %v2829 = vadd.f32 0.0, %v2828
    %2830 = vmatmul.bf16.gmra.mxu0 %v2809
    %v2831 = vpop.f32.mrf.mxu0
    %v2832 = vadd.f32 0.0, %v2831
    %v2833 = vpop.f32.mrf.mxu0
    %v2834 = vadd.f32 0.0, %v2833
    %2835 = vmatmul.bf16.gmra.mxu0 %v2812
    %v2836 = vpop.f32.mrf.mxu0
    %v2837 = vadd.f32 0.0, %v2836
    %v2838 = vpop.f32.mrf.mxu0
    %v2839 = vadd.f32 0.0, %v2838
    %2840 = vmatmul.bf16.gmra.mxu0 %v2815
    %v2841 = vpop.f32.mrf.mxu0
    %v2842 = vadd.f32 0.0, %v2841
    %v2843 = vpop.f32.mrf.mxu0
    %v2844 = vadd.f32 0.0, %v2843
    %2845 = vdwg.mxu0
    %v2850 = vunpack.c.l.b16 %v2785
    %v2851 = vunpack.c.l.b16 %v2786
    %v2852 = vunpack.c.l.b16 %v2787
    %v2853 = vunpack.c.l.b16 %v2788
    %v2854 = vpack.c.b16 %v2851, %v2850
    %v2855 = vpack.c.b16 %v2853, %v2852
    %v2859 = vsel %vm397, %v2769, 0
    %v2862 = vsel %vm397, %v2770, 0
    %v2865 = vsel %vm397, %v2771, 0
    %v2868 = vsel %vm397, %v2772, 0
    %2870 = vmatpush.bf16.msra.mxu0 0
    %2871 = vmatpush.bf16.msra.mxu0 0
    %2872 = vmatpush.bf16.msra.mxu0 0
    %2873 = vmatpush.bf16.msra.mxu0 0
    %2874 = vmatpush.bf16.msra.mxu0 0
    %2875 = vmatpush.bf16.msra.mxu0 0
    %2876 = vmatpush.bf16.msra.mxu0 %v2855
    %2877 = vmatpush.bf16.msra.mxu0 %v2854
    %2878 = vmatmul.bf16.gmra.mxu0 %v2859
    %v2879 = vpop.f32.mrf.mxu0
    %v2880 = vadd.f32 %v2827, %v2879
    %v2881 = vpop.f32.mrf.mxu0
    %v2882 = vadd.f32 %v2829, %v2881
    %2883 = vmatmul.bf16.gmra.mxu0 %v2862
    %v2884 = vpop.f32.mrf.mxu0
    %v2885 = vadd.f32 %v2832, %v2884
    %v2886 = vpop.f32.mrf.mxu0
    %v2887 = vadd.f32 %v2834, %v2886
    %2888 = vmatmul.bf16.gmra.mxu0 %v2865
    %v2889 = vpop.f32.mrf.mxu0
    %v2890 = vadd.f32 %v2837, %v2889
    %v2891 = vpop.f32.mrf.mxu0
    %v2892 = vadd.f32 %v2839, %v2891
    %2893 = vmatmul.bf16.gmra.mxu0 %v2868
    %v2894 = vpop.f32.mrf.mxu0
    %v2895 = vadd.f32 %v2842, %v2894
    %v2896 = vpop.f32.mrf.mxu0
    %v2897 = vadd.f32 %v2844, %v2896
    %2898 = vdwg.mxu0
    %v2899 = vld [vmem:[%s10] sm:$0x1]
    %v2901 = vperm.slane %v2899, 0
    %v2903 = vadd.f32 %v2880, %v2901
    %v2904 = vadd.f32 %v2882, %v2901
    %v2905 = vadd.f32 %v2885, %v2901
    %v2906 = vadd.f32 %v2887, %v2901
    %v2907 = vadd.f32 %v2890, %v2901
    %v2908 = vadd.f32 %v2892, %v2901
    %v2909 = vadd.f32 %v2895, %v2901
    %v2910 = vadd.f32 %v2897, %v2901
    %v2911 = vmax.f32 %v2903, 0.0
    %v2912 = vmax.f32 %v2904, 0.0
    %v2913 = vmax.f32 %v2905, 0.0
    %v2914 = vmax.f32 %v2906, 0.0
    %v2915 = vmax.f32 %v2907, 0.0
    %v2916 = vmax.f32 %v2908, 0.0
    %v2917 = vmax.f32 %v2909, 0.0
    %v2918 = vmax.f32 %v2910, 0.0
    %v2919 = vld [vmem:[%s11] sm:$0x1]
    %v2921 = vperm.slane %v2919, 0
    %v2923 = vmul.f32 %v2911, %v2921
    %v2924 = vmul.f32 %v2912, %v2921
    %v2925 = vmul.f32 %v2913, %v2921
    %v2926 = vmul.f32 %v2914, %v2921
    %v2927 = vmul.f32 %v2915, %v2921
    %v2928 = vmul.f32 %v2916, %v2921
    %v2929 = vmul.f32 %v2917, %v2921
    %v2930 = vmul.f32 %v2918, %v2921
    %v2931 = vsel %vm397, %v2923, 0.0
    %2932 = vadd.xlane.f32.xlu0 %v2931
    %v2933 = vpop.xlane.xlu0 %2932
    %v2934 = vsel %vm397, %v2924, 0.0
    %2935 = vadd.xlane.f32.xlu0 %v2934
    %v2936 = vpop.xlane.xlu0 %2935
    %v2937 = vsel %vm397, %v2925, 0.0
    %2938 = vadd.xlane.f32.xlu0 %v2937
    %v2939 = vpop.xlane.xlu0 %2938
    %v2940 = vsel %vm397, %v2926, 0.0
    %2941 = vadd.xlane.f32.xlu0 %v2940
    %v2942 = vpop.xlane.xlu0 %2941
    %v2943 = vsel %vm397, %v2927, 0.0
    %2944 = vadd.xlane.f32.xlu0 %v2943
    %v2945 = vpop.xlane.xlu0 %2944
    %v2946 = vsel %vm397, %v2928, 0.0
    %2947 = vadd.xlane.f32.xlu0 %v2946
    %v2948 = vpop.xlane.xlu0 %2947
    %v2949 = vsel %vm397, %v2929, 0.0
    %2950 = vadd.xlane.f32.xlu0 %v2949
    %v2951 = vpop.xlane.xlu0 %2950
    %v2952 = vsel %vm397, %v2930, 0.0
    %2953 = vadd.xlane.f32.xlu0 %v2952
    %v2954 = vpop.xlane.xlu0 %2953
    %v2955 = vld [vmem:[#allocation7] sm:$0x1]
    %v2957 = vperm.slane %v2955, 0
    %v2959 = vadd.f32 %v2933, %v2957
    %v2960 = vadd.f32 %v2936, %v2957
    %v2961 = vadd.f32 %v2939, %v2957
    %v2962 = vadd.f32 %v2942, %v2957
    %v2963 = vadd.f32 %v2945, %v2957
    %v2964 = vadd.f32 %v2948, %v2957
    %v2965 = vadd.f32 %v2951, %v2957
    %v2966 = vadd.f32 %v2954, %v2957
    %v2967 = vxor.u32 %v2959, 2147483648
    %v2968 = vxor.u32 %v2960, 2147483648
    %v2969 = vxor.u32 %v2961, 2147483648
    %v2970 = vxor.u32 %v2962, 2147483648
    %v2971 = vxor.u32 %v2963, 2147483648
    %v2972 = vxor.u32 %v2964, 2147483648
    %v2973 = vxor.u32 %v2965, 2147483648
    %v2974 = vxor.u32 %v2966, 2147483648
    %v2975 = vmul.f32 %v2967, 1.442695
    %v2976 = vpow.pop %v2975
    %v2977 = vmul.f32 %v2968, 1.442695
    %v2978 = vpow.pop %v2977
    %v2979 = vmul.f32 %v2969, 1.442695
    %v2980 = vpow.pop %v2979
    %v2981 = vmul.f32 %v2970, 1.442695
    %v2982 = vpow.pop %v2981
    %v2983 = vmul.f32 %v2971, 1.442695
    %v2984 = vpow.pop %v2983
    %v2985 = vmul.f32 %v2972, 1.442695
    %v2986 = vpow.pop %v2985
    %v2987 = vmul.f32 %v2973, 1.442695
    %v2988 = vpow.pop %v2987
    %v2989 = vmul.f32 %v2974, 1.442695
    %v2990 = vpow.pop %v2989
    %v2991 = vadd.f32 %v2976, 1.0
    %v2992 = vadd.f32 %v2978, 1.0
    %v2993 = vadd.f32 %v2980, 1.0
    %v2994 = vadd.f32 %v2982, 1.0
    %v2995 = vadd.f32 %v2984, 1.0
    %v2996 = vadd.f32 %v2986, 1.0
    %v2997 = vadd.f32 %v2988, 1.0
    %v2998 = vadd.f32 %v2990, 1.0
    %v2999 = vrcp.pop %v2991
    %v3000 = vmul.f32 %v2991, %v2999
    %v3001 = vsub.f32 1.0, %v3000
    %v3002 = vmul.f32 %v2999, %v3001
    %v3003 = vadd.f32 %v2999, %v3002
    %vm3004 = vweird.f32 %v2991
    %vm3005 = vweird.f32 %v2999
    %vm3006 = vmor %vm3004, %vm3005
    %v3007 = vsel %vm3006, %v2999, %v3003
    %v3008 = vand.u32 2147483647, %v2991
    %vm3009 = vcmp.eq.f32.partialorder %v3008, 8.507059e+37
    %v3010 = vand.u32 %v2991, 2147483648
    %v3011 = vor.u32 1.1754944e-38, %v3010
    %v3012 = vsel %vm3009, %v3011, %v3007
    %v3013 = vmul.f32 1.0, %v3012
    %v3014 = vrcp.pop %v2992
    %v3015 = vmul.f32 %v2992, %v3014
    %v3016 = vsub.f32 1.0, %v3015
    %v3017 = vmul.f32 %v3014, %v3016
    %v3018 = vadd.f32 %v3014, %v3017
    %vm3019 = vweird.f32 %v2992
    %vm3020 = vweird.f32 %v3014
    %vm3021 = vmor %vm3019, %vm3020
    %v3022 = vsel %vm3021, %v3014, %v3018
    %v3023 = vand.u32 2147483647, %v2992
    %vm3024 = vcmp.eq.f32.partialorder %v3023, 8.507059e+37
    %v3025 = vand.u32 %v2992, 2147483648
    %v3026 = vor.u32 1.1754944e-38, %v3025
    %v3027 = vsel %vm3024, %v3026, %v3022
    %v3028 = vmul.f32 1.0, %v3027
    %v3029 = vrcp.pop %v2993
    %v3030 = vmul.f32 %v2993, %v3029
    %v3031 = vsub.f32 1.0, %v3030
    %v3032 = vmul.f32 %v3029, %v3031
    %v3033 = vadd.f32 %v3029, %v3032
    %vm3034 = vweird.f32 %v2993
    %vm3035 = vweird.f32 %v3029
    %vm3036 = vmor %vm3034, %vm3035
    %v3037 = vsel %vm3036, %v3029, %v3033
    %v3038 = vand.u32 2147483647, %v2993
    %vm3039 = vcmp.eq.f32.partialorder %v3038, 8.507059e+37
    %v3040 = vand.u32 %v2993, 2147483648
    %v3041 = vor.u32 1.1754944e-38, %v3040
    %v3042 = vsel %vm3039, %v3041, %v3037
    %v3043 = vmul.f32 1.0, %v3042
    %v3044 = vrcp.pop %v2994
    %v3045 = vmul.f32 %v2994, %v3044
    %v3046 = vsub.f32 1.0, %v3045
    %v3047 = vmul.f32 %v3044, %v3046
    %v3048 = vadd.f32 %v3044, %v3047
    %vm3049 = vweird.f32 %v2994
    %vm3050 = vweird.f32 %v3044
    %vm3051 = vmor %vm3049, %vm3050
    %v3052 = vsel %vm3051, %v3044, %v3048
    %v3053 = vand.u32 2147483647, %v2994
    %vm3054 = vcmp.eq.f32.partialorder %v3053, 8.507059e+37
    %v3055 = vand.u32 %v2994, 2147483648
    %v3056 = vor.u32 1.1754944e-38, %v3055
    %v3057 = vsel %vm3054, %v3056, %v3052
    %v3058 = vmul.f32 1.0, %v3057
    %v3059 = vrcp.pop %v2995
    %v3060 = vmul.f32 %v2995, %v3059
    %v3061 = vsub.f32 1.0, %v3060
    %v3062 = vmul.f32 %v3059, %v3061
    %v3063 = vadd.f32 %v3059, %v3062
    %vm3064 = vweird.f32 %v2995
    %vm3065 = vweird.f32 %v3059
    %vm3066 = vmor %vm3064, %vm3065
    %v3067 = vsel %vm3066, %v3059, %v3063
    %v3068 = vand.u32 2147483647, %v2995
    %vm3069 = vcmp.eq.f32.partialorder %v3068, 8.507059e+37
    %v3070 = vand.u32 %v2995, 2147483648
    %v3071 = vor.u32 1.1754944e-38, %v3070
    %v3072 = vsel %vm3069, %v3071, %v3067
    %v3073 = vmul.f32 1.0, %v3072
    %v3074 = vrcp.pop %v2996
    %v3075 = vmul.f32 %v2996, %v3074
    %v3076 = vsub.f32 1.0, %v3075
    %v3077 = vmul.f32 %v3074, %v3076
    %v3078 = vadd.f32 %v3074, %v3077
    %vm3079 = vweird.f32 %v2996
    %vm3080 = vweird.f32 %v3074
    %vm3081 = vmor %vm3079, %vm3080
    %v3082 = vsel %vm3081, %v3074, %v3078
    %v3083 = vand.u32 2147483647, %v2996
    %vm3084 = vcmp.eq.f32.partialorder %v3083, 8.507059e+37
    %v3085 = vand.u32 %v2996, 2147483648
    %v3086 = vor.u32 1.1754944e-38, %v3085
    %v3087 = vsel %vm3084, %v3086, %v3082
    %v3088 = vmul.f32 1.0, %v3087
    %v3089 = vrcp.pop %v2997
    %v3090 = vmul.f32 %v2997, %v3089
    %v3091 = vsub.f32 1.0, %v3090
    %v3092 = vmul.f32 %v3089, %v3091
    %v3093 = vadd.f32 %v3089, %v3092
    %vm3094 = vweird.f32 %v2997
    %vm3095 = vweird.f32 %v3089
    %vm3096 = vmor %vm3094, %vm3095
    %v3097 = vsel %vm3096, %v3089, %v3093
    %v3098 = vand.u32 2147483647, %v2997
    %vm3099 = vcmp.eq.f32.partialorder %v3098, 8.507059e+37
    %v3100 = vand.u32 %v2997, 2147483648
    %v3101 = vor.u32 1.1754944e-38, %v3100
    %v3102 = vsel %vm3099, %v3101, %v3097
    %v3103 = vmul.f32 1.0, %v3102
    %v3104 = vrcp.pop %v2998
    %v3105 = vmul.f32 %v2998, %v3104
    %v3106 = vsub.f32 1.0, %v3105
    %v3107 = vmul.f32 %v3104, %v3106
    %v3108 = vadd.f32 %v3104, %v3107
    %vm3109 = vweird.f32 %v2998
    %vm3110 = vweird.f32 %v3104
    %vm3111 = vmor %vm3109, %vm3110
    %v3112 = vsel %vm3111, %v3104, %v3108
    %v3113 = vand.u32 2147483647, %v2998
    %vm3114 = vcmp.eq.f32.partialorder %v3113, 8.507059e+37
    %v3115 = vand.u32 %v2998, 2147483648
    %v3116 = vor.u32 1.1754944e-38, %v3115
    %v3117 = vsel %vm3114, %v3116, %v3112
    %v3118 = vmul.f32 1.0, %v3117
    %vm3119 = vcmask 7168
    %3120 = vst.msk [vmem:[%s13] sm:$0xff] %vm3119, %v3013
    %3121 = vst.msk [vmem:[%s13 + $0x8] sm:$0xff] %vm3119, %v3028
    %3122 = vst.msk [vmem:[%s13 + $0x10] sm:$0xff] %vm3119, %v3043
    %3123 = vst.msk [vmem:[%s13 + $0x18] sm:$0xff] %vm3119, %v3058
    %3124 = vst.msk [vmem:[%s13 + $0x20] sm:$0xff] %vm3119, %v3073
    %3125 = vst.msk [vmem:[%s13 + $0x28] sm:$0xff] %vm3119, %v3088
    %3126 = vst.msk [vmem:[%s13 + $0x30] sm:$0xff] %vm3119, %v3103
    %3127 = vst.msk [vmem:[%s13 + $0x38] sm:$0xff] %vm3119, %v3118
    // Predicated region
    $region70: #{lstm_silence_classifier.1} parent=1 // pred_check
      _
    $region71: #{lstm_silence_classifier.1} parent=1 // pred_check_branch
      %3129 = sbr.rel (0) target = $region73
    $region72: #{lstm_silence_classifier.1} parent=1 // pred_region
      _
    $region73: #{lstm_silence_classifier.1} parent=1 // pred_fallthru
      _
    // Predicated region
    $region74: #{lstm_silence_classifier.1} parent=1 // pred_check
      _
    $region75: #{lstm_silence_classifier.1} parent=1 // pred_check_branch
      %3131 = sbr.rel (0) target = $region77
    $region76: #{lstm_silence_classifier.1} parent=1 // pred_region
      _
    $region77: #{lstm_silence_classifier.1} parent=1 // pred_fallthru
      _
    %3132 = vsyncpa [#allocation9], 1
    %3133 = vsyncpa [#allocation11], 1
    %3134 = vsyncpa [#allocation14], 1

</llo_original>
